<compile_context>
chip_gen: v6e
topology: v6e:2x2x1
jax: 0.10.0
libtpu: 0.0.40
codegen_flags: <defaults>
</compile_context>

<pallas_src>
import functools

import jax
import jax.numpy as jnp
from jax.experimental import pallas as pl
from jax.experimental.pallas import tpu as pltpu


def _gru_chunk_kernel(maxlen_ref, x_ref, len_ref, wih_ref, bx_ref, whh_ref,
                      bhn_ref, out_ref, hN_ref, h_scr, *, t_chunk, hidden_size):
    """One grid step == one (batch-block, time-chunk); recurrence runs inside."""
    Hp = hidden_size
    c = pl.program_id(1)                  # time-chunk index (sequential axis)
    n_chunks = pl.num_programs(1)

    @pl.when(c == 0)
    def _():                              # hidden=None -> zero initial state
        h_scr[...] = jnp.zeros_like(h_scr)

    chunk_start = c * t_chunk
    active = chunk_start < maxlen_ref[0]  # any sequence still running here?

    @pl.when(active)
    def _():
        w_ih = wih_ref[...]                                  # [C, 3Hp]
        w_hh = whh_ref[...]                                  # [Hp, 3Hp] (r|z|n)
        b_x = bx_ref[...].astype(jnp.float32)                # [1, 3Hp] b_ih + (b_hr|b_hz|0)
        b_hn = bhn_ref[...].astype(jnp.float32)              # [1, Hp]
        len_rel = len_ref[...] - chunk_start                 # [Bb, 1] hoisted offset

        h = h_scr[...]
        for tt in range(t_chunk):        # static unroll: all slices/stores static
            x_t = x_ref[:, tt, :]                             # [Bb, C]
            # Input projection (h-independent -> overlaps with the serial dot).
            gx = jnp.dot(x_t.astype(w_ih.dtype), w_ih,
                         preferred_element_type=jnp.float32) + b_x
            # Recurrent projection: single fused [Hp, 3Hp] MXU matmul.
            gh = jnp.dot(h.astype(w_hh.dtype), w_hh,
                         preferred_element_type=jnp.float32)
            r = jax.nn.sigmoid(gx[:, :Hp] + gh[:, :Hp])
            z = jax.nn.sigmoid(gx[:, Hp:2 * Hp] + gh[:, Hp:2 * Hp])
            n = jnp.tanh(gx[:, 2 * Hp:] + r * (gh[:, 2 * Hp:] + b_hn))
            h_new = n + z * (h - n)                           # == (1-z)*n + z*h
            valid = len_rel > tt                              # [Bb, 1] packed-seq mask
            out_ref[:, tt, :] = jnp.where(valid, h_new, 0.0).astype(out_ref.dtype)
            h = jnp.where(valid, h_new, h)                    # freeze h past length
        h_scr[...] = h

    @pl.when(jnp.logical_not(active))
    def _():                              # fully padded chunk: just zero output
        out_ref[...] = jnp.zeros_like(out_ref)

    @pl.when(c == n_chunks - 1)
    def _():                              # emit final hidden once per batch block
        hN_ref[...] = h_scr[...].astype(hN_ref.dtype)


def _pad_gate_dim(a, h, hp):
    """Pad a trailing dim organised as 3 contiguous gates of size h -> size hp."""
    if hp == h:
        return a
    parts = jnp.split(a, 3, axis=-1)
    pad = [(0, 0)] * (a.ndim - 1) + [(0, hp - h)]
    return jnp.concatenate([jnp.pad(p, pad) for p in parts], axis=-1)


@functools.partial(jax.jit, static_argnames=("t_chunk", "b_block"))
def rnn_wrapper_forward(x, valids, params, t_chunk=8, b_block=None):
    """x: [B, T, C] (batch_first), valids: [B, P] with P == T (prefix mask).

    params = (w_ih [C,3H], w_hh [H,3H], b_ih [3H], b_hh [3H]), gate order r,z,n.
    Returns (output [B, T, H], hidden [1, B, H]) like the PyTorch wrapper.
    """
    w_ih, w_hh, b_ih, b_hh = params
    B, T, C = x.shape
    H = w_hh.shape[0]

    # ---- pad hidden dim to a lane-dense multiple of 128 (exact: padded lanes
    # see only zero weights/biases and a zero initial state, so they stay 0).
    # Production should already use H % 128 == 0 so these pads/slices vanish.
    Hp = ((H + 127) // 128) * 128
    w_ih_p = _pad_gate_dim(w_ih, H, Hp)                           # [C, 3Hp]
    w_hh_p = _pad_gate_dim(w_hh, H, Hp)                           # [H, 3Hp]
    if Hp != H:
        w_hh_p = jnp.pad(w_hh_p, ((0, Hp - H), (0, 0)))           # [Hp, 3Hp]
    b_ih_p = _pad_gate_dim(b_ih, H, Hp)                           # [3Hp]
    b_hh_p = _pad_gate_dim(b_hh, H, Hp)                           # [3Hp]
    # Fold b_hr / b_hz into the input-side bias; only b_hn must stay with the
    # recurrent term (PyTorch scales it by r).
    b_x = b_ih_p.at[:2 * Hp].add(b_hh_p[:2 * Hp]).reshape(1, 3 * Hp)
    b_hn = b_hh_p[2 * Hp:].reshape(1, Hp)

    if b_block is None:
        # Give the "parallel" batch axis >=2 blocks when batch allows so v7x's
        # second TensorCore gets work; otherwise whole batch in one block.
        b_block = B // 2 if (B % 2 == 0 and (B // 2) % 8 == 0) else B
    assert B % b_block == 0 and (b_block == B or b_block % 8 == 0)
    assert t_chunk % 8 == 0 or t_chunk == T, "time-chunk must be 8-aligned (sublane dim)"

    lengths = jnp.sum(valids.astype(jnp.int32), axis=1)           # [B]
    max_len = jnp.max(lengths).reshape(1).astype(jnp.int32)       # scalar-prefetched

    n_chunks = pl.cdiv(T, t_chunk)
    t_pad = n_chunks * t_chunk
    if t_pad != T:              # pad the cheap raw x, not a [T,B,3H] gates tensor
        x = jnp.pad(x, ((0, 0), (0, t_pad - T), (0, 0)))

    kernel = functools.partial(_gru_chunk_kernel, t_chunk=t_chunk, hidden_size=Hp)

    out, h_last = pl.pallas_call(
        kernel,
        out_shape=(
            jax.ShapeDtypeStruct((B, t_pad, Hp), x.dtype),   # batch-first output
            jax.ShapeDtypeStruct((B, Hp), x.dtype),          # final hidden state
        ),
        grid_spec=pltpu.PrefetchScalarGridSpec(
            num_scalar_prefetch=1,                           # max_len -> SMEM
            grid=(B // b_block, n_chunks),
            in_specs=[
                pl.BlockSpec((b_block, t_chunk, C), lambda b, c, ml: (b, c, 0)),  # x
                pl.BlockSpec((b_block, 1), lambda b, c, ml: (b, 0)),              # lengths
                pl.BlockSpec((C, 3 * Hp), lambda b, c, ml: (0, 0)),               # W_ih
                pl.BlockSpec((1, 3 * Hp), lambda b, c, ml: (0, 0)),               # b_x
                pl.BlockSpec((Hp, 3 * Hp), lambda b, c, ml: (0, 0)),              # W_hh
                pl.BlockSpec((1, Hp), lambda b, c, ml: (0, 0)),                   # b_hn
            ],
            out_specs=[
                pl.BlockSpec((b_block, t_chunk, Hp), lambda b, c, ml: (b, c, 0)), # output
                pl.BlockSpec((b_block, Hp), lambda b, c, ml: (b, 0)),             # final h
            ],
            scratch_shapes=[pltpu.VMEM((b_block, Hp), jnp.float32)],              # carried h
        ),
        compiler_params=pltpu.CompilerParams(
            dimension_semantics=("parallel", "arbitrary"),   # batch parallel, time serial
            vmem_limit_bytes=32 * 1024 * 1024,               # explicit budget (v7x: 64 MiB)
        ),
    )(max_len, x, lengths.reshape(B, 1), w_ih_p, b_x, w_hh_p, b_hn)

    output = out[:, :T, :H]      # no-ops when t_chunk | T and H % 128 == 0
    hidden = h_last[:, :H][None]                             # [num_layers=1, B, H]
    return output, hidden


def gru_reference(x, valids, params):
    """Pure-JAX reference mirroring pack/pad + torch.nn.GRU semantics."""
    w_ih, w_hh, b_ih, b_hh = params
    B, T, C = x.shape
    H = w_hh.shape[0]
    lengths = jnp.sum(valids.astype(jnp.int32), axis=1)      # [B]

    def step(h, inp):
        x_t, t = inp
        gx = x_t @ w_ih + b_ih
        gh = h @ w_hh + b_hh
        r = jax.nn.sigmoid(gx[:, :H] + gh[:, :H])
        z = jax.nn.sigmoid(gx[:, H:2 * H] + gh[:, H:2 * H])
        n = jnp.tanh(gx[:, 2 * H:] + r * gh[:, 2 * H:])
        h_new = (1.0 - z) * n + z * h
        valid = (lengths > t)[:, None]
        return jnp.where(valid, h_new, h), jnp.where(valid, h_new, 0.0)

    h0 = jnp.zeros((B, H), dtype=jnp.float32)
    h_last, outs = jax.lax.scan(
        step, h0, (jnp.transpose(x, (1, 0, 2)), jnp.arange(T)))
    return jnp.transpose(outs, (1, 0, 2)), h_last[None]


if __name__ == "__main__":
    B, T, C, H = 2, 16, 4, 32   # batch, seq, input_size, hidden_size

    key = jax.random.PRNGKey(0)
    k_x, k1, k2, k3, k4 = jax.random.split(key, 5)

    # PyTorch-style uniform(-1/sqrt(H), 1/sqrt(H)) GRU parameters, pre-packed
    # per-gate along the output dim (gate order r, z, n).
    s = 1.0 / jnp.sqrt(jnp.float32(H))
    w_ih = jax.random.uniform(k1, (C, 3 * H), jnp.float32, -s, s)
    w_hh = jax.random.uniform(k2, (H, 3 * H), jnp.float32, -s, s)
    b_ih = jax.random.uniform(k3, (3 * H,), jnp.float32, -s, s)
    b_hh = jax.random.uniform(k4, (3 * H,), jnp.float32, -s, s)
    params = (w_ih, w_hh, b_ih, b_hh)

    # Input and prefix valids mask; max length < t_chunk*1 so the second time
    # chunk is all-padded and the scalar-prefetch skip path is exercised.
    x = jax.random.normal(k_x, (B, T, C), jnp.float32)
    lens = jnp.array([7, 5], dtype=jnp.int32)
    valids = (jnp.arange(T)[None, :] < lens[:, None]).astype(jnp.float32)  # [B, T]

    out, hidden = rnn_wrapper_forward(x, valids, params, t_chunk=8)
    jax.block_until_ready((out, hidden))

    out_ref, hidden_ref = gru_reference(x, valids, params)
    assert out.shape == (B, T, H) and hidden.shape == (1, B, H)
    assert jnp.allclose(out, out_ref, atol=1e-5, rtol=1e-5), "output mismatch"
    assert jnp.allclose(hidden, hidden_ref, atol=1e-5, rtol=1e-5), "hidden mismatch"

    print("KERNEL_OK")
</pallas_src>

<mosaic_0001>
module attributes {stable_mosaic.version = 11 : i64} {
  func.func @_gru_chunk_kernel(%arg0: i32, %arg1: i32, %arg2: memref<1xi32, #tpu.memory_space<smem>>, %arg3: memref<2x8x4xf32, #tpu.memory_space<vmem>>, %arg4: memref<2x1xi32, #tpu.memory_space<vmem>>, %arg5: memref<4x384xf32, #tpu.memory_space<vmem>>, %arg6: memref<1x384xf32, #tpu.memory_space<vmem>>, %arg7: memref<128x384xf32, #tpu.memory_space<vmem>>, %arg8: memref<1x128xf32, #tpu.memory_space<vmem>>, %arg9: memref<2x8x128xf32, #tpu.memory_space<vmem>>, %arg10: memref<2x128xf32, #tpu.memory_space<vmem>>, %arg11: memref<2x128xf32, #tpu.memory_space<vmem>>) attributes {dimension_semantics = [#tpu.dimension_semantics<parallel>, #tpu.dimension_semantics<arbitrary>], iteration_bounds = array<i64: 1, 2>, scalar_prefetch = 1 : i64, scratch_operands = 1 : i64, tpu.core_type = #tpu.core_type<tc>, window_params = [{transform_indices = @transform_0, window_bounds = array<i64: 2, 8, 4>}, {transform_indices = @transform_1, window_bounds = array<i64: 2, 1>}, {pipeline_mode = #tpu.pipeline_mode<synchronous>, transform_indices = @transform_2, window_bounds = array<i64: 4, 384>}, {pipeline_mode = #tpu.pipeline_mode<synchronous>, transform_indices = @transform_3, window_bounds = array<i64: 1, 384>}, {pipeline_mode = #tpu.pipeline_mode<synchronous>, transform_indices = @transform_4, window_bounds = array<i64: 128, 384>}, {pipeline_mode = #tpu.pipeline_mode<synchronous>, transform_indices = @transform_5, window_bounds = array<i64: 1, 128>}, {transform_indices = @transform_6, window_bounds = array<i64: 2, 8, 128>}, {transform_indices = @transform_7, window_bounds = array<i64: 2, 128>}]} {
    %c0_i32 = arith.constant 0 : i32
    %0 = arith.cmpi eq, %arg1, %c0_i32 : i32
    %1 = arith.extui %0 : i1 to i32
    %c0_i32_0 = arith.constant 0 : i32
    %2 = arith.cmpi ne, %1, %c0_i32_0 : i32
    scf.if %2 {
      %cst = arith.constant 0.000000e+00 : f32
      %14 = vector.broadcast %cst : f32 to vector<2x128xf32>
      %c0_4 = arith.constant 0 : index
      %c0_5 = arith.constant 0 : index
      %15 = vector.load %arg11[%c0_4, %c0_5] : memref<2x128xf32, #tpu.memory_space<vmem>>, vector<2x128xf32>
      tpu.vector_store %arg11[%c0_4, %c0_5], %14 {strides = array<i32>} : memref<2x128xf32, #tpu.memory_space<vmem>>, vector<2x128xf32>,
    } else {
    }
    %c8_i32 = arith.constant 8 : i32
    %3 = arith.muli %arg1, %c8_i32 : i32
    %c0 = arith.constant 0 : index
    %4 = memref.load %arg2[%c0] : memref<1xi32, #tpu.memory_space<smem>>
    %5 = arith.cmpi slt, %3, %4 : i32
    %6 = arith.extui %5 : i1 to i32
    %c0_i32_1 = arith.constant 0 : i32
    %7 = arith.cmpi ne, %6, %c0_i32_1 : i32
    scf.if %7 {
      %c0_4 = arith.constant 0 : index
      %c0_5 = arith.constant 0 : index
      %14 = vector.load %arg5[%c0_4, %c0_5] : memref<4x384xf32, #tpu.memory_space<vmem>>, vector<4x384xf32>
      %c0_6 = arith.constant 0 : index
      %c0_7 = arith.constant 0 : index
      %15 = vector.load %arg7[%c0_6, %c0_7] : memref<128x384xf32, #tpu.memory_space<vmem>>, vector<128x384xf32>
      %c0_8 = arith.constant 0 : index
      %c0_9 = arith.constant 0 : index
      %16 = vector.load %arg6[%c0_8, %c0_9] : memref<1x384xf32, #tpu.memory_space<vmem>>, vector<1x384xf32>
      %c0_10 = arith.constant 0 : index
      %c0_11 = arith.constant 0 : index
      %17 = vector.load %arg8[%c0_10, %c0_11] : memref<1x128xf32, #tpu.memory_space<vmem>>, vector<1x128xf32>
      %c0_12 = arith.constant 0 : index
      %c0_13 = arith.constant 0 : index
      %18 = vector.load %arg4[%c0_12, %c0_13] : memref<2x1xi32, #tpu.memory_space<vmem>>, vector<2x1xi32>
      %19 = vector.broadcast %3 : i32 to vector<2x1xi32>
      %20 = arith.subi %18, %19 : vector<2x1xi32>
      %c0_14 = arith.constant 0 : index
      %c0_15 = arith.constant 0 : index
      %21 = vector.load %arg11[%c0_14, %c0_15] : memref<2x128xf32, #tpu.memory_space<vmem>>, vector<2x128xf32>
      %c0_16 = arith.constant 0 : index
      %c0_17 = arith.constant 0 : index
      %c0_18 = arith.constant 0 : index
      %22 = vector.load %arg3[%c0_16, %c0_17, %c0_18] : memref<2x8x4xf32, #tpu.memory_space<vmem>>, vector<2x1x4xf32>
      %23 = vector.shape_cast %22 : vector<2x1x4xf32> to vector<2x4xf32>
      %cst = arith.constant dense<0.000000e+00> : vector<2x384xf32>
      %24 = tpu.matmul %23, %14, %cst {dimension_numbers = #tpu.dot_dimension_numbers<[1], [0], [0], [1], [0, 0, 1, 1], [], []>} : vector<2x4xf32>, vector<4x384xf32>, vector<2x384xf32> -> vector<2x384xf32>
      %25 = vector.broadcast %16 : vector<1x384xf32> to vector<2x384xf32>
      %26 = arith.addf %24, %25 : vector<2x384xf32>
      %cst_19 = arith.constant dense<0.000000e+00> : vector<2x384xf32>
      %27 = tpu.matmul %21, %15, %cst_19 {dimension_numbers = #tpu.dot_dimension_numbers<[1], [0], [0], [1], [0, 0, 1, 1], [], []>} : vector<2x128xf32>, vector<128x384xf32>, vector<2x384xf32> -> vector<2x384xf32>
      %28 = vector.extract_strided_slice %26 {offsets = [0, 0], sizes = [2, 128], strides = [1, 1]} : vector<2x384xf32> to vector<2x128xf32>
      %29 = vector.extract_strided_slice %27 {offsets = [0, 0], sizes = [2, 128], strides = [1, 1]} : vector<2x384xf32> to vector<2x128xf32>
      %30 = arith.addf %28, %29 : vector<2x128xf32>
      %31 = arith.negf %30 : vector<2x128xf32>
      %32 = math.exp %31 : vector<2x128xf32>
      %cst_20 = arith.constant 1.000000e+00 : f32
      %33 = vector.broadcast %cst_20 : f32 to vector<2x128xf32>
      %34 = arith.addf %33, %32 : vector<2x128xf32>
      %35 = arith.divf %33, %34 : vector<2x128xf32>
      %36 = vector.extract_strided_slice %26 {offsets = [0, 128], sizes = [2, 128], strides = [1, 1]} : vector<2x384xf32> to vector<2x128xf32>
      %37 = vector.extract_strided_slice %27 {offsets = [0, 128], sizes = [2, 128], strides = [1, 1]} : vector<2x384xf32> to vector<2x128xf32>
      %38 = arith.addf %36, %37 : vector<2x128xf32>
      %39 = arith.negf %38 : vector<2x128xf32>
      %40 = math.exp %39 : vector<2x128xf32>
      %cst_21 = arith.constant 1.000000e+00 : f32
      %41 = vector.broadcast %cst_21 : f32 to vector<2x128xf32>
      %42 = arith.addf %41, %40 : vector<2x128xf32>
      %43 = arith.divf %41, %42 : vector<2x128xf32>
      %44 = vector.extract_strided_slice %26 {offsets = [0, 256], sizes = [2, 128], strides = [1, 1]} : vector<2x384xf32> to vector<2x128xf32>
      %45 = vector.extract_strided_slice %27 {offsets = [0, 256], sizes = [2, 128], strides = [1, 1]} : vector<2x384xf32> to vector<2x128xf32>
      %46 = vector.broadcast %17 : vector<1x128xf32> to vector<2x128xf32>
      %47 = arith.addf %45, %46 : vector<2x128xf32>
      %48 = arith.mulf %35, %47 : vector<2x128xf32>
      %49 = arith.addf %44, %48 : vector<2x128xf32>
      %50 = math.tanh %49 : vector<2x128xf32>
      %51 = arith.subf %21, %50 : vector<2x128xf32>
      %52 = arith.mulf %43, %51 : vector<2x128xf32>
      %53 = arith.addf %50, %52 : vector<2x128xf32>
      %c0_i32_22 = arith.constant 0 : i32
      %54 = vector.broadcast %c0_i32_22 : i32 to vector<2x1xi32>
      %55 = arith.cmpi sgt, %20, %54 : vector<2x1xi32>
      %cst_23 = arith.constant 0.000000e+00 : f32
      %56 = vector.shape_cast %55 : vector<2x1xi1> to vector<2x1xi1>
      %57 = vector.broadcast %56 : vector<2x1xi1> to vector<2x128xi1>
      %58 = vector.broadcast %cst_23 : f32 to vector<2x128xf32>
      %59 = arith.select %57, %53, %58 : vector<2x128xi1>, vector<2x128xf32>
      %c0_24 = arith.constant 0 : index
      %c0_25 = arith.constant 0 : index
      %c0_26 = arith.constant 0 : index
      %60 = vector.load %arg9[%c0_24, %c0_25, %c0_26] : memref<2x8x128xf32, #tpu.memory_space<vmem>>, vector<2x1x128xf32>
      %61 = vector.shape_cast %60 : vector<2x1x128xf32> to vector<2x128xf32>
      %62 = vector.shape_cast %59 : vector<2x128xf32> to vector<2x1x128xf32>
      tpu.vector_store %arg9[%c0_24, %c0_25, %c0_26], %62 {strides = array<i32>} : memref<2x8x128xf32, #tpu.memory_space<vmem>>, vector<2x1x128xf32>,
      %63 = vector.shape_cast %55 : vector<2x1xi1> to vector<2x1xi1>
      %64 = vector.broadcast %63 : vector<2x1xi1> to vector<2x128xi1>
      %65 = arith.select %64, %53, %21 : vector<2x128xi1>, vector<2x128xf32>
      %c0_27 = arith.constant 0 : index
      %c1 = arith.constant 1 : index
      %c0_28 = arith.constant 0 : index
      %66 = vector.load %arg3[%c0_27, %c1, %c0_28] : memref<2x8x4xf32, #tpu.memory_space<vmem>>, vector<2x1x4xf32>
      %67 = vector.shape_cast %66 : vector<2x1x4xf32> to vector<2x4xf32>
      %cst_29 = arith.constant dense<0.000000e+00> : vector<2x384xf32>
      %68 = tpu.matmul %67, %14, %cst_29 {dimension_numbers = #tpu.dot_dimension_numbers<[1], [0], [0], [1], [0, 0, 1, 1], [], []>} : vector<2x4xf32>, vector<4x384xf32>, vector<2x384xf32> -> vector<2x384xf32>
      %69 = vector.broadcast %16 : vector<1x384xf32> to vector<2x384xf32>
      %70 = arith.addf %68, %69 : vector<2x384xf32>
      %cst_30 = arith.constant dense<0.000000e+00> : vector<2x384xf32>
      %71 = tpu.matmul %65, %15, %cst_30 {dimension_numbers = #tpu.dot_dimension_numbers<[1], [0], [0], [1], [0, 0, 1, 1], [], []>} : vector<2x128xf32>, vector<128x384xf32>, vector<2x384xf32> -> vector<2x384xf32>
      %72 = vector.extract_strided_slice %70 {offsets = [0, 0], sizes = [2, 128], strides = [1, 1]} : vector<2x384xf32> to vector<2x128xf32>
      %73 = vector.extract_strided_slice %71 {offsets = [0, 0], sizes = [2, 128], strides = [1, 1]} : vector<2x384xf32> to vector<2x128xf32>
      %74 = arith.addf %72, %73 : vector<2x128xf32>
      %75 = arith.negf %74 : vector<2x128xf32>
      %76 = math.exp %75 : vector<2x128xf32>
      %cst_31 = arith.constant 1.000000e+00 : f32
      %77 = vector.broadcast %cst_31 : f32 to vector<2x128xf32>
      %78 = arith.addf %77, %76 : vector<2x128xf32>
      %79 = arith.divf %77, %78 : vector<2x128xf32>
      %80 = vector.extract_strided_slice %70 {offsets = [0, 128], sizes = [2, 128], strides = [1, 1]} : vector<2x384xf32> to vector<2x128xf32>
      %81 = vector.extract_strided_slice %71 {offsets = [0, 128], sizes = [2, 128], strides = [1, 1]} : vector<2x384xf32> to vector<2x128xf32>
      %82 = arith.addf %80, %81 : vector<2x128xf32>
      %83 = arith.negf %82 : vector<2x128xf32>
      %84 = math.exp %83 : vector<2x128xf32>
      %cst_32 = arith.constant 1.000000e+00 : f32
      %85 = vector.broadcast %cst_32 : f32 to vector<2x128xf32>
      %86 = arith.addf %85, %84 : vector<2x128xf32>
      %87 = arith.divf %85, %86 : vector<2x128xf32>
      %88 = vector.extract_strided_slice %70 {offsets = [0, 256], sizes = [2, 128], strides = [1, 1]} : vector<2x384xf32> to vector<2x128xf32>
      %89 = vector.extract_strided_slice %71 {offsets = [0, 256], sizes = [2, 128], strides = [1, 1]} : vector<2x384xf32> to vector<2x128xf32>
      %90 = vector.broadcast %17 : vector<1x128xf32> to vector<2x128xf32>
      %91 = arith.addf %89, %90 : vector<2x128xf32>
      %92 = arith.mulf %79, %91 : vector<2x128xf32>
      %93 = arith.addf %88, %92 : vector<2x128xf32>
      %94 = math.tanh %93 : vector<2x128xf32>
      %95 = arith.subf %65, %94 : vector<2x128xf32>
      %96 = arith.mulf %87, %95 : vector<2x128xf32>
      %97 = arith.addf %94, %96 : vector<2x128xf32>
      %c1_i32_33 = arith.constant 1 : i32
      %98 = vector.broadcast %c1_i32_33 : i32 to vector<2x1xi32>
      %99 = arith.cmpi sgt, %20, %98 : vector<2x1xi32>
      %cst_34 = arith.constant 0.000000e+00 : f32
      %100 = vector.shape_cast %99 : vector<2x1xi1> to vector<2x1xi1>
      %101 = vector.broadcast %100 : vector<2x1xi1> to vector<2x128xi1>
      %102 = vector.broadcast %cst_34 : f32 to vector<2x128xf32>
      %103 = arith.select %101, %97, %102 : vector<2x128xi1>, vector<2x128xf32>
      %c0_35 = arith.constant 0 : index
      %c1_36 = arith.constant 1 : index
      %c0_37 = arith.constant 0 : index
      %104 = vector.load %arg9[%c0_35, %c1_36, %c0_37] : memref<2x8x128xf32, #tpu.memory_space<vmem>>, vector<2x1x128xf32>
      %105 = vector.shape_cast %104 : vector<2x1x128xf32> to vector<2x128xf32>
      %106 = vector.shape_cast %103 : vector<2x128xf32> to vector<2x1x128xf32>
      tpu.vector_store %arg9[%c0_35, %c1_36, %c0_37], %106 {strides = array<i32>} : memref<2x8x128xf32, #tpu.memory_space<vmem>>, vector<2x1x128xf32>,
      %107 = vector.shape_cast %99 : vector<2x1xi1> to vector<2x1xi1>
      %108 = vector.broadcast %107 : vector<2x1xi1> to vector<2x128xi1>
      %109 = arith.select %108, %97, %65 : vector<2x128xi1>, vector<2x128xf32>
      %c0_38 = arith.constant 0 : index
      %c2 = arith.constant 2 : index
      %c0_39 = arith.constant 0 : index
      %110 = vector.load %arg3[%c0_38, %c2, %c0_39] : memref<2x8x4xf32, #tpu.memory_space<vmem>>, vector<2x1x4xf32>
      %111 = vector.shape_cast %110 : vector<2x1x4xf32> to vector<2x4xf32>
      %cst_40 = arith.constant dense<0.000000e+00> : vector<2x384xf32>
      %112 = tpu.matmul %111, %14, %cst_40 {dimension_numbers = #tpu.dot_dimension_numbers<[1], [0], [0], [1], [0, 0, 1, 1], [], []>} : vector<2x4xf32>, vector<4x384xf32>, vector<2x384xf32> -> vector<2x384xf32>
      %113 = vector.broadcast %16 : vector<1x384xf32> to vector<2x384xf32>
      %114 = arith.addf %112, %113 : vector<2x384xf32>
      %cst_41 = arith.constant dense<0.000000e+00> : vector<2x384xf32>
      %115 = tpu.matmul %109, %15, %cst_41 {dimension_numbers = #tpu.dot_dimension_numbers<[1], [0], [0], [1], [0, 0, 1, 1], [], []>} : vector<2x128xf32>, vector<128x384xf32>, vector<2x384xf32> -> vector<2x384xf32>
      %116 = vector.extract_strided_slice %114 {offsets = [0, 0], sizes = [2, 128], strides = [1, 1]} : vector<2x384xf32> to vector<2x128xf32>
      %117 = vector.extract_strided_slice %115 {offsets = [0, 0], sizes = [2, 128], strides = [1, 1]} : vector<2x384xf32> to vector<2x128xf32>
      %118 = arith.addf %116, %117 : vector<2x128xf32>
      %119 = arith.negf %118 : vector<2x128xf32>
      %120 = math.exp %119 : vector<2x128xf32>
      %cst_42 = arith.constant 1.000000e+00 : f32
      %121 = vector.broadcast %cst_42 : f32 to vector<2x128xf32>
      %122 = arith.addf %121, %120 : vector<2x128xf32>
      %123 = arith.divf %121, %122 : vector<2x128xf32>
      %124 = vector.extract_strided_slice %114 {offsets = [0, 128], sizes = [2, 128], strides = [1, 1]} : vector<2x384xf32> to vector<2x128xf32>
      %125 = vector.extract_strided_slice %115 {offsets = [0, 128], sizes = [2, 128], strides = [1, 1]} : vector<2x384xf32> to vector<2x128xf32>
      %126 = arith.addf %124, %125 : vector<2x128xf32>
      %127 = arith.negf %126 : vector<2x128xf32>
      %128 = math.exp %127 : vector<2x128xf32>
      %cst_43 = arith.constant 1.000000e+00 : f32
      %129 = vector.broadcast %cst_43 : f32 to vector<2x128xf32>
      %130 = arith.addf %129, %128 : vector<2x128xf32>
      %131 = arith.divf %129, %130 : vector<2x128xf32>
      %132 = vector.extract_strided_slice %114 {offsets = [0, 256], sizes = [2, 128], strides = [1, 1]} : vector<2x384xf32> to vector<2x128xf32>
      %133 = vector.extract_strided_slice %115 {offsets = [0, 256], sizes = [2, 128], strides = [1, 1]} : vector<2x384xf32> to vector<2x128xf32>
      %134 = vector.broadcast %17 : vector<1x128xf32> to vector<2x128xf32>
      %135 = arith.addf %133, %134 : vector<2x128xf32>
      %136 = arith.mulf %123, %135 : vector<2x128xf32>
      %137 = arith.addf %132, %136 : vector<2x128xf32>
      %138 = math.tanh %137 : vector<2x128xf32>
      %139 = arith.subf %109, %138 : vector<2x128xf32>
      %140 = arith.mulf %131, %139 : vector<2x128xf32>
      %141 = arith.addf %138, %140 : vector<2x128xf32>
      %c2_i32 = arith.constant 2 : i32
      %142 = vector.broadcast %c2_i32 : i32 to vector<2x1xi32>
      %143 = arith.cmpi sgt, %20, %142 : vector<2x1xi32>
      %cst_44 = arith.constant 0.000000e+00 : f32
      %144 = vector.shape_cast %143 : vector<2x1xi1> to vector<2x1xi1>
      %145 = vector.broadcast %144 : vector<2x1xi1> to vector<2x128xi1>
      %146 = vector.broadcast %cst_44 : f32 to vector<2x128xf32>
      %147 = arith.select %145, %141, %146 : vector<2x128xi1>, vector<2x128xf32>
      %c0_45 = arith.constant 0 : index
      %c2_46 = arith.constant 2 : index
      %c0_47 = arith.constant 0 : index
      %148 = vector.load %arg9[%c0_45, %c2_46, %c0_47] : memref<2x8x128xf32, #tpu.memory_space<vmem>>, vector<2x1x128xf32>
      %149 = vector.shape_cast %148 : vector<2x1x128xf32> to vector<2x128xf32>
      %150 = vector.shape_cast %147 : vector<2x128xf32> to vector<2x1x128xf32>
      tpu.vector_store %arg9[%c0_45, %c2_46, %c0_47], %150 {strides = array<i32>} : memref<2x8x128xf32, #tpu.memory_space<vmem>>, vector<2x1x128xf32>,
      %151 = vector.shape_cast %143 : vector<2x1xi1> to vector<2x1xi1>
      %152 = vector.broadcast %151 : vector<2x1xi1> to vector<2x128xi1>
      %153 = arith.select %152, %141, %109 : vector<2x128xi1>, vector<2x128xf32>
      %c0_48 = arith.constant 0 : index
      %c3 = arith.constant 3 : index
      %c0_49 = arith.constant 0 : index
      %154 = vector.load %arg3[%c0_48, %c3, %c0_49] : memref<2x8x4xf32, #tpu.memory_space<vmem>>, vector<2x1x4xf32>
      %155 = vector.shape_cast %154 : vector<2x1x4xf32> to vector<2x4xf32>
      %cst_50 = arith.constant dense<0.000000e+00> : vector<2x384xf32>
      %156 = tpu.matmul %155, %14, %cst_50 {dimension_numbers = #tpu.dot_dimension_numbers<[1], [0], [0], [1], [0, 0, 1, 1], [], []>} : vector<2x4xf32>, vector<4x384xf32>, vector<2x384xf32> -> vector<2x384xf32>
      %157 = vector.broadcast %16 : vector<1x384xf32> to vector<2x384xf32>
      %158 = arith.addf %156, %157 : vector<2x384xf32>
      %cst_51 = arith.constant dense<0.000000e+00> : vector<2x384xf32>
      %159 = tpu.matmul %153, %15, %cst_51 {dimension_numbers = #tpu.dot_dimension_numbers<[1], [0], [0], [1], [0, 0, 1, 1], [], []>} : vector<2x128xf32>, vector<128x384xf32>, vector<2x384xf32> -> vector<2x384xf32>
      %160 = vector.extract_strided_slice %158 {offsets = [0, 0], sizes = [2, 128], strides = [1, 1]} : vector<2x384xf32> to vector<2x128xf32>
      %161 = vector.extract_strided_slice %159 {offsets = [0, 0], sizes = [2, 128], strides = [1, 1]} : vector<2x384xf32> to vector<2x128xf32>
      %162 = arith.addf %160, %161 : vector<2x128xf32>
      %163 = arith.negf %162 : vector<2x128xf32>
      %164 = math.exp %163 : vector<2x128xf32>
      %cst_52 = arith.constant 1.000000e+00 : f32
      %165 = vector.broadcast %cst_52 : f32 to vector<2x128xf32>
      %166 = arith.addf %165, %164 : vector<2x128xf32>
      %167 = arith.divf %165, %166 : vector<2x128xf32>
      %168 = vector.extract_strided_slice %158 {offsets = [0, 128], sizes = [2, 128], strides = [1, 1]} : vector<2x384xf32> to vector<2x128xf32>
      %169 = vector.extract_strided_slice %159 {offsets = [0, 128], sizes = [2, 128], strides = [1, 1]} : vector<2x384xf32> to vector<2x128xf32>
      %170 = arith.addf %168, %169 : vector<2x128xf32>
      %171 = arith.negf %170 : vector<2x128xf32>
      %172 = math.exp %171 : vector<2x128xf32>
      %cst_53 = arith.constant 1.000000e+00 : f32
      %173 = vector.broadcast %cst_53 : f32 to vector<2x128xf32>
      %174 = arith.addf %173, %172 : vector<2x128xf32>
      %175 = arith.divf %173, %174 : vector<2x128xf32>
      %176 = vector.extract_strided_slice %158 {offsets = [0, 256], sizes = [2, 128], strides = [1, 1]} : vector<2x384xf32> to vector<2x128xf32>
      %177 = vector.extract_strided_slice %159 {offsets = [0, 256], sizes = [2, 128], strides = [1, 1]} : vector<2x384xf32> to vector<2x128xf32>
      %178 = vector.broadcast %17 : vector<1x128xf32> to vector<2x128xf32>
      %179 = arith.addf %177, %178 : vector<2x128xf32>
      %180 = arith.mulf %167, %179 : vector<2x128xf32>
      %181 = arith.addf %176, %180 : vector<2x128xf32>
      %182 = math.tanh %181 : vector<2x128xf32>
      %183 = arith.subf %153, %182 : vector<2x128xf32>
      %184 = arith.mulf %175, %183 : vector<2x128xf32>
      %185 = arith.addf %182, %184 : vector<2x128xf32>
      %c3_i32 = arith.constant 3 : i32
      %186 = vector.broadcast %c3_i32 : i32 to vector<2x1xi32>
      %187 = arith.cmpi sgt, %20, %186 : vector<2x1xi32>
      %cst_54 = arith.constant 0.000000e+00 : f32
      %188 = vector.shape_cast %187 : vector<2x1xi1> to vector<2x1xi1>
      %189 = vector.broadcast %188 : vector<2x1xi1> to vector<2x128xi1>
      %190 = vector.broadcast %cst_54 : f32 to vector<2x128xf32>
      %191 = arith.select %189, %185, %190 : vector<2x128xi1>, vector<2x128xf32>
      %c0_55 = arith.constant 0 : index
      %c3_56 = arith.constant 3 : index
      %c0_57 = arith.constant 0 : index
      %192 = vector.load %arg9[%c0_55, %c3_56, %c0_57] : memref<2x8x128xf32, #tpu.memory_space<vmem>>, vector<2x1x128xf32>
      %193 = vector.shape_cast %192 : vector<2x1x128xf32> to vector<2x128xf32>
      %194 = vector.shape_cast %191 : vector<2x128xf32> to vector<2x1x128xf32>
      tpu.vector_store %arg9[%c0_55, %c3_56, %c0_57], %194 {strides = array<i32>} : memref<2x8x128xf32, #tpu.memory_space<vmem>>, vector<2x1x128xf32>,
      %195 = vector.shape_cast %187 : vector<2x1xi1> to vector<2x1xi1>
      %196 = vector.broadcast %195 : vector<2x1xi1> to vector<2x128xi1>
      %197 = arith.select %196, %185, %153 : vector<2x128xi1>, vector<2x128xf32>
      %c0_58 = arith.constant 0 : index
      %c4 = arith.constant 4 : index
      %c0_59 = arith.constant 0 : index
      %198 = vector.load %arg3[%c0_58, %c4, %c0_59] : memref<2x8x4xf32, #tpu.memory_space<vmem>>, vector<2x1x4xf32>
      %199 = vector.shape_cast %198 : vector<2x1x4xf32> to vector<2x4xf32>
      %cst_60 = arith.constant dense<0.000000e+00> : vector<2x384xf32>
      %200 = tpu.matmul %199, %14, %cst_60 {dimension_numbers = #tpu.dot_dimension_numbers<[1], [0], [0], [1], [0, 0, 1, 1], [], []>} : vector<2x4xf32>, vector<4x384xf32>, vector<2x384xf32> -> vector<2x384xf32>
      %201 = vector.broadcast %16 : vector<1x384xf32> to vector<2x384xf32>
      %202 = arith.addf %200, %201 : vector<2x384xf32>
      %cst_61 = arith.constant dense<0.000000e+00> : vector<2x384xf32>
      %203 = tpu.matmul %197, %15, %cst_61 {dimension_numbers = #tpu.dot_dimension_numbers<[1], [0], [0], [1], [0, 0, 1, 1], [], []>} : vector<2x128xf32>, vector<128x384xf32>, vector<2x384xf32> -> vector<2x384xf32>
      %204 = vector.extract_strided_slice %202 {offsets = [0, 0], sizes = [2, 128], strides = [1, 1]} : vector<2x384xf32> to vector<2x128xf32>
      %205 = vector.extract_strided_slice %203 {offsets = [0, 0], sizes = [2, 128], strides = [1, 1]} : vector<2x384xf32> to vector<2x128xf32>
      %206 = arith.addf %204, %205 : vector<2x128xf32>
      %207 = arith.negf %206 : vector<2x128xf32>
      %208 = math.exp %207 : vector<2x128xf32>
      %cst_62 = arith.constant 1.000000e+00 : f32
      %209 = vector.broadcast %cst_62 : f32 to vector<2x128xf32>
      %210 = arith.addf %209, %208 : vector<2x128xf32>
      %211 = arith.divf %209, %210 : vector<2x128xf32>
      %212 = vector.extract_strided_slice %202 {offsets = [0, 128], sizes = [2, 128], strides = [1, 1]} : vector<2x384xf32> to vector<2x128xf32>
      %213 = vector.extract_strided_slice %203 {offsets = [0, 128], sizes = [2, 128], strides = [1, 1]} : vector<2x384xf32> to vector<2x128xf32>
      %214 = arith.addf %212, %213 : vector<2x128xf32>
      %215 = arith.negf %214 : vector<2x128xf32>
      %216 = math.exp %215 : vector<2x128xf32>
      %cst_63 = arith.constant 1.000000e+00 : f32
      %217 = vector.broadcast %cst_63 : f32 to vector<2x128xf32>
      %218 = arith.addf %217, %216 : vector<2x128xf32>
      %219 = arith.divf %217, %218 : vector<2x128xf32>
      %220 = vector.extract_strided_slice %202 {offsets = [0, 256], sizes = [2, 128], strides = [1, 1]} : vector<2x384xf32> to vector<2x128xf32>
      %221 = vector.extract_strided_slice %203 {offsets = [0, 256], sizes = [2, 128], strides = [1, 1]} : vector<2x384xf32> to vector<2x128xf32>
      %222 = vector.broadcast %17 : vector<1x128xf32> to vector<2x128xf32>
      %223 = arith.addf %221, %222 : vector<2x128xf32>
      %224 = arith.mulf %211, %223 : vector<2x128xf32>
      %225 = arith.addf %220, %224 : vector<2x128xf32>
      %226 = math.tanh %225 : vector<2x128xf32>
      %227 = arith.subf %197, %226 : vector<2x128xf32>
      %228 = arith.mulf %219, %227 : vector<2x128xf32>
      %229 = arith.addf %226, %228 : vector<2x128xf32>
      %c4_i32 = arith.constant 4 : i32
      %230 = vector.broadcast %c4_i32 : i32 to vector<2x1xi32>
      %231 = arith.cmpi sgt, %20, %230 : vector<2x1xi32>
      %cst_64 = arith.constant 0.000000e+00 : f32
      %232 = vector.shape_cast %231 : vector<2x1xi1> to vector<2x1xi1>
      %233 = vector.broadcast %232 : vector<2x1xi1> to vector<2x128xi1>
      %234 = vector.broadcast %cst_64 : f32 to vector<2x128xf32>
      %235 = arith.select %233, %229, %234 : vector<2x128xi1>, vector<2x128xf32>
      %c0_65 = arith.constant 0 : index
      %c4_66 = arith.constant 4 : index
      %c0_67 = arith.constant 0 : index
      %236 = vector.load %arg9[%c0_65, %c4_66, %c0_67] : memref<2x8x128xf32, #tpu.memory_space<vmem>>, vector<2x1x128xf32>
      %237 = vector.shape_cast %236 : vector<2x1x128xf32> to vector<2x128xf32>
      %238 = vector.shape_cast %235 : vector<2x128xf32> to vector<2x1x128xf32>
      tpu.vector_store %arg9[%c0_65, %c4_66, %c0_67], %238 {strides = array<i32>} : memref<2x8x128xf32, #tpu.memory_space<vmem>>, vector<2x1x128xf32>,
      %239 = vector.shape_cast %231 : vector<2x1xi1> to vector<2x1xi1>
      %240 = vector.broadcast %239 : vector<2x1xi1> to vector<2x128xi1>
      %241 = arith.select %240, %229, %197 : vector<2x128xi1>, vector<2x128xf32>
      %c0_68 = arith.constant 0 : index
      %c5 = arith.constant 5 : index
      %c0_69 = arith.constant 0 : index
      %242 = vector.load %arg3[%c0_68, %c5, %c0_69] : memref<2x8x4xf32, #tpu.memory_space<vmem>>, vector<2x1x4xf32>
      %243 = vector.shape_cast %242 : vector<2x1x4xf32> to vector<2x4xf32>
      %cst_70 = arith.constant dense<0.000000e+00> : vector<2x384xf32>
      %244 = tpu.matmul %243, %14, %cst_70 {dimension_numbers = #tpu.dot_dimension_numbers<[1], [0], [0], [1], [0, 0, 1, 1], [], []>} : vector<2x4xf32>, vector<4x384xf32>, vector<2x384xf32> -> vector<2x384xf32>
      %245 = vector.broadcast %16 : vector<1x384xf32> to vector<2x384xf32>
      %246 = arith.addf %244, %245 : vector<2x384xf32>
      %cst_71 = arith.constant dense<0.000000e+00> : vector<2x384xf32>
      %247 = tpu.matmul %241, %15, %cst_71 {dimension_numbers = #tpu.dot_dimension_numbers<[1], [0], [0], [1], [0, 0, 1, 1], [], []>} : vector<2x128xf32>, vector<128x384xf32>, vector<2x384xf32> -> vector<2x384xf32>
      %248 = vector.extract_strided_slice %246 {offsets = [0, 0], sizes = [2, 128], strides = [1, 1]} : vector<2x384xf32> to vector<2x128xf32>
      %249 = vector.extract_strided_slice %247 {offsets = [0, 0], sizes = [2, 128], strides = [1, 1]} : vector<2x384xf32> to vector<2x128xf32>
      %250 = arith.addf %248, %249 : vector<2x128xf32>
      %251 = arith.negf %250 : vector<2x128xf32>
      %252 = math.exp %251 : vector<2x128xf32>
      %cst_72 = arith.constant 1.000000e+00 : f32
      %253 = vector.broadcast %cst_72 : f32 to vector<2x128xf32>
      %254 = arith.addf %253, %252 : vector<2x128xf32>
      %255 = arith.divf %253, %254 : vector<2x128xf32>
      %256 = vector.extract_strided_slice %246 {offsets = [0, 128], sizes = [2, 128], strides = [1, 1]} : vector<2x384xf32> to vector<2x128xf32>
      %257 = vector.extract_strided_slice %247 {offsets = [0, 128], sizes = [2, 128], strides = [1, 1]} : vector<2x384xf32> to vector<2x128xf32>
      %258 = arith.addf %256, %257 : vector<2x128xf32>
      %259 = arith.negf %258 : vector<2x128xf32>
      %260 = math.exp %259 : vector<2x128xf32>
      %cst_73 = arith.constant 1.000000e+00 : f32
      %261 = vector.broadcast %cst_73 : f32 to vector<2x128xf32>
      %262 = arith.addf %261, %260 : vector<2x128xf32>
      %263 = arith.divf %261, %262 : vector<2x128xf32>
      %264 = vector.extract_strided_slice %246 {offsets = [0, 256], sizes = [2, 128], strides = [1, 1]} : vector<2x384xf32> to vector<2x128xf32>
      %265 = vector.extract_strided_slice %247 {offsets = [0, 256], sizes = [2, 128], strides = [1, 1]} : vector<2x384xf32> to vector<2x128xf32>
      %266 = vector.broadcast %17 : vector<1x128xf32> to vector<2x128xf32>
      %267 = arith.addf %265, %266 : vector<2x128xf32>
      %268 = arith.mulf %255, %267 : vector<2x128xf32>
      %269 = arith.addf %264, %268 : vector<2x128xf32>
      %270 = math.tanh %269 : vector<2x128xf32>
      %271 = arith.subf %241, %270 : vector<2x128xf32>
      %272 = arith.mulf %263, %271 : vector<2x128xf32>
      %273 = arith.addf %270, %272 : vector<2x128xf32>
      %c5_i32 = arith.constant 5 : i32
      %274 = vector.broadcast %c5_i32 : i32 to vector<2x1xi32>
      %275 = arith.cmpi sgt, %20, %274 : vector<2x1xi32>
      %cst_74 = arith.constant 0.000000e+00 : f32
      %276 = vector.shape_cast %275 : vector<2x1xi1> to vector<2x1xi1>
      %277 = vector.broadcast %276 : vector<2x1xi1> to vector<2x128xi1>
      %278 = vector.broadcast %cst_74 : f32 to vector<2x128xf32>
      %279 = arith.select %277, %273, %278 : vector<2x128xi1>, vector<2x128xf32>
      %c0_75 = arith.constant 0 : index
      %c5_76 = arith.constant 5 : index
      %c0_77 = arith.constant 0 : index
      %280 = vector.load %arg9[%c0_75, %c5_76, %c0_77] : memref<2x8x128xf32, #tpu.memory_space<vmem>>, vector<2x1x128xf32>
      %281 = vector.shape_cast %280 : vector<2x1x128xf32> to vector<2x128xf32>
      %282 = vector.shape_cast %279 : vector<2x128xf32> to vector<2x1x128xf32>
      tpu.vector_store %arg9[%c0_75, %c5_76, %c0_77], %282 {strides = array<i32>} : memref<2x8x128xf32, #tpu.memory_space<vmem>>, vector<2x1x128xf32>,
      %283 = vector.shape_cast %275 : vector<2x1xi1> to vector<2x1xi1>
      %284 = vector.broadcast %283 : vector<2x1xi1> to vector<2x128xi1>
      %285 = arith.select %284, %273, %241 : vector<2x128xi1>, vector<2x128xf32>
      %c0_78 = arith.constant 0 : index
      %c6 = arith.constant 6 : index
      %c0_79 = arith.constant 0 : index
      %286 = vector.load %arg3[%c0_78, %c6, %c0_79] : memref<2x8x4xf32, #tpu.memory_space<vmem>>, vector<2x1x4xf32>
      %287 = vector.shape_cast %286 : vector<2x1x4xf32> to vector<2x4xf32>
      %cst_80 = arith.constant dense<0.000000e+00> : vector<2x384xf32>
      %288 = tpu.matmul %287, %14, %cst_80 {dimension_numbers = #tpu.dot_dimension_numbers<[1], [0], [0], [1], [0, 0, 1, 1], [], []>} : vector<2x4xf32>, vector<4x384xf32>, vector<2x384xf32> -> vector<2x384xf32>
      %289 = vector.broadcast %16 : vector<1x384xf32> to vector<2x384xf32>
      %290 = arith.addf %288, %289 : vector<2x384xf32>
      %cst_81 = arith.constant dense<0.000000e+00> : vector<2x384xf32>
      %291 = tpu.matmul %285, %15, %cst_81 {dimension_numbers = #tpu.dot_dimension_numbers<[1], [0], [0], [1], [0, 0, 1, 1], [], []>} : vector<2x128xf32>, vector<128x384xf32>, vector<2x384xf32> -> vector<2x384xf32>
      %292 = vector.extract_strided_slice %290 {offsets = [0, 0], sizes = [2, 128], strides = [1, 1]} : vector<2x384xf32> to vector<2x128xf32>
      %293 = vector.extract_strided_slice %291 {offsets = [0, 0], sizes = [2, 128], strides = [1, 1]} : vector<2x384xf32> to vector<2x128xf32>
      %294 = arith.addf %292, %293 : vector<2x128xf32>
      %295 = arith.negf %294 : vector<2x128xf32>
      %296 = math.exp %295 : vector<2x128xf32>
      %cst_82 = arith.constant 1.000000e+00 : f32
      %297 = vector.broadcast %cst_82 : f32 to vector<2x128xf32>
      %298 = arith.addf %297, %296 : vector<2x128xf32>
      %299 = arith.divf %297, %298 : vector<2x128xf32>
      %300 = vector.extract_strided_slice %290 {offsets = [0, 128], sizes = [2, 128], strides = [1, 1]} : vector<2x384xf32> to vector<2x128xf32>
      %301 = vector.extract_strided_slice %291 {offsets = [0, 128], sizes = [2, 128], strides = [1, 1]} : vector<2x384xf32> to vector<2x128xf32>
      %302 = arith.addf %300, %301 : vector<2x128xf32>
      %303 = arith.negf %302 : vector<2x128xf32>
      %304 = math.exp %303 : vector<2x128xf32>
      %cst_83 = arith.constant 1.000000e+00 : f32
      %305 = vector.broadcast %cst_83 : f32 to vector<2x128xf32>
      %306 = arith.addf %305, %304 : vector<2x128xf32>
      %307 = arith.divf %305, %306 : vector<2x128xf32>
      %308 = vector.extract_strided_slice %290 {offsets = [0, 256], sizes = [2, 128], strides = [1, 1]} : vector<2x384xf32> to vector<2x128xf32>
      %309 = vector.extract_strided_slice %291 {offsets = [0, 256], sizes = [2, 128], strides = [1, 1]} : vector<2x384xf32> to vector<2x128xf32>
      %310 = vector.broadcast %17 : vector<1x128xf32> to vector<2x128xf32>
      %311 = arith.addf %309, %310 : vector<2x128xf32>
      %312 = arith.mulf %299, %311 : vector<2x128xf32>
      %313 = arith.addf %308, %312 : vector<2x128xf32>
      %314 = math.tanh %313 : vector<2x128xf32>
      %315 = arith.subf %285, %314 : vector<2x128xf32>
      %316 = arith.mulf %307, %315 : vector<2x128xf32>
      %317 = arith.addf %314, %316 : vector<2x128xf32>
      %c6_i32 = arith.constant 6 : i32
      %318 = vector.broadcast %c6_i32 : i32 to vector<2x1xi32>
      %319 = arith.cmpi sgt, %20, %318 : vector<2x1xi32>
      %cst_84 = arith.constant 0.000000e+00 : f32
      %320 = vector.shape_cast %319 : vector<2x1xi1> to vector<2x1xi1>
      %321 = vector.broadcast %320 : vector<2x1xi1> to vector<2x128xi1>
      %322 = vector.broadcast %cst_84 : f32 to vector<2x128xf32>
      %323 = arith.select %321, %317, %322 : vector<2x128xi1>, vector<2x128xf32>
      %c0_85 = arith.constant 0 : index
      %c6_86 = arith.constant 6 : index
      %c0_87 = arith.constant 0 : index
      %324 = vector.load %arg9[%c0_85, %c6_86, %c0_87] : memref<2x8x128xf32, #tpu.memory_space<vmem>>, vector<2x1x128xf32>
      %325 = vector.shape_cast %324 : vector<2x1x128xf32> to vector<2x128xf32>
      %326 = vector.shape_cast %323 : vector<2x128xf32> to vector<2x1x128xf32>
      tpu.vector_store %arg9[%c0_85, %c6_86, %c0_87], %326 {strides = array<i32>} : memref<2x8x128xf32, #tpu.memory_space<vmem>>, vector<2x1x128xf32>,
      %327 = vector.shape_cast %319 : vector<2x1xi1> to vector<2x1xi1>
      %328 = vector.broadcast %327 : vector<2x1xi1> to vector<2x128xi1>
      %329 = arith.select %328, %317, %285 : vector<2x128xi1>, vector<2x128xf32>
      %c0_88 = arith.constant 0 : index
      %c7 = arith.constant 7 : index
      %c0_89 = arith.constant 0 : index
      %330 = vector.load %arg3[%c0_88, %c7, %c0_89] : memref<2x8x4xf32, #tpu.memory_space<vmem>>, vector<2x1x4xf32>
      %331 = vector.shape_cast %330 : vector<2x1x4xf32> to vector<2x4xf32>
      %cst_90 = arith.constant dense<0.000000e+00> : vector<2x384xf32>
      %332 = tpu.matmul %331, %14, %cst_90 {dimension_numbers = #tpu.dot_dimension_numbers<[1], [0], [0], [1], [0, 0, 1, 1], [], []>} : vector<2x4xf32>, vector<4x384xf32>, vector<2x384xf32> -> vector<2x384xf32>
      %333 = vector.broadcast %16 : vector<1x384xf32> to vector<2x384xf32>
      %334 = arith.addf %332, %333 : vector<2x384xf32>
      %cst_91 = arith.constant dense<0.000000e+00> : vector<2x384xf32>
      %335 = tpu.matmul %329, %15, %cst_91 {dimension_numbers = #tpu.dot_dimension_numbers<[1], [0], [0], [1], [0, 0, 1, 1], [], []>} : vector<2x128xf32>, vector<128x384xf32>, vector<2x384xf32> -> vector<2x384xf32>
      %336 = vector.extract_strided_slice %334 {offsets = [0, 0], sizes = [2, 128], strides = [1, 1]} : vector<2x384xf32> to vector<2x128xf32>
      %337 = vector.extract_strided_slice %335 {offsets = [0, 0], sizes = [2, 128], strides = [1, 1]} : vector<2x384xf32> to vector<2x128xf32>
      %338 = arith.addf %336, %337 : vector<2x128xf32>
      %339 = arith.negf %338 : vector<2x128xf32>
      %340 = math.exp %339 : vector<2x128xf32>
      %cst_92 = arith.constant 1.000000e+00 : f32
      %341 = vector.broadcast %cst_92 : f32 to vector<2x128xf32>
      %342 = arith.addf %341, %340 : vector<2x128xf32>
      %343 = arith.divf %341, %342 : vector<2x128xf32>
      %344 = vector.extract_strided_slice %334 {offsets = [0, 128], sizes = [2, 128], strides = [1, 1]} : vector<2x384xf32> to vector<2x128xf32>
      %345 = vector.extract_strided_slice %335 {offsets = [0, 128], sizes = [2, 128], strides = [1, 1]} : vector<2x384xf32> to vector<2x128xf32>
      %346 = arith.addf %344, %345 : vector<2x128xf32>
      %347 = arith.negf %346 : vector<2x128xf32>
      %348 = math.exp %347 : vector<2x128xf32>
      %cst_93 = arith.constant 1.000000e+00 : f32
      %349 = vector.broadcast %cst_93 : f32 to vector<2x128xf32>
      %350 = arith.addf %349, %348 : vector<2x128xf32>
      %351 = arith.divf %349, %350 : vector<2x128xf32>
      %352 = vector.extract_strided_slice %334 {offsets = [0, 256], sizes = [2, 128], strides = [1, 1]} : vector<2x384xf32> to vector<2x128xf32>
      %353 = vector.extract_strided_slice %335 {offsets = [0, 256], sizes = [2, 128], strides = [1, 1]} : vector<2x384xf32> to vector<2x128xf32>
      %354 = vector.broadcast %17 : vector<1x128xf32> to vector<2x128xf32>
      %355 = arith.addf %353, %354 : vector<2x128xf32>
      %356 = arith.mulf %343, %355 : vector<2x128xf32>
      %357 = arith.addf %352, %356 : vector<2x128xf32>
      %358 = math.tanh %357 : vector<2x128xf32>
      %359 = arith.subf %329, %358 : vector<2x128xf32>
      %360 = arith.mulf %351, %359 : vector<2x128xf32>
      %361 = arith.addf %358, %360 : vector<2x128xf32>
      %c7_i32 = arith.constant 7 : i32
      %362 = vector.broadcast %c7_i32 : i32 to vector<2x1xi32>
      %363 = arith.cmpi sgt, %20, %362 : vector<2x1xi32>
      %cst_94 = arith.constant 0.000000e+00 : f32
      %364 = vector.shape_cast %363 : vector<2x1xi1> to vector<2x1xi1>
      %365 = vector.broadcast %364 : vector<2x1xi1> to vector<2x128xi1>
      %366 = vector.broadcast %cst_94 : f32 to vector<2x128xf32>
      %367 = arith.select %365, %361, %366 : vector<2x128xi1>, vector<2x128xf32>
      %c0_95 = arith.constant 0 : index
      %c7_96 = arith.constant 7 : index
      %c0_97 = arith.constant 0 : index
      %368 = vector.load %arg9[%c0_95, %c7_96, %c0_97] : memref<2x8x128xf32, #tpu.memory_space<vmem>>, vector<2x1x128xf32>
      %369 = vector.shape_cast %368 : vector<2x1x128xf32> to vector<2x128xf32>
      %370 = vector.shape_cast %367 : vector<2x128xf32> to vector<2x1x128xf32>
      tpu.vector_store %arg9[%c0_95, %c7_96, %c0_97], %370 {strides = array<i32>} : memref<2x8x128xf32, #tpu.memory_space<vmem>>, vector<2x1x128xf32>,
      %371 = vector.shape_cast %363 : vector<2x1xi1> to vector<2x1xi1>
      %372 = vector.broadcast %371 : vector<2x1xi1> to vector<2x128xi1>
      %373 = arith.select %372, %361, %329 : vector<2x128xi1>, vector<2x128xf32>
      %c0_98 = arith.constant 0 : index
      %c0_99 = arith.constant 0 : index
      %374 = vector.load %arg11[%c0_98, %c0_99] : memref<2x128xf32, #tpu.memory_space<vmem>>, vector<2x128xf32>
      tpu.vector_store %arg11[%c0_98, %c0_99], %373 {strides = array<i32>} : memref<2x128xf32, #tpu.memory_space<vmem>>, vector<2x128xf32>,
    } else {
    }
    %true = arith.constant true
    %8 = arith.xori %5, %true : i1
    %9 = arith.extui %8 : i1 to i32
    %c0_i32_2 = arith.constant 0 : i32
    %10 = arith.cmpi ne, %9, %c0_i32_2 : i32
    scf.if %10 {
      %cst = arith.constant 0.000000e+00 : f32
      %14 = vector.broadcast %cst : f32 to vector<2x8x128xf32>
      %c0_4 = arith.constant 0 : index
      %c0_5 = arith.constant 0 : index
      %c0_6 = arith.constant 0 : index
      %15 = vector.load %arg9[%c0_4, %c0_5, %c0_6] : memref<2x8x128xf32, #tpu.memory_space<vmem>>, vector<2x8x128xf32>
      tpu.vector_store %arg9[%c0_4, %c0_5, %c0_6], %14 {strides = array<i32>} : memref<2x8x128xf32, #tpu.memory_space<vmem>>, vector<2x8x128xf32>,
    } else {
    }
    %c1_i32 = arith.constant 1 : i32
    %11 = arith.cmpi eq, %arg1, %c1_i32 : i32
    %12 = arith.extui %11 : i1 to i32
    %c0_i32_3 = arith.constant 0 : i32
    %13 = arith.cmpi ne, %12, %c0_i32_3 : i32
    scf.if %13 {
      %c0_4 = arith.constant 0 : index
      %c0_5 = arith.constant 0 : index
      %14 = vector.load %arg11[%c0_4, %c0_5] : memref<2x128xf32, #tpu.memory_space<vmem>>, vector<2x128xf32>
      %c0_6 = arith.constant 0 : index
      %c0_7 = arith.constant 0 : index
      %15 = vector.load %arg10[%c0_6, %c0_7] : memref<2x128xf32, #tpu.memory_space<vmem>>, vector<2x128xf32>
      tpu.vector_store %arg10[%c0_6, %c0_7], %14 {strides = array<i32>} : memref<2x128xf32, #tpu.memory_space<vmem>>, vector<2x128xf32>,
    } else {
    }
    return
  }
  func.func @transform_0(%arg0: i32, %arg1: i32, %arg2: memref<1xi32, #tpu.memory_space<smem>>) -> (i32, i32, i32) {
    %c0_i32 = arith.constant 0 : i32
    %c0_i32_0 = arith.constant 0 : i32
    return %arg0, %arg1, %c0_i32 : i32, i32, i32
  }
  func.func @transform_1(%arg0: i32, %arg1: i32, %arg2: memref<1xi32, #tpu.memory_space<smem>>) -> (i32, i32) {
    %c0_i32 = arith.constant 0 : i32
    %c0_i32_0 = arith.constant 0 : i32
    return %arg0, %c0_i32 : i32, i32
  }
  func.func @transform_2(%arg0: i32, %arg1: i32, %arg2: memref<1xi32, #tpu.memory_space<smem>>) -> (i32, i32) {
    %c0_i32 = arith.constant 0 : i32
    %c0_i32_0 = arith.constant 0 : i32
    %c0_i32_1 = arith.constant 0 : i32
    return %c0_i32, %c0_i32_0 : i32, i32
  }
  func.func @transform_3(%arg0: i32, %arg1: i32, %arg2: memref<1xi32, #tpu.memory_space<smem>>) -> (i32, i32) {
    %c0_i32 = arith.constant 0 : i32
    %c0_i32_0 = arith.constant 0 : i32
    %c0_i32_1 = arith.constant 0 : i32
    return %c0_i32, %c0_i32_0 : i32, i32
  }
  func.func @transform_4(%arg0: i32, %arg1: i32, %arg2: memref<1xi32, #tpu.memory_space<smem>>) -> (i32, i32) {
    %c0_i32 = arith.constant 0 : i32
    %c0_i32_0 = arith.constant 0 : i32
    %c0_i32_1 = arith.constant 0 : i32
    return %c0_i32, %c0_i32_0 : i32, i32
  }
  func.func @transform_5(%arg0: i32, %arg1: i32, %arg2: memref<1xi32, #tpu.memory_space<smem>>) -> (i32, i32) {
    %c0_i32 = arith.constant 0 : i32
    %c0_i32_0 = arith.constant 0 : i32
    %c0_i32_1 = arith.constant 0 : i32
    return %c0_i32, %c0_i32_0 : i32, i32
  }
  func.func @transform_6(%arg0: i32, %arg1: i32, %arg2: memref<1xi32, #tpu.memory_space<smem>>) -> (i32, i32, i32) {
    %c0_i32 = arith.constant 0 : i32
    %c0_i32_0 = arith.constant 0 : i32
    return %arg0, %arg1, %c0_i32 : i32, i32, i32
  }
  func.func @transform_7(%arg0: i32, %arg1: i32, %arg2: memref<1xi32, #tpu.memory_space<smem>>) -> (i32, i32) {
    %c0_i32 = arith.constant 0 : i32
    %c0_i32_0 = arith.constant 0 : i32
    return %arg0, %c0_i32 : i32, i32
  }
}

</mosaic_0001>

<llo_original>
// kernel: rnn_wrapper_forward.1
$region0: #{rnn_wrapper_forward.1}
  #allocation0 [shape = 'u32[]', space=smem, size = 0x4, offset = 0x4, fixed_abs, tag = 'smem constant byte address 0x4 - core index']
  #allocation1 [shape = 'u32[144,128]{1,0:T(1,128)}', space=vmem, size = 0x12000, scoped, tag = 'internal scratch']
  #allocation2 [shape = 'f32[2,128]{1,0:T(2,128)}', space=vmem, size = 0x400, scoped, tag = 'scratch operand']
  #allocation3 [shape = 's32[1]{0}', space=sflag, size = 0x4, scoped, tag = 'scoped memory for rnn_wrapper_forward.1']
  #allocation4 [shape = 's32[1]{0:T(128)S(6)}', space=smem, size = 0x200, scoped, tag = 'prefetched SMEM operand 0']
  %s0 = inlined_call_operand.<no memory space> [shape: s32[1], index: 0, kind: input, shape index: {}]
  %s1 = inlined_call_operand.vmem [shape: f32[2,16,4], index: 1, kind: input, shape index: {}]
  %s2 = inlined_call_operand.vmem [shape: s32[2,1], index: 2, kind: input, shape index: {}]
  %s3 = inlined_call_operand.vmem [shape: f32[4,384], index: 3, kind: input, shape index: {}]
  %s4 = inlined_call_operand.vmem [shape: f32[1,384], index: 4, kind: input, shape index: {}]
  %s5 = inlined_call_operand.vmem [shape: f32[128,384], index: 5, kind: input, shape index: {}]
  %s6 = inlined_call_operand.vmem [shape: f32[1,128], index: 6, kind: input, shape index: {}]
  %s7 = inlined_call_operand.hbm [shape: f32[2,16,128], index: 7, kind: output, shape index: {0}]
  %s8 = inlined_call_operand.vmem [shape: f32[2,128], index: 8, kind: output, shape index: {1}]
  %9 = xla_tuple %s7, %s8
  %s10 = sld [smem:[#allocation0]]
  $region119: #{rnn_wrapper_forward.1} parent=0
    _
  %s12 = ssub.s32 1, %s10
  %s13 = scalar_select 0, %s12, %s10
  %14 = sst [smem:[#allocation4]] %s0
  $region1: #{rnn_wrapper_forward.1} parent=0
    #allocation5 [shape = 'u8[16384]{0}', space=vmem, size = 0x4000, scoped, tag = 'input window, operand 1']
    #allocation6 [shape = 'u8[16384]{0}', space=vmem, size = 0x4000, scoped, tag = 'output window, operand 0']
    #allocation7 [shape = 's32[2]{0}', space=sflag, size = 0x8, scoped, tag = 'scoped memory for rnn_wrapper_forward.1']
    %15 = vsyncpa [#allocation7], 0
    %s16 = scalar_lea.sflag [#allocation7], 1
    %17 = vsyncpa %s16, 0
    loop: start=0, step=1, limit=4
    $region2: #{rnn_wrapper_forward.1} parent=1 // loop_pre_header
      _
    $region3: #{rnn_wrapper_forward.1} parent=1 // loop_header
      %s19 = sphi 0, %s23
      %p20 = scmp.ge.s32.totalorder %s19, 4
      %s26 = sphi 0, %s38
      %s27 = sphi 0, %s34
      %s28 = sphi 0, %s26
      %s29 = sphi 0, %s27
      %s30 = sphi 0, %s28
      %s31 = sphi 0, %s29
      %s43 = sphi 0, %s45
      %s46 = sphi 0, %s43
      %s47 = sphi 0, %s46
      %s63 = sphi 0, %s47
      %s69 = sphi 0, %s71
      %s72 = sphi 0, %s69
      %s73 = sphi 0, %s72
      %s89 = sphi 0, %s73
      %s93 = sphi 0, %s93
      %s95 = sphi 0, %s93
      %s96 = sphi 0, %s95
      %s110 = sphi 0, %s96
      %s114 = sphi 0, %s114
      %s116 = sphi 0, %s114
      %s117 = sphi 0, %s116
      %s131 = sphi 0, %s117
      %s135 = sphi 0, %s135
      %s137 = sphi 0, %s135
      %s138 = sphi 0, %s137
      %s152 = sphi 0, %s138
      %s156 = sphi 0, %s156
      %s158 = sphi 0, %s156
      %s159 = sphi 0, %s158
      %s173 = sphi 0, %s159
      %s181 = sphi 0, %s183
      %s184 = sphi 0, %s181
      %s185 = sphi 0, %s184
      %s201 = sphi 0, %s185
      %s207 = sphi 0, %s209
      %s210 = sphi 0, %s207
      %s211 = sphi 0, %s210
      %s227 = sphi 0, %s211
    $region4: #{rnn_wrapper_forward.1} parent=1 // loop_header_branch
      %22 = sbr.rel (%p20) target = $region8
    $region5: #{rnn_wrapper_forward.1} parent=1 // loop_body
      %s24 = ssub.s32 %s19, 1
      %s25 = ssub.s32 %s19, 2
      %s32 = sadd.s32 1, %s27
      %p33 = scmp.ge.s32.totalorder %s32, 2
      %s34 = scalar_select %p33, 0, %s32
      %s35 = sadd.s32 1, %s26
      %s36 = scalar_select %p33, %s35, %s26
      %p37 = scmp.ge.s32.totalorder %s36, 1
      %s38 = scalar_select %p37, 0, %s36
      %s39 = ssub.s32 %s26, %s38
      %s40 = ssub.s32 %s27, %s34
      %s41 = sor.u32 %s39, %s40
      %p42 = scmp.eq.s32.totalorder %s41, 0
      %s44 = sadd.s32 %s43, 1
      %s45 = scalar_select %p42, %s43, %s44
      %p48 = pneg %p42
      %p49 = scmp.eq.s32.totalorder %s19, 1
      %p50 = por %p48, %p49
      %p51 = scmp.ne.s32.totalorder %s43, %s46
      %p52 = scmp.eq.s32.totalorder %s19, 0
      %p53 = por %p51, %p52
      %p54 = scmp.ne.s32.totalorder %s43, %s46
      %p55 = scmp.eq.s32.totalorder %s24, 1
      %p56 = por %p54, %p55
      %p57 = scmp.ne.s32.totalorder %s46, %s47
      %p58 = scmp.eq.s32.totalorder %s24, 0
      %p59 = por %p57, %p58
      %p60 = scmp.ne.s32.totalorder %s46, %s47
      %p61 = scmp.eq.s32.totalorder %s25, 1
      %p62 = por %p60, %p61
      %p64 = scmp.ne.s32.totalorder %s47, %s63
      %p65 = scmp.eq.s32.totalorder %s25, 0
      %p66 = por %p64, %p65
      %s67 = ssub.s32 %s26, %s38
      %p68 = scmp.eq.s32.totalorder %s67, 0
      %s70 = sadd.s32 %s69, 1
      %s71 = scalar_select %p68, %s69, %s70
      %p74 = pneg %p68
      %p75 = scmp.eq.s32.totalorder %s19, 1
      %p76 = por %p74, %p75
      %p77 = scmp.ne.s32.totalorder %s69, %s72
      %p78 = scmp.eq.s32.totalorder %s19, 0
      %p79 = por %p77, %p78
      %p80 = scmp.ne.s32.totalorder %s69, %s72
      %p81 = scmp.eq.s32.totalorder %s24, 1
      %p82 = por %p80, %p81
      %p83 = scmp.ne.s32.totalorder %s72, %s73
      %p84 = scmp.eq.s32.totalorder %s24, 0
      %p85 = por %p83, %p84
      %p86 = scmp.ne.s32.totalorder %s72, %s73
      %p87 = scmp.eq.s32.totalorder %s25, 1
      %p88 = por %p86, %p87
      %p90 = scmp.ne.s32.totalorder %s73, %s89
      %p91 = scmp.eq.s32.totalorder %s25, 0
      %p92 = por %p90, %p91
      %s94 = sadd.s32 %s93, 1
      %p97 = scmp.eq.s32.totalorder %s19, 1
      %p98 = scmp.ne.s32.totalorder %s93, %s95
      %p99 = scmp.eq.s32.totalorder %s19, 0
      %p100 = por %p98, %p99
      %p101 = scmp.ne.s32.totalorder %s93, %s95
      %p102 = scmp.eq.s32.totalorder %s24, 1
      %p103 = por %p101, %p102
      %p104 = scmp.ne.s32.totalorder %s95, %s96
      %p105 = scmp.eq.s32.totalorder %s24, 0
      %p106 = por %p104, %p105
      %p107 = scmp.ne.s32.totalorder %s95, %s96
      %p108 = scmp.eq.s32.totalorder %s25, 1
      %p109 = por %p107, %p108
      %p111 = scmp.ne.s32.totalorder %s96, %s110
      %p112 = scmp.eq.s32.totalorder %s25, 0
      %p113 = por %p111, %p112
      %s115 = sadd.s32 %s114, 1
      %p118 = scmp.eq.s32.totalorder %s19, 1
      %p119 = scmp.ne.s32.totalorder %s114, %s116
      %p120 = scmp.eq.s32.totalorder %s19, 0
      %p121 = por %p119, %p120
      %p122 = scmp.ne.s32.totalorder %s114, %s116
      %p123 = scmp.eq.s32.totalorder %s24, 1
      %p124 = por %p122, %p123
      %p125 = scmp.ne.s32.totalorder %s116, %s117
      %p126 = scmp.eq.s32.totalorder %s24, 0
      %p127 = por %p125, %p126
      %p128 = scmp.ne.s32.totalorder %s116, %s117
      %p129 = scmp.eq.s32.totalorder %s25, 1
      %p130 = por %p128, %p129
      %p132 = scmp.ne.s32.totalorder %s117, %s131
      %p133 = scmp.eq.s32.totalorder %s25, 0
      %p134 = por %p132, %p133
      %s136 = sadd.s32 %s135, 1
      %p139 = scmp.eq.s32.totalorder %s19, 1
      %p140 = scmp.ne.s32.totalorder %s135, %s137
      %p141 = scmp.eq.s32.totalorder %s19, 0
      %p142 = por %p140, %p141
      %p143 = scmp.ne.s32.totalorder %s135, %s137
      %p144 = scmp.eq.s32.totalorder %s24, 1
      %p145 = por %p143, %p144
      %p146 = scmp.ne.s32.totalorder %s137, %s138
      %p147 = scmp.eq.s32.totalorder %s24, 0
      %p148 = por %p146, %p147
      %p149 = scmp.ne.s32.totalorder %s137, %s138
      %p150 = scmp.eq.s32.totalorder %s25, 1
      %p151 = por %p149, %p150
      %p153 = scmp.ne.s32.totalorder %s138, %s152
      %p154 = scmp.eq.s32.totalorder %s25, 0
      %p155 = por %p153, %p154
      %s157 = sadd.s32 %s156, 1
      %p160 = scmp.eq.s32.totalorder %s19, 1
      %p161 = scmp.ne.s32.totalorder %s156, %s158
      %p162 = scmp.eq.s32.totalorder %s19, 0
      %p163 = por %p161, %p162
      %p164 = scmp.ne.s32.totalorder %s156, %s158
      %p165 = scmp.eq.s32.totalorder %s24, 1
      %p166 = por %p164, %p165
      %p167 = scmp.ne.s32.totalorder %s158, %s159
      %p168 = scmp.eq.s32.totalorder %s24, 0
      %p169 = por %p167, %p168
      %p170 = scmp.ne.s32.totalorder %s158, %s159
      %p171 = scmp.eq.s32.totalorder %s25, 1
      %p172 = por %p170, %p171
      %p174 = scmp.ne.s32.totalorder %s159, %s173
      %p175 = scmp.eq.s32.totalorder %s25, 0
      %p176 = por %p174, %p175
      %s177 = ssub.s32 %s26, %s38
      %s178 = ssub.s32 %s27, %s34
      %s179 = sor.u32 %s177, %s178
      %p180 = scmp.eq.s32.totalorder %s179, 0
      %s182 = sadd.s32 %s181, 1
      %s183 = scalar_select %p180, %s181, %s182
      %p186 = pneg %p180
      %p187 = scmp.eq.s32.totalorder %s19, 1
      %p188 = por %p186, %p187
      %p189 = scmp.ne.s32.totalorder %s181, %s184
      %p190 = scmp.eq.s32.totalorder %s19, 0
      %p191 = por %p189, %p190
      %p192 = scmp.ne.s32.totalorder %s181, %s184
      %p193 = scmp.eq.s32.totalorder %s24, 1
      %p194 = por %p192, %p193
      %p195 = scmp.ne.s32.totalorder %s184, %s185
      %p196 = scmp.eq.s32.totalorder %s24, 0
      %p197 = por %p195, %p196
      %p198 = scmp.ne.s32.totalorder %s184, %s185
      %p199 = scmp.eq.s32.totalorder %s25, 1
      %p200 = por %p198, %p199
      %p202 = scmp.ne.s32.totalorder %s185, %s201
      %p203 = scmp.eq.s32.totalorder %s25, 0
      %p204 = por %p202, %p203
      %s205 = ssub.s32 %s26, %s38
      %p206 = scmp.eq.s32.totalorder %s205, 0
      %s208 = sadd.s32 %s207, 1
      %s209 = scalar_select %p206, %s207, %s208
      %p212 = pneg %p206
      %p213 = scmp.eq.s32.totalorder %s19, 1
      %p214 = por %p212, %p213
      %p215 = scmp.ne.s32.totalorder %s207, %s210
      %p216 = scmp.eq.s32.totalorder %s19, 0
      %p217 = por %p215, %p216
      %p218 = scmp.ne.s32.totalorder %s207, %s210
      %p219 = scmp.eq.s32.totalorder %s24, 1
      %p220 = por %p218, %p219
      %p221 = scmp.ne.s32.totalorder %s210, %s211
      %p222 = scmp.eq.s32.totalorder %s24, 0
      %p223 = por %p221, %p222
      %p224 = scmp.ne.s32.totalorder %s210, %s211
      %p225 = scmp.eq.s32.totalorder %s25, 1
      %p226 = por %p224, %p225
      %p228 = scmp.ne.s32.totalorder %s211, %s227
      %p229 = scmp.eq.s32.totalorder %s25, 0
      %p230 = por %p228, %p229
      %p231 = scmp.le.s32.totalorder 1, %s19
      %p232 = scmp.lt.s32.totalorder %s19, 3
      %p233 = pnand %p231, %p232
      %p234 = pneg %p233
      // Predicated region
      $region9: #{rnn_wrapper_forward.1} parent=5 // pred_check
        _
      $region10: #{rnn_wrapper_forward.1} parent=5 // pred_check_branch
        %236 = sbr.rel (%p233) target = $region12
      $region11: #{rnn_wrapper_forward.1} parent=5 // pred_region
        %s237 = ssub.s32 %s19, 1
        // Predicated region
        $region13: #{rnn_wrapper_forward.1} parent=11 // pred_check
          %p238 = pneg %p85
        $region14: #{rnn_wrapper_forward.1} parent=11 // pred_check_branch
          %240 = sbr.rel (%p238) target = $region16
        $region15: #{rnn_wrapper_forward.1} parent=11 // pred_region
          %p241 = scmp.lt.s32.totalorder %s28, 0
          %s242 = scalar_select %p241, %s28, 0
          %s243 = smul.addr %s242, 2
          %s244 = scalar_lea.vmem %s2, %s243
        $region16: #{rnn_wrapper_forward.1} parent=11 // pred_fallthru
          _
        // Predicated region
        $region17: #{rnn_wrapper_forward.1} parent=11 // pred_check
          %p245 = pneg %p106
        $region18: #{rnn_wrapper_forward.1} parent=11 // pred_check_branch
          %247 = sbr.rel (%p245) target = $region20
        $region19: #{rnn_wrapper_forward.1} parent=11 // pred_region
          _
        $region20: #{rnn_wrapper_forward.1} parent=11 // pred_fallthru
          _
        // Predicated region
        $region21: #{rnn_wrapper_forward.1} parent=11 // pred_check
          %p248 = pneg %p127
        $region22: #{rnn_wrapper_forward.1} parent=11 // pred_check_branch
          %250 = sbr.rel (%p248) target = $region24
        $region23: #{rnn_wrapper_forward.1} parent=11 // pred_region
          _
        $region24: #{rnn_wrapper_forward.1} parent=11 // pred_fallthru
          _
        // Predicated region
        $region25: #{rnn_wrapper_forward.1} parent=11 // pred_check
          %p251 = pneg %p148
        $region26: #{rnn_wrapper_forward.1} parent=11 // pred_check_branch
          %253 = sbr.rel (%p251) target = $region28
        $region27: #{rnn_wrapper_forward.1} parent=11 // pred_region
          _
        $region28: #{rnn_wrapper_forward.1} parent=11 // pred_fallthru
          _
        // Predicated region
        $region29: #{rnn_wrapper_forward.1} parent=11 // pred_check
          %p254 = pneg %p169
        $region30: #{rnn_wrapper_forward.1} parent=11 // pred_check_branch
          %256 = sbr.rel (%p254) target = $region32
        $region31: #{rnn_wrapper_forward.1} parent=11 // pred_region
          _
        $region32: #{rnn_wrapper_forward.1} parent=11 // pred_fallthru
          _
      $region12: #{rnn_wrapper_forward.1} parent=5 // pred_fallthru
        _
      %p257 = scmp.lt.s32.totalorder %s19, 2
      // Predicated region
      $region33: #{rnn_wrapper_forward.1} parent=5 // pred_check
        %p258 = pneg %p257
      $region34: #{rnn_wrapper_forward.1} parent=5 // pred_check_branch
        %260 = sbr.rel (%p258) target = $region36
      $region35: #{rnn_wrapper_forward.1} parent=5 // pred_region
        // Predicated region
        $region37: #{rnn_wrapper_forward.1} parent=35 // pred_check
          %p261 = pneg %p53
        $region38: #{rnn_wrapper_forward.1} parent=35 // pred_check_branch
          %263 = sbr.rel (%p261) target = $region40
        $region39: #{rnn_wrapper_forward.1} parent=35 // pred_region
          %s264 = sand.u32 %s43, 1
          %s265 = sand.u32 %s43, 1
          %s266 = smul.addr %s265, 16
          %s267 = scalar_lea.vmem [#allocation5], %s266
          %s268 = smul.u32 2, %s26
          %s269 = smul.addr %s268, 2
          %s270 = sadd.s32 %s27, %s269
          %s271 = smul.addr %s270, 8
          %s272 = scalar_lea.vmem %s1, %s271
          // Predicated region
          $region41: #{rnn_wrapper_forward.1} parent=39 // pred_check
            _
          $region42: #{rnn_wrapper_forward.1} parent=39 // pred_check_branch
            %274 = sbr.rel (0) target = $region44
          $region43: #{rnn_wrapper_forward.1} parent=39 // pred_region
            // Predicated region
            $region45: #{rnn_wrapper_forward.1} parent=43 // pred_check
              _
            $region46: #{rnn_wrapper_forward.1} parent=43 // pred_check_branch
              %276 = sbr.rel (0) target = $region48
            $region47: #{rnn_wrapper_forward.1} parent=43 // pred_region
              // Predicated region
              $region60: #{rnn_wrapper_forward.1} parent=47 // pred_check
                _
              $region61: #{rnn_wrapper_forward.1} parent=47 // pred_check_branch
                %294 = sbr.rel (0) target = $region63
              $region62: #{rnn_wrapper_forward.1} parent=47 // pred_region
                loop: start=0, step=1, limit=1
                $region64: #{rnn_wrapper_forward.1} parent=62 // loop_pre_header
                  _
                $region65: #{rnn_wrapper_forward.1} parent=62 // loop_header
                  %s296 = sphi 0, %s300
                  %p297 = scmp.ge.s32.totalorder %s296, 1
                  %s301 = sphi %s272, %s272
                  %s302 = sphi %s267, %s267
                $region66: #{rnn_wrapper_forward.1} parent=62 // loop_header_branch
                  %299 = sbr.rel (%p297) target = $region70
                $region67: #{rnn_wrapper_forward.1} parent=62 // loop_body
                  %v303 = vld [vmem:[%s301] sm:$0xff]
                  %304 = vst [vmem:[%s302] sm:$0xff] %v303
                  %v305 = vld [vmem:[%s301 + $0x10] sm:$0xff]
                  %306 = vst [vmem:[%s302 + $0x8] sm:$0xff] %v305
                $region68: #{rnn_wrapper_forward.1} parent=62 // loop_footer
                  %s300 = sadd.s32 1, %s296
                $region69: #{rnn_wrapper_forward.1} parent=62 // loop_footer_branch
                  %295 = sbr.rel target = $region65
                $region70: #{rnn_wrapper_forward.1} parent=62 // loop_exit
                  _
              $region63: #{rnn_wrapper_forward.1} parent=47 // pred_fallthru
                _
              // Predicated region
              $region71: #{rnn_wrapper_forward.1} parent=47 // pred_check
                _
              $region72: #{rnn_wrapper_forward.1} parent=47 // pred_check_branch
                %308 = sbr.rel target = $region74
              $region73: #{rnn_wrapper_forward.1} parent=47 // pred_region
                _
              $region74: #{rnn_wrapper_forward.1} parent=47 // pred_fallthru
                _
            $region48: #{rnn_wrapper_forward.1} parent=43 // pred_fallthru
              _
            // Predicated region
            $region49: #{rnn_wrapper_forward.1} parent=43 // pred_check
              _
            $region50: #{rnn_wrapper_forward.1} parent=43 // pred_check_branch
              %278 = sbr.rel target = $region52
            $region51: #{rnn_wrapper_forward.1} parent=43 // pred_region
              %s280 = ssub.s32 256, 1
              loop: start=0, step=1, limit=1
              $region53: #{rnn_wrapper_forward.1} parent=51 // loop_pre_header
                _
              $region54: #{rnn_wrapper_forward.1} parent=51 // loop_header
                %s282 = sphi 0, %s286
                %p283 = scmp.ge.s32.totalorder %s282, 1
                %s287 = sphi %s272, %s272
                %s288 = sphi %s267, %s267
              $region55: #{rnn_wrapper_forward.1} parent=51 // loop_header_branch
                %285 = sbr.rel (%p283) target = $region59
              $region56: #{rnn_wrapper_forward.1} parent=51 // loop_body
                %v289 = vld [vmem:[%s287] sm:%s280]
                %290 = vst [vmem:[%s288] sm:%s280] %v289
                %v291 = vld [vmem:[%s287 + $0x10] sm:%s280]
                %292 = vst [vmem:[%s288 + $0x8] sm:%s280] %v291
              $region57: #{rnn_wrapper_forward.1} parent=51 // loop_footer
                %s286 = sadd.s32 1, %s282
              $region58: #{rnn_wrapper_forward.1} parent=51 // loop_footer_branch
                %281 = sbr.rel target = $region54
              $region59: #{rnn_wrapper_forward.1} parent=51 // loop_exit
                _
            $region52: #{rnn_wrapper_forward.1} parent=43 // pred_fallthru
              _
          $region44: #{rnn_wrapper_forward.1} parent=39 // pred_fallthru
            _
          %309 = vnop
        $region40: #{rnn_wrapper_forward.1} parent=35 // pred_fallthru
          _
      $region36: #{rnn_wrapper_forward.1} parent=5 // pred_fallthru
        _
      %p310 = scmp.le.s32.totalorder 1, %s19
      %p311 = scmp.lt.s32.totalorder %s19, 3
      %p312 = pnand %p310, %p311
      %p313 = pneg %p312
      // Predicated region
      $region75: #{rnn_wrapper_forward.1} parent=5 // pred_check
        _
      $region76: #{rnn_wrapper_forward.1} parent=5 // pred_check_branch
        %315 = sbr.rel (%p312) target = $region78
      $region77: #{rnn_wrapper_forward.1} parent=5 // pred_region
        %s316 = ssub.s32 %s19, 1
        %s317 = sand.u32 %s46, 1
        %s318 = sand.u32 %s46, 1
        %s319 = smul.addr %s318, 16
        %s320 = scalar_lea.vmem [#allocation5], %s319
        // Predicated region
        $region79: #{rnn_wrapper_forward.1} parent=77 // pred_check
          %p321 = pneg %p59
        $region80: #{rnn_wrapper_forward.1} parent=77 // pred_check_branch
          %323 = sbr.rel (%p321) target = $region82
        $region81: #{rnn_wrapper_forward.1} parent=77 // pred_region
          _
        $region82: #{rnn_wrapper_forward.1} parent=77 // pred_fallthru
          _
        %s324 = sand.u32 %s46, 1
        %s325 = sand.u32 %s46, 1
        %s326 = smul.addr %s325, 16
        %s327 = scalar_lea.vmem [#allocation5], %s326
        %p328 = pneg %p59
        %p329 = pneg %p56
        %p330 = scmp.lt.s32.totalorder %s28, 0
        %s331 = scalar_select %p330, %s28, 0
        %s332 = smul.addr %s331, 2
        %s333 = scalar_lea.vmem %s2, %s332
        %p334 = pneg %p85
        %p335 = pneg %p82
        %p336 = pneg %p106
        %p337 = pneg %p103
        %p338 = pneg %p127
        %p339 = pneg %p124
        %p340 = pneg %p148
        %p341 = pneg %p145
        %p342 = pneg %p169
        %p343 = pneg %p166
        %p344 = pneg %p197
        %p345 = pneg %p194
        %s346 = sand.u32 %s184, 1
        %s347 = scalar_lea.sflag [#allocation7], %s346
        %s348 = sand.u32 %s184, 1
        %s349 = smul.addr %s348, 16
        %s350 = scalar_lea.vmem [#allocation6], %s349
        %p351 = pneg %p223
        %p352 = pneg %p220
        %p353 = scmp.lt.s32.totalorder %s28, 0
        %s354 = scalar_select %p353, %s28, 0
        %s355 = smul.addr %s354, 2
        %s356 = scalar_lea.vmem %s8, %s355
        %s357 = smul.u32 2, %s28
        %p358 = scmp.lt.s32.totalorder %s28, 0
        %s359 = scalar_select %p358, %s28, 0
        %s360 = smul.addr %s359, 2
        %s361 = scalar_lea.vmem %s2, %s360
        %s362 = smul.u32 2, %s28
        %p363 = scmp.lt.s32.totalorder %s28, 0
        %s364 = scalar_select %p363, %s28, 0
        %s365 = smul.addr %s364, 2
        %s366 = scalar_lea.vmem %s8, %s365
        %p367 = scmp.eq.s32.totalorder %s29, 0
        // Predicated region
        $region83: #{rnn_wrapper_forward.1} parent=77 // pred_check
          %p368 = pneg %p367
        $region84: #{rnn_wrapper_forward.1} parent=77 // pred_check_branch
          %370 = sbr.rel (%p368) target = $region86
        $region85: #{rnn_wrapper_forward.1} parent=77 // pred_region
          %371 = vst [vmem:[#allocation2] sm:$0x3] 0.0
        $region86: #{rnn_wrapper_forward.1} parent=77 // pred_fallthru
          _
        %s372 = smul.u32 %s29, 8
        %s373 = sld [smem:[#allocation4]]
        %p374 = scmp.lt.s32.totalorder %s372, %s373
        // Predicated region
        $region87: #{rnn_wrapper_forward.1} parent=77 // pred_check
          %p375 = pneg %p374
        $region88: #{rnn_wrapper_forward.1} parent=77 // pred_check_branch
          %377 = sbr.rel (%p375) target = $region90
        $region89: #{rnn_wrapper_forward.1} parent=77 // pred_region
          %v378 = vld [vmem:[%s3] sm:$0xff]
          %v379 = vld [vmem:[%s3 + $0x8] sm:$0xf]
          %v380 = vld [vmem:[%s5] sm:$0xff]
          %v381 = vld [vmem:[%s5 + $0x8] sm:$0xff]
          %v382 = vld [vmem:[%s5 + $0x10] sm:$0xff]
          %v383 = vld [vmem:[%s5 + $0x18] sm:$0xff]
          %v384 = vld [vmem:[%s5 + $0x20] sm:$0xff]
          %v385 = vld [vmem:[%s5 + $0x28] sm:$0xff]
          %v386 = vld [vmem:[%s5 + $0x30] sm:$0xff]
          %v387 = vld [vmem:[%s5 + $0x38] sm:$0xff]
          %v388 = vld [vmem:[%s5 + $0x40] sm:$0xff]
          %v389 = vld [vmem:[%s5 + $0x48] sm:$0xff]
          %v390 = vld [vmem:[%s5 + $0x50] sm:$0xff]
          %v391 = vld [vmem:[%s5 + $0x58] sm:$0xff]
          %v392 = vld [vmem:[%s5 + $0x60] sm:$0xff]
          %v393 = vld [vmem:[%s5 + $0x68] sm:$0xff]
          %v394 = vld [vmem:[%s5 + $0x70] sm:$0xff]
          %v395 = vld [vmem:[%s5 + $0x78] sm:$0xff]
          %v396 = vld [vmem:[%s5 + $0x80] sm:$0xff]
          %v397 = vld [vmem:[%s5 + $0x88] sm:$0xff]
          %v398 = vld [vmem:[%s5 + $0x90] sm:$0xff]
          %v399 = vld [vmem:[%s5 + $0x98] sm:$0xff]
          %v400 = vld [vmem:[%s5 + $0xa0] sm:$0xff]
          %v401 = vld [vmem:[%s5 + $0xa8] sm:$0xff]
          %v402 = vld [vmem:[%s5 + $0xb0] sm:$0xff]
          %v403 = vld [vmem:[%s5 + $0xb8] sm:$0xff]
          %v404 = vld [vmem:[%s5 + $0xc0] sm:$0xff]
          %v405 = vld [vmem:[%s5 + $0xc8] sm:$0xff]
          %v406 = vld [vmem:[%s5 + $0xd0] sm:$0xff]
          %v407 = vld [vmem:[%s5 + $0xd8] sm:$0xff]
          %v408 = vld [vmem:[%s5 + $0xe0] sm:$0xff]
          %v409 = vld [vmem:[%s5 + $0xe8] sm:$0xff]
          %v410 = vld [vmem:[%s5 + $0xf0] sm:$0xff]
          %v411 = vld [vmem:[%s5 + $0xf8] sm:$0xff]
          %v412 = vld [vmem:[%s5 + $0x100] sm:$0xff]
          %v413 = vld [vmem:[%s5 + $0x108] sm:$0xff]
          %v414 = vld [vmem:[%s5 + $0x110] sm:$0xff]
          %v415 = vld [vmem:[%s5 + $0x118] sm:$0xff]
          %v416 = vld [vmem:[%s5 + $0x120] sm:$0xff]
          %v417 = vld [vmem:[%s5 + $0x128] sm:$0xff]
          %v418 = vld [vmem:[%s5 + $0x130] sm:$0xff]
          %v419 = vld [vmem:[%s5 + $0x138] sm:$0xff]
          %v420 = vld [vmem:[%s5 + $0x140] sm:$0xff]
          %v421 = vld [vmem:[%s5 + $0x148] sm:$0xff]
          %v422 = vld [vmem:[%s5 + $0x150] sm:$0xff]
          %v423 = vld [vmem:[%s5 + $0x158] sm:$0xff]
          %v424 = vld [vmem:[%s5 + $0x160] sm:$0xff]
          %v425 = vld [vmem:[%s5 + $0x168] sm:$0xff]
          %v426 = vld [vmem:[%s5 + $0x170] sm:$0xff]
          %v427 = vld [vmem:[%s5 + $0x178] sm:$0xff]
          %v428 = vld [vmem:[%s4] sm:$0x7]
          %v429 = vld [vmem:[%s6] sm:$0x1]
          %v430 = vld [vmem:[%s361] sm:$0x3]
          %v431 = vstv %s372
          %v432 = vsub.s32 %v430, %v431
          %v433 = vld [vmem:[#allocation2] sm:$0x3]
          %v434 = vld [vmem:[%s320] sm:$0x1]
          %v435 = vld [vmem:[%s320 + $0x8] sm:$0x1]
          %v437 = vlaneseq
          %v438 = vshrl.u32 %v437, 7
          %v439 = vsub.s32 0, %v438
          %v440 = vrot.slane %v428, %v439
          %v441 = vlaneseq
          %v442 = vshrl.u32 %v441, 7
          %v443 = vsub.s32 1, %v442
          %v444 = vrot.slane %v428, %v443
          %v445 = vlaneseq
          %v446 = vshrl.u32 %v445, 7
          %v447 = vsub.s32 2, %v446
          %v448 = vrot.slane %v428, %v447
          %v454 = vrot.slane %v435, 7
          %vm455 = vcmask 1041409
          %v456 = vsel %vm455, %v454, %v434
          %v459 = vcombine.high %v378, %v378
          %vm460 = vcmask 31744
          %v461 = vsel %vm460, %v456, 0
          %vm463 = vcmask 1043456
          %v464 = vsel %vm463, %v378, 0
          %v466 = vsel %vm463, %v459, 0
          %v468 = vsel %vm463, %v379, 0
          %470 = vmatprep.subr.mxu0 0.0
          %471 = vmatpush1.msra.mxu0 0.0
          %472 = vmatprep.subr.mxu0 0.0
          %473 = vmatpush1.msra.mxu0 0.0
          %474 = vmatprep.subr.mxu0 0.0
          %475 = vmatpush1.msra.mxu0 0.0
          %476 = vmatprep.subr.mxu0 0.0
          %477 = vmatpush1.msra.mxu0 0.0
          %478 = vmatprep.subr.mxu0 0.0
          %479 = vmatpush1.msra.mxu0 0.0
          %480 = vmatprep.subr.mxu0 0.0
          %481 = vmatpush1.msra.mxu0 0.0
          %482 = vmatprep.subr.mxu0 0.0
          %483 = vmatpush1.msra.mxu0 0.0
          %484 = vmatprep.subr.mxu0 0.0
          %485 = vmatpush1.msra.mxu0 0.0
          %486 = vmatprep.subr.mxu0 0.0
          %487 = vmatpush1.msra.mxu0 0.0
          %488 = vmatprep.subr.mxu0 0.0
          %489 = vmatpush1.msra.mxu0 0.0
          %490 = vmatprep.subr.mxu0 0.0
          %491 = vmatpush1.msra.mxu0 0.0
          %492 = vmatprep.subr.mxu0 0.0
          %493 = vmatpush1.msra.mxu0 0.0
          %494 = vmatprep.subr.mxu0 0.0
          %495 = vmatpush1.msra.mxu0 0.0
          %496 = vmatprep.subr.mxu0 0.0
          %497 = vmatpush1.msra.mxu0 0.0
          %498 = vmatprep.subr.mxu0 0.0
          %499 = vmatpush1.msra.mxu0 0.0
          %500 = vmatprep.subr.mxu0 %v466
          %501 = vmatpush1.msra.mxu0 %v464
          %502 = vmatprep.subr.mxu0 0.0
          %503 = vmatpush2.msra.mxu0 0.0
          %504 = vmatprep.subr.mxu0 0.0
          %505 = vmatpush2.msra.mxu0 0.0
          %506 = vmatprep.subr.mxu0 0.0
          %507 = vmatpush2.msra.mxu0 0.0
          %508 = vmatprep.subr.mxu0 0.0
          %509 = vmatpush2.msra.mxu0 0.0
          %510 = vmatprep.subr.mxu0 0.0
          %511 = vmatpush2.msra.mxu0 0.0
          %512 = vmatprep.subr.mxu0 0.0
          %513 = vmatpush2.msra.mxu0 0.0
          %514 = vmatprep.subr.mxu0 0.0
          %515 = vmatpush2.msra.mxu0 0.0
          %516 = vmatprep.subr.mxu0 0.0
          %517 = vmatpush2.msra.mxu0 0.0
          %518 = vmatprep.subr.mxu0 0.0
          %519 = vmatpush2.msra.mxu0 0.0
          %520 = vmatprep.subr.mxu0 0.0
          %521 = vmatpush2.msra.mxu0 0.0
          %522 = vmatprep.subr.mxu0 0.0
          %523 = vmatpush2.msra.mxu0 0.0
          %524 = vmatprep.subr.mxu0 0.0
          %525 = vmatpush2.msra.mxu0 0.0
          %526 = vmatprep.subr.mxu0 0.0
          %527 = vmatpush2.msra.mxu0 0.0
          %528 = vmatprep.subr.mxu0 0.0
          %529 = vmatpush2.msra.mxu0 0.0
          %530 = vmatprep.subr.mxu0 0.0
          %531 = vmatpush2.msra.mxu0 0.0
          %532 = vmatprep.subr.mxu0 0.0
          %533 = vmatpush2.msra.mxu0 0.0
          %534 = vmatprep.mubr.f32.mxu0 0.0
          %535 = vmatmul.mubr.f32.gmra.mxu0 %v461
          %v536 = vpop.f32.mrf.mxu0
          %v537 = vadd.f32 %v440, %v536
          %v538 = vpop.f32.mrf.mxu0
          %v539 = vadd.f32 %v444, %v538
          %540 = vdwg.mxu0
          %541 = vmatprep.subr.mxu0 0.0
          %542 = vmatpush1.msra.mxu0 0.0
          %543 = vmatprep.subr.mxu0 0.0
          %544 = vmatpush1.msra.mxu0 0.0
          %545 = vmatprep.subr.mxu0 0.0
          %546 = vmatpush1.msra.mxu0 0.0
          %547 = vmatprep.subr.mxu0 0.0
          %548 = vmatpush1.msra.mxu0 0.0
          %549 = vmatprep.subr.mxu0 0.0
          %550 = vmatpush1.msra.mxu0 0.0
          %551 = vmatprep.subr.mxu0 0.0
          %552 = vmatpush1.msra.mxu0 0.0
          %553 = vmatprep.subr.mxu0 0.0
          %554 = vmatpush1.msra.mxu0 0.0
          %555 = vmatprep.subr.mxu0 0.0
          %556 = vmatpush1.msra.mxu0 0.0
          %557 = vmatprep.subr.mxu0 0.0
          %558 = vmatpush1.msra.mxu0 0.0
          %559 = vmatprep.subr.mxu0 0.0
          %560 = vmatpush1.msra.mxu0 0.0
          %561 = vmatprep.subr.mxu0 0.0
          %562 = vmatpush1.msra.mxu0 0.0
          %563 = vmatprep.subr.mxu0 0.0
          %564 = vmatpush1.msra.mxu0 0.0
          %565 = vmatprep.subr.mxu0 0.0
          %566 = vmatpush1.msra.mxu0 0.0
          %567 = vmatprep.subr.mxu0 0.0
          %568 = vmatpush1.msra.mxu0 0.0
          %569 = vmatprep.subr.mxu0 0.0
          %570 = vmatpush1.msra.mxu0 0.0
          %571 = vmatprep.subr.mxu0 0.0
          %572 = vmatpush1.msra.mxu0 %v468
          %573 = vmatprep.subr.mxu0 0.0
          %574 = vmatpush2.msra.mxu0 0.0
          %575 = vmatprep.subr.mxu0 0.0
          %576 = vmatpush2.msra.mxu0 0.0
          %577 = vmatprep.subr.mxu0 0.0
          %578 = vmatpush2.msra.mxu0 0.0
          %579 = vmatprep.subr.mxu0 0.0
          %580 = vmatpush2.msra.mxu0 0.0
          %581 = vmatprep.subr.mxu0 0.0
          %582 = vmatpush2.msra.mxu0 0.0
          %583 = vmatprep.subr.mxu0 0.0
          %584 = vmatpush2.msra.mxu0 0.0
          %585 = vmatprep.subr.mxu0 0.0
          %586 = vmatpush2.msra.mxu0 0.0
          %587 = vmatprep.subr.mxu0 0.0
          %588 = vmatpush2.msra.mxu0 0.0
          %589 = vmatprep.subr.mxu0 0.0
          %590 = vmatpush2.msra.mxu0 0.0
          %591 = vmatprep.subr.mxu0 0.0
          %592 = vmatpush2.msra.mxu0 0.0
          %593 = vmatprep.subr.mxu0 0.0
          %594 = vmatpush2.msra.mxu0 0.0
          %595 = vmatprep.subr.mxu0 0.0
          %596 = vmatpush2.msra.mxu0 0.0
          %597 = vmatprep.subr.mxu0 0.0
          %598 = vmatpush2.msra.mxu0 0.0
          %599 = vmatprep.subr.mxu0 0.0
          %600 = vmatpush2.msra.mxu0 0.0
          %601 = vmatprep.subr.mxu0 0.0
          %602 = vmatpush2.msra.mxu0 0.0
          %603 = vmatprep.subr.mxu0 0.0
          %604 = vmatpush2.msra.mxu0 0.0
          %605 = vmatprep.mubr.f32.mxu0 0.0
          %606 = vmatmul.mubr.f32.gmra.mxu0 %v461
          %v607 = vpop.f32.mrf.mxu0
          %v608 = vadd.f32 %v448, %v607
          %v609 = vpop.f32.mrf.mxu0
          %610 = vdwg.mxu0
          %611 = vmatprep.subr.mxu0 %v426
          %612 = vmatpush1.msra.mxu0 %v425
          %613 = vmatprep.subr.mxu0 %v423
          %614 = vmatpush1.msra.mxu0 %v422
          %615 = vmatprep.subr.mxu0 %v420
          %616 = vmatpush1.msra.mxu0 %v419
          %617 = vmatprep.subr.mxu0 %v417
          %618 = vmatpush1.msra.mxu0 %v416
          %619 = vmatprep.subr.mxu0 %v414
          %620 = vmatpush1.msra.mxu0 %v413
          %621 = vmatprep.subr.mxu0 %v411
          %622 = vmatpush1.msra.mxu0 %v410
          %623 = vmatprep.subr.mxu0 %v408
          %624 = vmatpush1.msra.mxu0 %v407
          %625 = vmatprep.subr.mxu0 %v405
          %626 = vmatpush1.msra.mxu0 %v404
          %627 = vmatprep.subr.mxu0 %v402
          %628 = vmatpush1.msra.mxu0 %v401
          %629 = vmatprep.subr.mxu0 %v399
          %630 = vmatpush1.msra.mxu0 %v398
          %631 = vmatprep.subr.mxu0 %v396
          %632 = vmatpush1.msra.mxu0 %v395
          %633 = vmatprep.subr.mxu0 %v393
          %634 = vmatpush1.msra.mxu0 %v392
          %635 = vmatprep.subr.mxu0 %v390
          %636 = vmatpush1.msra.mxu0 %v389
          %637 = vmatprep.subr.mxu0 %v387
          %638 = vmatpush1.msra.mxu0 %v386
          %639 = vmatprep.subr.mxu0 %v384
          %640 = vmatpush1.msra.mxu0 %v383
          %641 = vmatprep.subr.mxu0 %v381
          %642 = vmatpush1.msra.mxu0 %v380
          %643 = vmatprep.subr.mxu0 0.0
          %644 = vmatpush2.msra.mxu0 0.0
          %645 = vmatprep.subr.mxu0 0.0
          %646 = vmatpush2.msra.mxu0 0.0
          %647 = vmatprep.subr.mxu0 0.0
          %648 = vmatpush2.msra.mxu0 0.0
          %649 = vmatprep.subr.mxu0 0.0
          %650 = vmatpush2.msra.mxu0 0.0
          %651 = vmatprep.subr.mxu0 0.0
          %652 = vmatpush2.msra.mxu0 0.0
          %653 = vmatprep.subr.mxu0 0.0
          %654 = vmatpush2.msra.mxu0 0.0
          %655 = vmatprep.subr.mxu0 0.0
          %656 = vmatpush2.msra.mxu0 0.0
          %657 = vmatprep.subr.mxu0 0.0
          %658 = vmatpush2.msra.mxu0 0.0
          %659 = vmatprep.subr.mxu0 0.0
          %660 = vmatpush2.msra.mxu0 0.0
          %661 = vmatprep.subr.mxu0 0.0
          %662 = vmatpush2.msra.mxu0 0.0
          %663 = vmatprep.subr.mxu0 0.0
          %664 = vmatpush2.msra.mxu0 0.0
          %665 = vmatprep.subr.mxu0 0.0
          %666 = vmatpush2.msra.mxu0 0.0
          %667 = vmatprep.subr.mxu0 0.0
          %668 = vmatpush2.msra.mxu0 0.0
          %669 = vmatprep.subr.mxu0 0.0
          %670 = vmatpush2.msra.mxu0 0.0
          %671 = vmatprep.subr.mxu0 0.0
          %672 = vmatpush2.msra.mxu0 0.0
          %673 = vmatprep.subr.mxu0 0.0
          %674 = vmatpush2.msra.mxu0 0.0
          %675 = vmatprep.mubr.f32.mxu0 0.0
          %676 = vmatmul.mubr.f32.gmra.mxu0 %v433
          %v677 = vpop.f32.mrf.mxu0
          %v678 = vadd.f32 0.0, %v677
          %v679 = vpop.f32.mrf.mxu0
          %v680 = vadd.f32 0.0, %v679
          %681 = vdwg.mxu0
          %682 = vmatprep.subr.mxu0 0.0
          %683 = vmatpush1.msra.mxu0 %v427
          %684 = vmatprep.subr.mxu0 0.0
          %685 = vmatpush1.msra.mxu0 %v424
          %686 = vmatprep.subr.mxu0 0.0
          %687 = vmatpush1.msra.mxu0 %v421
          %688 = vmatprep.subr.mxu0 0.0
          %689 = vmatpush1.msra.mxu0 %v418
          %690 = vmatprep.subr.mxu0 0.0
          %691 = vmatpush1.msra.mxu0 %v415
          %692 = vmatprep.subr.mxu0 0.0
          %693 = vmatpush1.msra.mxu0 %v412
          %694 = vmatprep.subr.mxu0 0.0
          %695 = vmatpush1.msra.mxu0 %v409
          %696 = vmatprep.subr.mxu0 0.0
          %697 = vmatpush1.msra.mxu0 %v406
          %698 = vmatprep.subr.mxu0 0.0
          %699 = vmatpush1.msra.mxu0 %v403
          %700 = vmatprep.subr.mxu0 0.0
          %701 = vmatpush1.msra.mxu0 %v400
          %702 = vmatprep.subr.mxu0 0.0
          %703 = vmatpush1.msra.mxu0 %v397
          %704 = vmatprep.subr.mxu0 0.0
          %705 = vmatpush1.msra.mxu0 %v394
          %706 = vmatprep.subr.mxu0 0.0
          %707 = vmatpush1.msra.mxu0 %v391
          %708 = vmatprep.subr.mxu0 0.0
          %709 = vmatpush1.msra.mxu0 %v388
          %710 = vmatprep.subr.mxu0 0.0
          %711 = vmatpush1.msra.mxu0 %v385
          %712 = vmatprep.subr.mxu0 0.0
          %713 = vmatpush1.msra.mxu0 %v382
          %714 = vmatprep.subr.mxu0 0.0
          %715 = vmatpush2.msra.mxu0 0.0
          %716 = vmatprep.subr.mxu0 0.0
          %717 = vmatpush2.msra.mxu0 0.0
          %718 = vmatprep.subr.mxu0 0.0
          %719 = vmatpush2.msra.mxu0 0.0
          %720 = vmatprep.subr.mxu0 0.0
          %721 = vmatpush2.msra.mxu0 0.0
          %722 = vmatprep.subr.mxu0 0.0
          %723 = vmatpush2.msra.mxu0 0.0
          %724 = vmatprep.subr.mxu0 0.0
          %725 = vmatpush2.msra.mxu0 0.0
          %726 = vmatprep.subr.mxu0 0.0
          %727 = vmatpush2.msra.mxu0 0.0
          %728 = vmatprep.subr.mxu0 0.0
          %729 = vmatpush2.msra.mxu0 0.0
          %730 = vmatprep.subr.mxu0 0.0
          %731 = vmatpush2.msra.mxu0 0.0
          %732 = vmatprep.subr.mxu0 0.0
          %733 = vmatpush2.msra.mxu0 0.0
          %734 = vmatprep.subr.mxu0 0.0
          %735 = vmatpush2.msra.mxu0 0.0
          %736 = vmatprep.subr.mxu0 0.0
          %737 = vmatpush2.msra.mxu0 0.0
          %738 = vmatprep.subr.mxu0 0.0
          %739 = vmatpush2.msra.mxu0 0.0
          %740 = vmatprep.subr.mxu0 0.0
          %741 = vmatpush2.msra.mxu0 0.0
          %742 = vmatprep.subr.mxu0 0.0
          %743 = vmatpush2.msra.mxu0 0.0
          %744 = vmatprep.subr.mxu0 0.0
          %745 = vmatpush2.msra.mxu0 0.0
          %746 = vmatprep.mubr.f32.mxu0 0.0
          %747 = vmatmul.mubr.f32.gmra.mxu0 %v433
          %v748 = vpop.f32.mrf.mxu0
          %v749 = vadd.f32 0.0, %v748
          %v750 = vpop.f32.mrf.mxu0
          %751 = vdwg.mxu0
          %v752 = vadd.f32 %v537, %v678
          %v753 = vxor.u32 %v752, 2147483648
          %v754 = vmul.f32 %v753, 1.442695
          %v755 = vpow.pop %v754
          %v756 = vadd.f32 %v755, 1.0
          %v757 = vrcp.pop %v756
          %v758 = vmul.f32 1.0, %v757
          %v759 = vadd.f32 %v539, %v680
          %v760 = vxor.u32 %v759, 2147483648
          %v761 = vmul.f32 %v760, 1.442695
          %v762 = vpow.pop %v761
          %v763 = vadd.f32 %v762, 1.0
          %v764 = vrcp.pop %v763
          %v765 = vmul.f32 1.0, %v764
          %v767 = vlaneseq
          %v768 = vshrl.u32 %v767, 7
          %v769 = vsub.s32 0, %v768
          %v770 = vrot.slane %v429, %v769
          %v772 = vadd.f32 %v749, %v770
          %v773 = vmul.f32 %v758, %v772
          %v774 = vadd.f32 %v608, %v773
          %v775 = vtanh.pop %v774
          %v776 = vsub.f32 %v433, %v775
          %v777 = vmul.f32 %v765, %v776
          %v778 = vadd.f32 %v775, %v777
          %vm779 = vcmp.gt.s32.totalorder %v432, 0
          %v780 = vsel %vm779, 1, 0
          %781 = vset.pattern.permute.xlu0 0
          %782 = vperm.xlu0 %781, %v780
          %v783 = vpop.permute.xlu0 %782
          %vm784 = vcmp.eq.s32.totalorder %v783, 1
          %v785 = vsel %vm784, %v778, 0.0
          %v788 = vunpack.c.l.s4 1966171168
          %v789 = vunpack.c.0.s8 %v788
          %v790 = vlaneseq
          %v791 = vshrl.u32 %v790, 7
          %v792 = vsub.s32 %v789, %v791
          %v793 = vrot.slane %v785, %v792
          %v794 = vcombine.high %v793, %v793
          %v796 = vunpack.c.l.s4 1966171168
          %v797 = vunpack.c.0.s8 %v796
          %v798 = vlaneseq
          %v799 = vshrl.u32 %v798, 7
          %v800 = vsub.s32 %v797, %v799
          %v801 = vrot.slane %v793, %v800
          %v803 = vunpack.c.l.s4 1966171168
          %v804 = vunpack.c.0.s8 %v803
          %v805 = vlaneseq
          %v806 = vshrl.u32 %v805, 7
          %v807 = vsub.s32 %v804, %v806
          %v808 = vrot.slane %v794, %v807
          %811 = vst [vmem:[%s350] sm:$0x1] %v801
          %812 = vst [vmem:[%s350 + $0x8] sm:$0x1] %v808
          %v813 = vsel %vm784, %v778, %v433
          %v814 = vld [vmem:[%s320 + $0x1] sm:$0x1]
          %v815 = vld [vmem:[%s320 + $0x9] sm:$0x1]
          %v818 = vrot.slane %v815, 7
          %v819 = vsel %vm455, %v818, %v814
          %v820 = vsel %vm460, %v819, 0
          %822 = vmatprep.subr.mxu0 0.0
          %823 = vmatpush1.msra.mxu0 0.0
          %824 = vmatprep.subr.mxu0 0.0
          %825 = vmatpush1.msra.mxu0 0.0
          %826 = vmatprep.subr.mxu0 0.0
          %827 = vmatpush1.msra.mxu0 0.0
          %828 = vmatprep.subr.mxu0 0.0
          %829 = vmatpush1.msra.mxu0 0.0
          %830 = vmatprep.subr.mxu0 0.0
          %831 = vmatpush1.msra.mxu0 0.0
          %832 = vmatprep.subr.mxu0 0.0
          %833 = vmatpush1.msra.mxu0 0.0
          %834 = vmatprep.subr.mxu0 0.0
          %835 = vmatpush1.msra.mxu0 0.0
          %836 = vmatprep.subr.mxu0 0.0
          %837 = vmatpush1.msra.mxu0 0.0
          %838 = vmatprep.subr.mxu0 0.0
          %839 = vmatpush1.msra.mxu0 0.0
          %840 = vmatprep.subr.mxu0 0.0
          %841 = vmatpush1.msra.mxu0 0.0
          %842 = vmatprep.subr.mxu0 0.0
          %843 = vmatpush1.msra.mxu0 0.0
          %844 = vmatprep.subr.mxu0 0.0
          %845 = vmatpush1.msra.mxu0 0.0
          %846 = vmatprep.subr.mxu0 0.0
          %847 = vmatpush1.msra.mxu0 0.0
          %848 = vmatprep.subr.mxu0 0.0
          %849 = vmatpush1.msra.mxu0 0.0
          %850 = vmatprep.subr.mxu0 0.0
          %851 = vmatpush1.msra.mxu0 0.0
          %852 = vmatprep.subr.mxu0 %v466
          %853 = vmatpush1.msra.mxu0 %v464
          %854 = vmatprep.subr.mxu0 0.0
          %855 = vmatpush2.msra.mxu0 0.0
          %856 = vmatprep.subr.mxu0 0.0
          %857 = vmatpush2.msra.mxu0 0.0
          %858 = vmatprep.subr.mxu0 0.0
          %859 = vmatpush2.msra.mxu0 0.0
          %860 = vmatprep.subr.mxu0 0.0
          %861 = vmatpush2.msra.mxu0 0.0
          %862 = vmatprep.subr.mxu0 0.0
          %863 = vmatpush2.msra.mxu0 0.0
          %864 = vmatprep.subr.mxu0 0.0
          %865 = vmatpush2.msra.mxu0 0.0
          %866 = vmatprep.subr.mxu0 0.0
          %867 = vmatpush2.msra.mxu0 0.0
          %868 = vmatprep.subr.mxu0 0.0
          %869 = vmatpush2.msra.mxu0 0.0
          %870 = vmatprep.subr.mxu0 0.0
          %871 = vmatpush2.msra.mxu0 0.0
          %872 = vmatprep.subr.mxu0 0.0
          %873 = vmatpush2.msra.mxu0 0.0
          %874 = vmatprep.subr.mxu0 0.0
          %875 = vmatpush2.msra.mxu0 0.0
          %876 = vmatprep.subr.mxu0 0.0
          %877 = vmatpush2.msra.mxu0 0.0
          %878 = vmatprep.subr.mxu0 0.0
          %879 = vmatpush2.msra.mxu0 0.0
          %880 = vmatprep.subr.mxu0 0.0
          %881 = vmatpush2.msra.mxu0 0.0
          %882 = vmatprep.subr.mxu0 0.0
          %883 = vmatpush2.msra.mxu0 0.0
          %884 = vmatprep.subr.mxu0 0.0
          %885 = vmatpush2.msra.mxu0 0.0
          %886 = vmatprep.mubr.f32.mxu0 0.0
          %887 = vmatmul.mubr.f32.gmra.mxu0 %v820
          %v888 = vpop.f32.mrf.mxu0
          %v889 = vadd.f32 %v440, %v888
          %v890 = vpop.f32.mrf.mxu0
          %v891 = vadd.f32 %v444, %v890
          %892 = vdwg.mxu0
          %893 = vmatprep.subr.mxu0 0.0
          %894 = vmatpush1.msra.mxu0 0.0
          %895 = vmatprep.subr.mxu0 0.0
          %896 = vmatpush1.msra.mxu0 0.0
          %897 = vmatprep.subr.mxu0 0.0
          %898 = vmatpush1.msra.mxu0 0.0
          %899 = vmatprep.subr.mxu0 0.0
          %900 = vmatpush1.msra.mxu0 0.0
          %901 = vmatprep.subr.mxu0 0.0
          %902 = vmatpush1.msra.mxu0 0.0
          %903 = vmatprep.subr.mxu0 0.0
          %904 = vmatpush1.msra.mxu0 0.0
          %905 = vmatprep.subr.mxu0 0.0
          %906 = vmatpush1.msra.mxu0 0.0
          %907 = vmatprep.subr.mxu0 0.0
          %908 = vmatpush1.msra.mxu0 0.0
          %909 = vmatprep.subr.mxu0 0.0
          %910 = vmatpush1.msra.mxu0 0.0
          %911 = vmatprep.subr.mxu0 0.0
          %912 = vmatpush1.msra.mxu0 0.0
          %913 = vmatprep.subr.mxu0 0.0
          %914 = vmatpush1.msra.mxu0 0.0
          %915 = vmatprep.subr.mxu0 0.0
          %916 = vmatpush1.msra.mxu0 0.0
          %917 = vmatprep.subr.mxu0 0.0
          %918 = vmatpush1.msra.mxu0 0.0
          %919 = vmatprep.subr.mxu0 0.0
          %920 = vmatpush1.msra.mxu0 0.0
          %921 = vmatprep.subr.mxu0 0.0
          %922 = vmatpush1.msra.mxu0 0.0
          %923 = vmatprep.subr.mxu0 0.0
          %924 = vmatpush1.msra.mxu0 %v468
          %925 = vmatprep.subr.mxu0 0.0
          %926 = vmatpush2.msra.mxu0 0.0
          %927 = vmatprep.subr.mxu0 0.0
          %928 = vmatpush2.msra.mxu0 0.0
          %929 = vmatprep.subr.mxu0 0.0
          %930 = vmatpush2.msra.mxu0 0.0
          %931 = vmatprep.subr.mxu0 0.0
          %932 = vmatpush2.msra.mxu0 0.0
          %933 = vmatprep.subr.mxu0 0.0
          %934 = vmatpush2.msra.mxu0 0.0
          %935 = vmatprep.subr.mxu0 0.0
          %936 = vmatpush2.msra.mxu0 0.0
          %937 = vmatprep.subr.mxu0 0.0
          %938 = vmatpush2.msra.mxu0 0.0
          %939 = vmatprep.subr.mxu0 0.0
          %940 = vmatpush2.msra.mxu0 0.0
          %941 = vmatprep.subr.mxu0 0.0
          %942 = vmatpush2.msra.mxu0 0.0
          %943 = vmatprep.subr.mxu0 0.0
          %944 = vmatpush2.msra.mxu0 0.0
          %945 = vmatprep.subr.mxu0 0.0
          %946 = vmatpush2.msra.mxu0 0.0
          %947 = vmatprep.subr.mxu0 0.0
          %948 = vmatpush2.msra.mxu0 0.0
          %949 = vmatprep.subr.mxu0 0.0
          %950 = vmatpush2.msra.mxu0 0.0
          %951 = vmatprep.subr.mxu0 0.0
          %952 = vmatpush2.msra.mxu0 0.0
          %953 = vmatprep.subr.mxu0 0.0
          %954 = vmatpush2.msra.mxu0 0.0
          %955 = vmatprep.subr.mxu0 0.0
          %956 = vmatpush2.msra.mxu0 0.0
          %957 = vmatprep.mubr.f32.mxu0 0.0
          %958 = vmatmul.mubr.f32.gmra.mxu0 %v820
          %v959 = vpop.f32.mrf.mxu0
          %v960 = vadd.f32 %v448, %v959
          %v961 = vpop.f32.mrf.mxu0
          %962 = vdwg.mxu0
          %963 = vmatprep.subr.mxu0 %v426
          %964 = vmatpush1.msra.mxu0 %v425
          %965 = vmatprep.subr.mxu0 %v423
          %966 = vmatpush1.msra.mxu0 %v422
          %967 = vmatprep.subr.mxu0 %v420
          %968 = vmatpush1.msra.mxu0 %v419
          %969 = vmatprep.subr.mxu0 %v417
          %970 = vmatpush1.msra.mxu0 %v416
          %971 = vmatprep.subr.mxu0 %v414
          %972 = vmatpush1.msra.mxu0 %v413
          %973 = vmatprep.subr.mxu0 %v411
          %974 = vmatpush1.msra.mxu0 %v410
          %975 = vmatprep.subr.mxu0 %v408
          %976 = vmatpush1.msra.mxu0 %v407
          %977 = vmatprep.subr.mxu0 %v405
          %978 = vmatpush1.msra.mxu0 %v404
          %979 = vmatprep.subr.mxu0 %v402
          %980 = vmatpush1.msra.mxu0 %v401
          %981 = vmatprep.subr.mxu0 %v399
          %982 = vmatpush1.msra.mxu0 %v398
          %983 = vmatprep.subr.mxu0 %v396
          %984 = vmatpush1.msra.mxu0 %v395
          %985 = vmatprep.subr.mxu0 %v393
          %986 = vmatpush1.msra.mxu0 %v392
          %987 = vmatprep.subr.mxu0 %v390
          %988 = vmatpush1.msra.mxu0 %v389
          %989 = vmatprep.subr.mxu0 %v387
          %990 = vmatpush1.msra.mxu0 %v386
          %991 = vmatprep.subr.mxu0 %v384
          %992 = vmatpush1.msra.mxu0 %v383
          %993 = vmatprep.subr.mxu0 %v381
          %994 = vmatpush1.msra.mxu0 %v380
          %995 = vmatprep.subr.mxu0 0.0
          %996 = vmatpush2.msra.mxu0 0.0
          %997 = vmatprep.subr.mxu0 0.0
          %998 = vmatpush2.msra.mxu0 0.0
          %999 = vmatprep.subr.mxu0 0.0
          %1000 = vmatpush2.msra.mxu0 0.0
          %1001 = vmatprep.subr.mxu0 0.0
          %1002 = vmatpush2.msra.mxu0 0.0
          %1003 = vmatprep.subr.mxu0 0.0
          %1004 = vmatpush2.msra.mxu0 0.0
          %1005 = vmatprep.subr.mxu0 0.0
          %1006 = vmatpush2.msra.mxu0 0.0
          %1007 = vmatprep.subr.mxu0 0.0
          %1008 = vmatpush2.msra.mxu0 0.0
          %1009 = vmatprep.subr.mxu0 0.0
          %1010 = vmatpush2.msra.mxu0 0.0
          %1011 = vmatprep.subr.mxu0 0.0
          %1012 = vmatpush2.msra.mxu0 0.0
          %1013 = vmatprep.subr.mxu0 0.0
          %1014 = vmatpush2.msra.mxu0 0.0
          %1015 = vmatprep.subr.mxu0 0.0
          %1016 = vmatpush2.msra.mxu0 0.0
          %1017 = vmatprep.subr.mxu0 0.0
          %1018 = vmatpush2.msra.mxu0 0.0
          %1019 = vmatprep.subr.mxu0 0.0
          %1020 = vmatpush2.msra.mxu0 0.0
          %1021 = vmatprep.subr.mxu0 0.0
          %1022 = vmatpush2.msra.mxu0 0.0
          %1023 = vmatprep.subr.mxu0 0.0
          %1024 = vmatpush2.msra.mxu0 0.0
          %1025 = vmatprep.subr.mxu0 0.0
          %1026 = vmatpush2.msra.mxu0 0.0
          %1027 = vmatprep.mubr.f32.mxu0 0.0
          %1028 = vmatmul.mubr.f32.gmra.mxu0 %v813
          %v1029 = vpop.f32.mrf.mxu0
          %v1030 = vadd.f32 0.0, %v1029
          %v1031 = vpop.f32.mrf.mxu0
          %v1032 = vadd.f32 0.0, %v1031
          %1033 = vdwg.mxu0
          %1034 = vmatprep.subr.mxu0 0.0
          %1035 = vmatpush1.msra.mxu0 %v427
          %1036 = vmatprep.subr.mxu0 0.0
          %1037 = vmatpush1.msra.mxu0 %v424
          %1038 = vmatprep.subr.mxu0 0.0
          %1039 = vmatpush1.msra.mxu0 %v421
          %1040 = vmatprep.subr.mxu0 0.0
          %1041 = vmatpush1.msra.mxu0 %v418
          %1042 = vmatprep.subr.mxu0 0.0
          %1043 = vmatpush1.msra.mxu0 %v415
          %1044 = vmatprep.subr.mxu0 0.0
          %1045 = vmatpush1.msra.mxu0 %v412
          %1046 = vmatprep.subr.mxu0 0.0
          %1047 = vmatpush1.msra.mxu0 %v409
          %1048 = vmatprep.subr.mxu0 0.0
          %1049 = vmatpush1.msra.mxu0 %v406
          %1050 = vmatprep.subr.mxu0 0.0
          %1051 = vmatpush1.msra.mxu0 %v403
          %1052 = vmatprep.subr.mxu0 0.0
          %1053 = vmatpush1.msra.mxu0 %v400
          %1054 = vmatprep.subr.mxu0 0.0
          %1055 = vmatpush1.msra.mxu0 %v397
          %1056 = vmatprep.subr.mxu0 0.0
          %1057 = vmatpush1.msra.mxu0 %v394
          %1058 = vmatprep.subr.mxu0 0.0
          %1059 = vmatpush1.msra.mxu0 %v391
          %1060 = vmatprep.subr.mxu0 0.0
          %1061 = vmatpush1.msra.mxu0 %v388
          %1062 = vmatprep.subr.mxu0 0.0
          %1063 = vmatpush1.msra.mxu0 %v385
          %1064 = vmatprep.subr.mxu0 0.0
          %1065 = vmatpush1.msra.mxu0 %v382
          %1066 = vmatprep.subr.mxu0 0.0
          %1067 = vmatpush2.msra.mxu0 0.0
          %1068 = vmatprep.subr.mxu0 0.0
          %1069 = vmatpush2.msra.mxu0 0.0
          %1070 = vmatprep.subr.mxu0 0.0
          %1071 = vmatpush2.msra.mxu0 0.0
          %1072 = vmatprep.subr.mxu0 0.0
          %1073 = vmatpush2.msra.mxu0 0.0
          %1074 = vmatprep.subr.mxu0 0.0
          %1075 = vmatpush2.msra.mxu0 0.0
          %1076 = vmatprep.subr.mxu0 0.0
          %1077 = vmatpush2.msra.mxu0 0.0
          %1078 = vmatprep.subr.mxu0 0.0
          %1079 = vmatpush2.msra.mxu0 0.0
          %1080 = vmatprep.subr.mxu0 0.0
          %1081 = vmatpush2.msra.mxu0 0.0
          %1082 = vmatprep.subr.mxu0 0.0
          %1083 = vmatpush2.msra.mxu0 0.0
          %1084 = vmatprep.subr.mxu0 0.0
          %1085 = vmatpush2.msra.mxu0 0.0
          %1086 = vmatprep.subr.mxu0 0.0
          %1087 = vmatpush2.msra.mxu0 0.0
          %1088 = vmatprep.subr.mxu0 0.0
          %1089 = vmatpush2.msra.mxu0 0.0
          %1090 = vmatprep.subr.mxu0 0.0
          %1091 = vmatpush2.msra.mxu0 0.0
          %1092 = vmatprep.subr.mxu0 0.0
          %1093 = vmatpush2.msra.mxu0 0.0
          %1094 = vmatprep.subr.mxu0 0.0
          %1095 = vmatpush2.msra.mxu0 0.0
          %1096 = vmatprep.subr.mxu0 0.0
          %1097 = vmatpush2.msra.mxu0 0.0
          %1098 = vmatprep.mubr.f32.mxu0 0.0
          %1099 = vmatmul.mubr.f32.gmra.mxu0 %v813
          %v1100 = vpop.f32.mrf.mxu0
          %v1101 = vadd.f32 0.0, %v1100
          %v1102 = vpop.f32.mrf.mxu0
          %1103 = vdwg.mxu0
          %v1104 = vadd.f32 %v889, %v1030
          %v1105 = vxor.u32 %v1104, 2147483648
          %v1106 = vmul.f32 %v1105, 1.442695
          %v1107 = vpow.pop %v1106
          %v1108 = vadd.f32 %v1107, 1.0
          %v1109 = vrcp.pop %v1108
          %v1110 = vmul.f32 1.0, %v1109
          %v1111 = vadd.f32 %v891, %v1032
          %v1112 = vxor.u32 %v1111, 2147483648
          %v1113 = vmul.f32 %v1112, 1.442695
          %v1114 = vpow.pop %v1113
          %v1115 = vadd.f32 %v1114, 1.0
          %v1116 = vrcp.pop %v1115
          %v1117 = vmul.f32 1.0, %v1116
          %v1118 = vadd.f32 %v1101, %v770
          %v1119 = vmul.f32 %v1110, %v1118
          %v1120 = vadd.f32 %v960, %v1119
          %v1121 = vtanh.pop %v1120
          %v1122 = vsub.f32 %v813, %v1121
          %v1123 = vmul.f32 %v1117, %v1122
          %v1124 = vadd.f32 %v1121, %v1123
          %vm1125 = vcmp.gt.s32.totalorder %v432, 1
          %v1126 = vsel %vm1125, 1, 0
          %1127 = vset.pattern.permute.xlu0 0
          %1128 = vperm.xlu0 %1127, %v1126
          %v1129 = vpop.permute.xlu0 %1128
          %vm1130 = vcmp.eq.s32.totalorder %v1129, 1
          %v1131 = vsel %vm1130, %v1124, 0.0
          %v1134 = vunpack.c.l.s4 1966171168
          %v1135 = vunpack.c.0.s8 %v1134
          %v1136 = vlaneseq
          %v1137 = vshrl.u32 %v1136, 7
          %v1138 = vsub.s32 %v1135, %v1137
          %v1139 = vrot.slane %v1131, %v1138
          %v1140 = vcombine.high %v1139, %v1139
          %v1142 = vunpack.c.l.s4 1966171168
          %v1143 = vunpack.c.0.s8 %v1142
          %v1144 = vlaneseq
          %v1145 = vshrl.u32 %v1144, 7
          %v1146 = vsub.s32 %v1143, %v1145
          %v1147 = vrot.slane %v1139, %v1146
          %v1149 = vunpack.c.l.s4 1966171168
          %v1150 = vunpack.c.0.s8 %v1149
          %v1151 = vlaneseq
          %v1152 = vshrl.u32 %v1151, 7
          %v1153 = vsub.s32 %v1150, %v1152
          %v1154 = vrot.slane %v1140, %v1153
          %1157 = vst [vmem:[%s350 + $0x1] sm:$0x1] %v1147
          %1158 = vst [vmem:[%s350 + $0x9] sm:$0x1] %v1154
          %v1159 = vsel %vm1130, %v1124, %v813
          %v1160 = vld [vmem:[%s320 + $0x2] sm:$0x1]
          %v1161 = vld [vmem:[%s320 + $0xa] sm:$0x1]
          %v1164 = vrot.slane %v1161, 7
          %v1165 = vsel %vm455, %v1164, %v1160
          %v1166 = vsel %vm460, %v1165, 0
          %1168 = vmatprep.subr.mxu0 0.0
          %1169 = vmatpush1.msra.mxu0 0.0
          %1170 = vmatprep.subr.mxu0 0.0
          %1171 = vmatpush1.msra.mxu0 0.0
          %1172 = vmatprep.subr.mxu0 0.0
          %1173 = vmatpush1.msra.mxu0 0.0
          %1174 = vmatprep.subr.mxu0 0.0
          %1175 = vmatpush1.msra.mxu0 0.0
          %1176 = vmatprep.subr.mxu0 0.0
          %1177 = vmatpush1.msra.mxu0 0.0
          %1178 = vmatprep.subr.mxu0 0.0
          %1179 = vmatpush1.msra.mxu0 0.0
          %1180 = vmatprep.subr.mxu0 0.0
          %1181 = vmatpush1.msra.mxu0 0.0
          %1182 = vmatprep.subr.mxu0 0.0
          %1183 = vmatpush1.msra.mxu0 0.0
          %1184 = vmatprep.subr.mxu0 0.0
          %1185 = vmatpush1.msra.mxu0 0.0
          %1186 = vmatprep.subr.mxu0 0.0
          %1187 = vmatpush1.msra.mxu0 0.0
          %1188 = vmatprep.subr.mxu0 0.0
          %1189 = vmatpush1.msra.mxu0 0.0
          %1190 = vmatprep.subr.mxu0 0.0
          %1191 = vmatpush1.msra.mxu0 0.0
          %1192 = vmatprep.subr.mxu0 0.0
          %1193 = vmatpush1.msra.mxu0 0.0
          %1194 = vmatprep.subr.mxu0 0.0
          %1195 = vmatpush1.msra.mxu0 0.0
          %1196 = vmatprep.subr.mxu0 0.0
          %1197 = vmatpush1.msra.mxu0 0.0
          %1198 = vmatprep.subr.mxu0 %v466
          %1199 = vmatpush1.msra.mxu0 %v464
          %1200 = vmatprep.subr.mxu0 0.0
          %1201 = vmatpush2.msra.mxu0 0.0
          %1202 = vmatprep.subr.mxu0 0.0
          %1203 = vmatpush2.msra.mxu0 0.0
          %1204 = vmatprep.subr.mxu0 0.0
          %1205 = vmatpush2.msra.mxu0 0.0
          %1206 = vmatprep.subr.mxu0 0.0
          %1207 = vmatpush2.msra.mxu0 0.0
          %1208 = vmatprep.subr.mxu0 0.0
          %1209 = vmatpush2.msra.mxu0 0.0
          %1210 = vmatprep.subr.mxu0 0.0
          %1211 = vmatpush2.msra.mxu0 0.0
          %1212 = vmatprep.subr.mxu0 0.0
          %1213 = vmatpush2.msra.mxu0 0.0
          %1214 = vmatprep.subr.mxu0 0.0
          %1215 = vmatpush2.msra.mxu0 0.0
          %1216 = vmatprep.subr.mxu0 0.0
          %1217 = vmatpush2.msra.mxu0 0.0
          %1218 = vmatprep.subr.mxu0 0.0
          %1219 = vmatpush2.msra.mxu0 0.0
          %1220 = vmatprep.subr.mxu0 0.0
          %1221 = vmatpush2.msra.mxu0 0.0
          %1222 = vmatprep.subr.mxu0 0.0
          %1223 = vmatpush2.msra.mxu0 0.0
          %1224 = vmatprep.subr.mxu0 0.0
          %1225 = vmatpush2.msra.mxu0 0.0
          %1226 = vmatprep.subr.mxu0 0.0
          %1227 = vmatpush2.msra.mxu0 0.0
          %1228 = vmatprep.subr.mxu0 0.0
          %1229 = vmatpush2.msra.mxu0 0.0
          %1230 = vmatprep.subr.mxu0 0.0
          %1231 = vmatpush2.msra.mxu0 0.0
          %1232 = vmatprep.mubr.f32.mxu0 0.0
          %1233 = vmatmul.mubr.f32.gmra.mxu0 %v1166
          %v1234 = vpop.f32.mrf.mxu0
          %v1235 = vadd.f32 %v440, %v1234
          %v1236 = vpop.f32.mrf.mxu0
          %v1237 = vadd.f32 %v444, %v1236
          %1238 = vdwg.mxu0
          %1239 = vmatprep.subr.mxu0 0.0
          %1240 = vmatpush1.msra.mxu0 0.0
          %1241 = vmatprep.subr.mxu0 0.0
          %1242 = vmatpush1.msra.mxu0 0.0
          %1243 = vmatprep.subr.mxu0 0.0
          %1244 = vmatpush1.msra.mxu0 0.0
          %1245 = vmatprep.subr.mxu0 0.0
          %1246 = vmatpush1.msra.mxu0 0.0
          %1247 = vmatprep.subr.mxu0 0.0
          %1248 = vmatpush1.msra.mxu0 0.0
          %1249 = vmatprep.subr.mxu0 0.0
          %1250 = vmatpush1.msra.mxu0 0.0
          %1251 = vmatprep.subr.mxu0 0.0
          %1252 = vmatpush1.msra.mxu0 0.0
          %1253 = vmatprep.subr.mxu0 0.0
          %1254 = vmatpush1.msra.mxu0 0.0
          %1255 = vmatprep.subr.mxu0 0.0
          %1256 = vmatpush1.msra.mxu0 0.0
          %1257 = vmatprep.subr.mxu0 0.0
          %1258 = vmatpush1.msra.mxu0 0.0
          %1259 = vmatprep.subr.mxu0 0.0
          %1260 = vmatpush1.msra.mxu0 0.0
          %1261 = vmatprep.subr.mxu0 0.0
          %1262 = vmatpush1.msra.mxu0 0.0
          %1263 = vmatprep.subr.mxu0 0.0
          %1264 = vmatpush1.msra.mxu0 0.0
          %1265 = vmatprep.subr.mxu0 0.0
          %1266 = vmatpush1.msra.mxu0 0.0
          %1267 = vmatprep.subr.mxu0 0.0
          %1268 = vmatpush1.msra.mxu0 0.0
          %1269 = vmatprep.subr.mxu0 0.0
          %1270 = vmatpush1.msra.mxu0 %v468
          %1271 = vmatprep.subr.mxu0 0.0
          %1272 = vmatpush2.msra.mxu0 0.0
          %1273 = vmatprep.subr.mxu0 0.0
          %1274 = vmatpush2.msra.mxu0 0.0
          %1275 = vmatprep.subr.mxu0 0.0
          %1276 = vmatpush2.msra.mxu0 0.0
          %1277 = vmatprep.subr.mxu0 0.0
          %1278 = vmatpush2.msra.mxu0 0.0
          %1279 = vmatprep.subr.mxu0 0.0
          %1280 = vmatpush2.msra.mxu0 0.0
          %1281 = vmatprep.subr.mxu0 0.0
          %1282 = vmatpush2.msra.mxu0 0.0
          %1283 = vmatprep.subr.mxu0 0.0
          %1284 = vmatpush2.msra.mxu0 0.0
          %1285 = vmatprep.subr.mxu0 0.0
          %1286 = vmatpush2.msra.mxu0 0.0
          %1287 = vmatprep.subr.mxu0 0.0
          %1288 = vmatpush2.msra.mxu0 0.0
          %1289 = vmatprep.subr.mxu0 0.0
          %1290 = vmatpush2.msra.mxu0 0.0
          %1291 = vmatprep.subr.mxu0 0.0
          %1292 = vmatpush2.msra.mxu0 0.0
          %1293 = vmatprep.subr.mxu0 0.0
          %1294 = vmatpush2.msra.mxu0 0.0
          %1295 = vmatprep.subr.mxu0 0.0
          %1296 = vmatpush2.msra.mxu0 0.0
          %1297 = vmatprep.subr.mxu0 0.0
          %1298 = vmatpush2.msra.mxu0 0.0
          %1299 = vmatprep.subr.mxu0 0.0
          %1300 = vmatpush2.msra.mxu0 0.0
          %1301 = vmatprep.subr.mxu0 0.0
          %1302 = vmatpush2.msra.mxu0 0.0
          %1303 = vmatprep.mubr.f32.mxu0 0.0
          %1304 = vmatmul.mubr.f32.gmra.mxu0 %v1166
          %v1305 = vpop.f32.mrf.mxu0
          %v1306 = vadd.f32 %v448, %v1305
          %v1307 = vpop.f32.mrf.mxu0
          %1308 = vdwg.mxu0
          %1309 = vmatprep.subr.mxu0 %v426
          %1310 = vmatpush1.msra.mxu0 %v425
          %1311 = vmatprep.subr.mxu0 %v423
          %1312 = vmatpush1.msra.mxu0 %v422
          %1313 = vmatprep.subr.mxu0 %v420
          %1314 = vmatpush1.msra.mxu0 %v419
          %1315 = vmatprep.subr.mxu0 %v417
          %1316 = vmatpush1.msra.mxu0 %v416
          %1317 = vmatprep.subr.mxu0 %v414
          %1318 = vmatpush1.msra.mxu0 %v413
          %1319 = vmatprep.subr.mxu0 %v411
          %1320 = vmatpush1.msra.mxu0 %v410
          %1321 = vmatprep.subr.mxu0 %v408
          %1322 = vmatpush1.msra.mxu0 %v407
          %1323 = vmatprep.subr.mxu0 %v405
          %1324 = vmatpush1.msra.mxu0 %v404
          %1325 = vmatprep.subr.mxu0 %v402
          %1326 = vmatpush1.msra.mxu0 %v401
          %1327 = vmatprep.subr.mxu0 %v399
          %1328 = vmatpush1.msra.mxu0 %v398
          %1329 = vmatprep.subr.mxu0 %v396
          %1330 = vmatpush1.msra.mxu0 %v395
          %1331 = vmatprep.subr.mxu0 %v393
          %1332 = vmatpush1.msra.mxu0 %v392
          %1333 = vmatprep.subr.mxu0 %v390
          %1334 = vmatpush1.msra.mxu0 %v389
          %1335 = vmatprep.subr.mxu0 %v387
          %1336 = vmatpush1.msra.mxu0 %v386
          %1337 = vmatprep.subr.mxu0 %v384
          %1338 = vmatpush1.msra.mxu0 %v383
          %1339 = vmatprep.subr.mxu0 %v381
          %1340 = vmatpush1.msra.mxu0 %v380
          %1341 = vmatprep.subr.mxu0 0.0
          %1342 = vmatpush2.msra.mxu0 0.0
          %1343 = vmatprep.subr.mxu0 0.0
          %1344 = vmatpush2.msra.mxu0 0.0
          %1345 = vmatprep.subr.mxu0 0.0
          %1346 = vmatpush2.msra.mxu0 0.0
          %1347 = vmatprep.subr.mxu0 0.0
          %1348 = vmatpush2.msra.mxu0 0.0
          %1349 = vmatprep.subr.mxu0 0.0
          %1350 = vmatpush2.msra.mxu0 0.0
          %1351 = vmatprep.subr.mxu0 0.0
          %1352 = vmatpush2.msra.mxu0 0.0
          %1353 = vmatprep.subr.mxu0 0.0
          %1354 = vmatpush2.msra.mxu0 0.0
          %1355 = vmatprep.subr.mxu0 0.0
          %1356 = vmatpush2.msra.mxu0 0.0
          %1357 = vmatprep.subr.mxu0 0.0
          %1358 = vmatpush2.msra.mxu0 0.0
          %1359 = vmatprep.subr.mxu0 0.0
          %1360 = vmatpush2.msra.mxu0 0.0
          %1361 = vmatprep.subr.mxu0 0.0
          %1362 = vmatpush2.msra.mxu0 0.0
          %1363 = vmatprep.subr.mxu0 0.0
          %1364 = vmatpush2.msra.mxu0 0.0
          %1365 = vmatprep.subr.mxu0 0.0
          %1366 = vmatpush2.msra.mxu0 0.0
          %1367 = vmatprep.subr.mxu0 0.0
          %1368 = vmatpush2.msra.mxu0 0.0
          %1369 = vmatprep.subr.mxu0 0.0
          %1370 = vmatpush2.msra.mxu0 0.0
          %1371 = vmatprep.subr.mxu0 0.0
          %1372 = vmatpush2.msra.mxu0 0.0
          %1373 = vmatprep.mubr.f32.mxu0 0.0
          %1374 = vmatmul.mubr.f32.gmra.mxu0 %v1159
          %v1375 = vpop.f32.mrf.mxu0
          %v1376 = vadd.f32 0.0, %v1375
          %v1377 = vpop.f32.mrf.mxu0
          %v1378 = vadd.f32 0.0, %v1377
          %1379 = vdwg.mxu0
          %1380 = vmatprep.subr.mxu0 0.0
          %1381 = vmatpush1.msra.mxu0 %v427
          %1382 = vmatprep.subr.mxu0 0.0
          %1383 = vmatpush1.msra.mxu0 %v424
          %1384 = vmatprep.subr.mxu0 0.0
          %1385 = vmatpush1.msra.mxu0 %v421
          %1386 = vmatprep.subr.mxu0 0.0
          %1387 = vmatpush1.msra.mxu0 %v418
          %1388 = vmatprep.subr.mxu0 0.0
          %1389 = vmatpush1.msra.mxu0 %v415
          %1390 = vmatprep.subr.mxu0 0.0
          %1391 = vmatpush1.msra.mxu0 %v412
          %1392 = vmatprep.subr.mxu0 0.0
          %1393 = vmatpush1.msra.mxu0 %v409
          %1394 = vmatprep.subr.mxu0 0.0
          %1395 = vmatpush1.msra.mxu0 %v406
          %1396 = vmatprep.subr.mxu0 0.0
          %1397 = vmatpush1.msra.mxu0 %v403
          %1398 = vmatprep.subr.mxu0 0.0
          %1399 = vmatpush1.msra.mxu0 %v400
          %1400 = vmatprep.subr.mxu0 0.0
          %1401 = vmatpush1.msra.mxu0 %v397
          %1402 = vmatprep.subr.mxu0 0.0
          %1403 = vmatpush1.msra.mxu0 %v394
          %1404 = vmatprep.subr.mxu0 0.0
          %1405 = vmatpush1.msra.mxu0 %v391
          %1406 = vmatprep.subr.mxu0 0.0
          %1407 = vmatpush1.msra.mxu0 %v388
          %1408 = vmatprep.subr.mxu0 0.0
          %1409 = vmatpush1.msra.mxu0 %v385
          %1410 = vmatprep.subr.mxu0 0.0
          %1411 = vmatpush1.msra.mxu0 %v382
          %1412 = vmatprep.subr.mxu0 0.0
          %1413 = vmatpush2.msra.mxu0 0.0
          %1414 = vmatprep.subr.mxu0 0.0
          %1415 = vmatpush2.msra.mxu0 0.0
          %1416 = vmatprep.subr.mxu0 0.0
          %1417 = vmatpush2.msra.mxu0 0.0
          %1418 = vmatprep.subr.mxu0 0.0
          %1419 = vmatpush2.msra.mxu0 0.0
          %1420 = vmatprep.subr.mxu0 0.0
          %1421 = vmatpush2.msra.mxu0 0.0
          %1422 = vmatprep.subr.mxu0 0.0
          %1423 = vmatpush2.msra.mxu0 0.0
          %1424 = vmatprep.subr.mxu0 0.0
          %1425 = vmatpush2.msra.mxu0 0.0
          %1426 = vmatprep.subr.mxu0 0.0
          %1427 = vmatpush2.msra.mxu0 0.0
          %1428 = vmatprep.subr.mxu0 0.0
          %1429 = vmatpush2.msra.mxu0 0.0
          %1430 = vmatprep.subr.mxu0 0.0
          %1431 = vmatpush2.msra.mxu0 0.0
          %1432 = vmatprep.subr.mxu0 0.0
          %1433 = vmatpush2.msra.mxu0 0.0
          %1434 = vmatprep.subr.mxu0 0.0
          %1435 = vmatpush2.msra.mxu0 0.0
          %1436 = vmatprep.subr.mxu0 0.0
          %1437 = vmatpush2.msra.mxu0 0.0
          %1438 = vmatprep.subr.mxu0 0.0
          %1439 = vmatpush2.msra.mxu0 0.0
          %1440 = vmatprep.subr.mxu0 0.0
          %1441 = vmatpush2.msra.mxu0 0.0
          %1442 = vmatprep.subr.mxu0 0.0
          %1443 = vmatpush2.msra.mxu0 0.0
          %1444 = vmatprep.mubr.f32.mxu0 0.0
          %1445 = vmatmul.mubr.f32.gmra.mxu0 %v1159
          %v1446 = vpop.f32.mrf.mxu0
          %v1447 = vadd.f32 0.0, %v1446
          %v1448 = vpop.f32.mrf.mxu0
          %1449 = vdwg.mxu0
          %v1450 = vadd.f32 %v1235, %v1376
          %v1451 = vxor.u32 %v1450, 2147483648
          %v1452 = vmul.f32 %v1451, 1.442695
          %v1453 = vpow.pop %v1452
          %v1454 = vadd.f32 %v1453, 1.0
          %v1455 = vrcp.pop %v1454
          %v1456 = vmul.f32 1.0, %v1455
          %v1457 = vadd.f32 %v1237, %v1378
          %v1458 = vxor.u32 %v1457, 2147483648
          %v1459 = vmul.f32 %v1458, 1.442695
          %v1460 = vpow.pop %v1459
          %v1461 = vadd.f32 %v1460, 1.0
          %v1462 = vrcp.pop %v1461
          %v1463 = vmul.f32 1.0, %v1462
          %v1464 = vadd.f32 %v1447, %v770
          %v1465 = vmul.f32 %v1456, %v1464
          %v1466 = vadd.f32 %v1306, %v1465
          %v1467 = vtanh.pop %v1466
          %v1468 = vsub.f32 %v1159, %v1467
          %v1469 = vmul.f32 %v1463, %v1468
          %v1470 = vadd.f32 %v1467, %v1469
          %vm1471 = vcmp.gt.s32.totalorder %v432, 2
          %v1472 = vsel %vm1471, 1, 0
          %1473 = vset.pattern.permute.xlu0 0
          %1474 = vperm.xlu0 %1473, %v1472
          %v1475 = vpop.permute.xlu0 %1474
          %vm1476 = vcmp.eq.s32.totalorder %v1475, 1
          %v1477 = vsel %vm1476, %v1470, 0.0
          %v1480 = vunpack.c.l.s4 1966171168
          %v1481 = vunpack.c.0.s8 %v1480
          %v1482 = vlaneseq
          %v1483 = vshrl.u32 %v1482, 7
          %v1484 = vsub.s32 %v1481, %v1483
          %v1485 = vrot.slane %v1477, %v1484
          %v1486 = vcombine.high %v1485, %v1485
          %v1488 = vunpack.c.l.s4 1966171168
          %v1489 = vunpack.c.0.s8 %v1488
          %v1490 = vlaneseq
          %v1491 = vshrl.u32 %v1490, 7
          %v1492 = vsub.s32 %v1489, %v1491
          %v1493 = vrot.slane %v1485, %v1492
          %v1495 = vunpack.c.l.s4 1966171168
          %v1496 = vunpack.c.0.s8 %v1495
          %v1497 = vlaneseq
          %v1498 = vshrl.u32 %v1497, 7
          %v1499 = vsub.s32 %v1496, %v1498
          %v1500 = vrot.slane %v1486, %v1499
          %1503 = vst [vmem:[%s350 + $0x2] sm:$0x1] %v1493
          %1504 = vst [vmem:[%s350 + $0xa] sm:$0x1] %v1500
          %v1505 = vsel %vm1476, %v1470, %v1159
          %v1506 = vld [vmem:[%s320 + $0x3] sm:$0x1]
          %v1507 = vld [vmem:[%s320 + $0xb] sm:$0x1]
          %v1510 = vrot.slane %v1507, 7
          %v1511 = vsel %vm455, %v1510, %v1506
          %v1512 = vsel %vm460, %v1511, 0
          %1514 = vmatprep.subr.mxu0 0.0
          %1515 = vmatpush1.msra.mxu0 0.0
          %1516 = vmatprep.subr.mxu0 0.0
          %1517 = vmatpush1.msra.mxu0 0.0
          %1518 = vmatprep.subr.mxu0 0.0
          %1519 = vmatpush1.msra.mxu0 0.0
          %1520 = vmatprep.subr.mxu0 0.0
          %1521 = vmatpush1.msra.mxu0 0.0
          %1522 = vmatprep.subr.mxu0 0.0
          %1523 = vmatpush1.msra.mxu0 0.0
          %1524 = vmatprep.subr.mxu0 0.0
          %1525 = vmatpush1.msra.mxu0 0.0
          %1526 = vmatprep.subr.mxu0 0.0
          %1527 = vmatpush1.msra.mxu0 0.0
          %1528 = vmatprep.subr.mxu0 0.0
          %1529 = vmatpush1.msra.mxu0 0.0
          %1530 = vmatprep.subr.mxu0 0.0
          %1531 = vmatpush1.msra.mxu0 0.0
          %1532 = vmatprep.subr.mxu0 0.0
          %1533 = vmatpush1.msra.mxu0 0.0
          %1534 = vmatprep.subr.mxu0 0.0
          %1535 = vmatpush1.msra.mxu0 0.0
          %1536 = vmatprep.subr.mxu0 0.0
          %1537 = vmatpush1.msra.mxu0 0.0
          %1538 = vmatprep.subr.mxu0 0.0
          %1539 = vmatpush1.msra.mxu0 0.0
          %1540 = vmatprep.subr.mxu0 0.0
          %1541 = vmatpush1.msra.mxu0 0.0
          %1542 = vmatprep.subr.mxu0 0.0
          %1543 = vmatpush1.msra.mxu0 0.0
          %1544 = vmatprep.subr.mxu0 %v466
          %1545 = vmatpush1.msra.mxu0 %v464
          %1546 = vmatprep.subr.mxu0 0.0
          %1547 = vmatpush2.msra.mxu0 0.0
          %1548 = vmatprep.subr.mxu0 0.0
          %1549 = vmatpush2.msra.mxu0 0.0
          %1550 = vmatprep.subr.mxu0 0.0
          %1551 = vmatpush2.msra.mxu0 0.0
          %1552 = vmatprep.subr.mxu0 0.0
          %1553 = vmatpush2.msra.mxu0 0.0
          %1554 = vmatprep.subr.mxu0 0.0
          %1555 = vmatpush2.msra.mxu0 0.0
          %1556 = vmatprep.subr.mxu0 0.0
          %1557 = vmatpush2.msra.mxu0 0.0
          %1558 = vmatprep.subr.mxu0 0.0
          %1559 = vmatpush2.msra.mxu0 0.0
          %1560 = vmatprep.subr.mxu0 0.0
          %1561 = vmatpush2.msra.mxu0 0.0
          %1562 = vmatprep.subr.mxu0 0.0
          %1563 = vmatpush2.msra.mxu0 0.0
          %1564 = vmatprep.subr.mxu0 0.0
          %1565 = vmatpush2.msra.mxu0 0.0
          %1566 = vmatprep.subr.mxu0 0.0
          %1567 = vmatpush2.msra.mxu0 0.0
          %1568 = vmatprep.subr.mxu0 0.0
          %1569 = vmatpush2.msra.mxu0 0.0
          %1570 = vmatprep.subr.mxu0 0.0
          %1571 = vmatpush2.msra.mxu0 0.0
          %1572 = vmatprep.subr.mxu0 0.0
          %1573 = vmatpush2.msra.mxu0 0.0
          %1574 = vmatprep.subr.mxu0 0.0
          %1575 = vmatpush2.msra.mxu0 0.0
          %1576 = vmatprep.subr.mxu0 0.0
          %1577 = vmatpush2.msra.mxu0 0.0
          %1578 = vmatprep.mubr.f32.mxu0 0.0
          %1579 = vmatmul.mubr.f32.gmra.mxu0 %v1512
          %v1580 = vpop.f32.mrf.mxu0
          %v1581 = vadd.f32 %v440, %v1580
          %v1582 = vpop.f32.mrf.mxu0
          %v1583 = vadd.f32 %v444, %v1582
          %1584 = vdwg.mxu0
          %1585 = vmatprep.subr.mxu0 0.0
          %1586 = vmatpush1.msra.mxu0 0.0
          %1587 = vmatprep.subr.mxu0 0.0
          %1588 = vmatpush1.msra.mxu0 0.0
          %1589 = vmatprep.subr.mxu0 0.0
          %1590 = vmatpush1.msra.mxu0 0.0
          %1591 = vmatprep.subr.mxu0 0.0
          %1592 = vmatpush1.msra.mxu0 0.0
          %1593 = vmatprep.subr.mxu0 0.0
          %1594 = vmatpush1.msra.mxu0 0.0
          %1595 = vmatprep.subr.mxu0 0.0
          %1596 = vmatpush1.msra.mxu0 0.0
          %1597 = vmatprep.subr.mxu0 0.0
          %1598 = vmatpush1.msra.mxu0 0.0
          %1599 = vmatprep.subr.mxu0 0.0
          %1600 = vmatpush1.msra.mxu0 0.0
          %1601 = vmatprep.subr.mxu0 0.0
          %1602 = vmatpush1.msra.mxu0 0.0
          %1603 = vmatprep.subr.mxu0 0.0
          %1604 = vmatpush1.msra.mxu0 0.0
          %1605 = vmatprep.subr.mxu0 0.0
          %1606 = vmatpush1.msra.mxu0 0.0
          %1607 = vmatprep.subr.mxu0 0.0
          %1608 = vmatpush1.msra.mxu0 0.0
          %1609 = vmatprep.subr.mxu0 0.0
          %1610 = vmatpush1.msra.mxu0 0.0
          %1611 = vmatprep.subr.mxu0 0.0
          %1612 = vmatpush1.msra.mxu0 0.0
          %1613 = vmatprep.subr.mxu0 0.0
          %1614 = vmatpush1.msra.mxu0 0.0
          %1615 = vmatprep.subr.mxu0 0.0
          %1616 = vmatpush1.msra.mxu0 %v468
          %1617 = vmatprep.subr.mxu0 0.0
          %1618 = vmatpush2.msra.mxu0 0.0
          %1619 = vmatprep.subr.mxu0 0.0
          %1620 = vmatpush2.msra.mxu0 0.0
          %1621 = vmatprep.subr.mxu0 0.0
          %1622 = vmatpush2.msra.mxu0 0.0
          %1623 = vmatprep.subr.mxu0 0.0
          %1624 = vmatpush2.msra.mxu0 0.0
          %1625 = vmatprep.subr.mxu0 0.0
          %1626 = vmatpush2.msra.mxu0 0.0
          %1627 = vmatprep.subr.mxu0 0.0
          %1628 = vmatpush2.msra.mxu0 0.0
          %1629 = vmatprep.subr.mxu0 0.0
          %1630 = vmatpush2.msra.mxu0 0.0
          %1631 = vmatprep.subr.mxu0 0.0
          %1632 = vmatpush2.msra.mxu0 0.0
          %1633 = vmatprep.subr.mxu0 0.0
          %1634 = vmatpush2.msra.mxu0 0.0
          %1635 = vmatprep.subr.mxu0 0.0
          %1636 = vmatpush2.msra.mxu0 0.0
          %1637 = vmatprep.subr.mxu0 0.0
          %1638 = vmatpush2.msra.mxu0 0.0
          %1639 = vmatprep.subr.mxu0 0.0
          %1640 = vmatpush2.msra.mxu0 0.0
          %1641 = vmatprep.subr.mxu0 0.0
          %1642 = vmatpush2.msra.mxu0 0.0
          %1643 = vmatprep.subr.mxu0 0.0
          %1644 = vmatpush2.msra.mxu0 0.0
          %1645 = vmatprep.subr.mxu0 0.0
          %1646 = vmatpush2.msra.mxu0 0.0
          %1647 = vmatprep.subr.mxu0 0.0
          %1648 = vmatpush2.msra.mxu0 0.0
          %1649 = vmatprep.mubr.f32.mxu0 0.0
          %1650 = vmatmul.mubr.f32.gmra.mxu0 %v1512
          %v1651 = vpop.f32.mrf.mxu0
          %v1652 = vadd.f32 %v448, %v1651
          %v1653 = vpop.f32.mrf.mxu0
          %1654 = vdwg.mxu0
          %1655 = vmatprep.subr.mxu0 %v426
          %1656 = vmatpush1.msra.mxu0 %v425
          %1657 = vmatprep.subr.mxu0 %v423
          %1658 = vmatpush1.msra.mxu0 %v422
          %1659 = vmatprep.subr.mxu0 %v420
          %1660 = vmatpush1.msra.mxu0 %v419
          %1661 = vmatprep.subr.mxu0 %v417
          %1662 = vmatpush1.msra.mxu0 %v416
          %1663 = vmatprep.subr.mxu0 %v414
          %1664 = vmatpush1.msra.mxu0 %v413
          %1665 = vmatprep.subr.mxu0 %v411
          %1666 = vmatpush1.msra.mxu0 %v410
          %1667 = vmatprep.subr.mxu0 %v408
          %1668 = vmatpush1.msra.mxu0 %v407
          %1669 = vmatprep.subr.mxu0 %v405
          %1670 = vmatpush1.msra.mxu0 %v404
          %1671 = vmatprep.subr.mxu0 %v402
          %1672 = vmatpush1.msra.mxu0 %v401
          %1673 = vmatprep.subr.mxu0 %v399
          %1674 = vmatpush1.msra.mxu0 %v398
          %1675 = vmatprep.subr.mxu0 %v396
          %1676 = vmatpush1.msra.mxu0 %v395
          %1677 = vmatprep.subr.mxu0 %v393
          %1678 = vmatpush1.msra.mxu0 %v392
          %1679 = vmatprep.subr.mxu0 %v390
          %1680 = vmatpush1.msra.mxu0 %v389
          %1681 = vmatprep.subr.mxu0 %v387
          %1682 = vmatpush1.msra.mxu0 %v386
          %1683 = vmatprep.subr.mxu0 %v384
          %1684 = vmatpush1.msra.mxu0 %v383
          %1685 = vmatprep.subr.mxu0 %v381
          %1686 = vmatpush1.msra.mxu0 %v380
          %1687 = vmatprep.subr.mxu0 0.0
          %1688 = vmatpush2.msra.mxu0 0.0
          %1689 = vmatprep.subr.mxu0 0.0
          %1690 = vmatpush2.msra.mxu0 0.0
          %1691 = vmatprep.subr.mxu0 0.0
          %1692 = vmatpush2.msra.mxu0 0.0
          %1693 = vmatprep.subr.mxu0 0.0
          %1694 = vmatpush2.msra.mxu0 0.0
          %1695 = vmatprep.subr.mxu0 0.0
          %1696 = vmatpush2.msra.mxu0 0.0
          %1697 = vmatprep.subr.mxu0 0.0
          %1698 = vmatpush2.msra.mxu0 0.0
          %1699 = vmatprep.subr.mxu0 0.0
          %1700 = vmatpush2.msra.mxu0 0.0
          %1701 = vmatprep.subr.mxu0 0.0
          %1702 = vmatpush2.msra.mxu0 0.0
          %1703 = vmatprep.subr.mxu0 0.0
          %1704 = vmatpush2.msra.mxu0 0.0
          %1705 = vmatprep.subr.mxu0 0.0
          %1706 = vmatpush2.msra.mxu0 0.0
          %1707 = vmatprep.subr.mxu0 0.0
          %1708 = vmatpush2.msra.mxu0 0.0
          %1709 = vmatprep.subr.mxu0 0.0
          %1710 = vmatpush2.msra.mxu0 0.0
          %1711 = vmatprep.subr.mxu0 0.0
          %1712 = vmatpush2.msra.mxu0 0.0
          %1713 = vmatprep.subr.mxu0 0.0
          %1714 = vmatpush2.msra.mxu0 0.0
          %1715 = vmatprep.subr.mxu0 0.0
          %1716 = vmatpush2.msra.mxu0 0.0
          %1717 = vmatprep.subr.mxu0 0.0
          %1718 = vmatpush2.msra.mxu0 0.0
          %1719 = vmatprep.mubr.f32.mxu0 0.0
          %1720 = vmatmul.mubr.f32.gmra.mxu0 %v1505
          %v1721 = vpop.f32.mrf.mxu0
          %v1722 = vadd.f32 0.0, %v1721
          %v1723 = vpop.f32.mrf.mxu0
          %v1724 = vadd.f32 0.0, %v1723
          %1725 = vdwg.mxu0
          %1726 = vmatprep.subr.mxu0 0.0
          %1727 = vmatpush1.msra.mxu0 %v427
          %1728 = vmatprep.subr.mxu0 0.0
          %1729 = vmatpush1.msra.mxu0 %v424
          %1730 = vmatprep.subr.mxu0 0.0
          %1731 = vmatpush1.msra.mxu0 %v421
          %1732 = vmatprep.subr.mxu0 0.0
          %1733 = vmatpush1.msra.mxu0 %v418
          %1734 = vmatprep.subr.mxu0 0.0
          %1735 = vmatpush1.msra.mxu0 %v415
          %1736 = vmatprep.subr.mxu0 0.0
          %1737 = vmatpush1.msra.mxu0 %v412
          %1738 = vmatprep.subr.mxu0 0.0
          %1739 = vmatpush1.msra.mxu0 %v409
          %1740 = vmatprep.subr.mxu0 0.0
          %1741 = vmatpush1.msra.mxu0 %v406
          %1742 = vmatprep.subr.mxu0 0.0
          %1743 = vmatpush1.msra.mxu0 %v403
          %1744 = vmatprep.subr.mxu0 0.0
          %1745 = vmatpush1.msra.mxu0 %v400
          %1746 = vmatprep.subr.mxu0 0.0
          %1747 = vmatpush1.msra.mxu0 %v397
          %1748 = vmatprep.subr.mxu0 0.0
          %1749 = vmatpush1.msra.mxu0 %v394
          %1750 = vmatprep.subr.mxu0 0.0
          %1751 = vmatpush1.msra.mxu0 %v391
          %1752 = vmatprep.subr.mxu0 0.0
          %1753 = vmatpush1.msra.mxu0 %v388
          %1754 = vmatprep.subr.mxu0 0.0
          %1755 = vmatpush1.msra.mxu0 %v385
          %1756 = vmatprep.subr.mxu0 0.0
          %1757 = vmatpush1.msra.mxu0 %v382
          %1758 = vmatprep.subr.mxu0 0.0
          %1759 = vmatpush2.msra.mxu0 0.0
          %1760 = vmatprep.subr.mxu0 0.0
          %1761 = vmatpush2.msra.mxu0 0.0
          %1762 = vmatprep.subr.mxu0 0.0
          %1763 = vmatpush2.msra.mxu0 0.0
          %1764 = vmatprep.subr.mxu0 0.0
          %1765 = vmatpush2.msra.mxu0 0.0
          %1766 = vmatprep.subr.mxu0 0.0
          %1767 = vmatpush2.msra.mxu0 0.0
          %1768 = vmatprep.subr.mxu0 0.0
          %1769 = vmatpush2.msra.mxu0 0.0
          %1770 = vmatprep.subr.mxu0 0.0
          %1771 = vmatpush2.msra.mxu0 0.0
          %1772 = vmatprep.subr.mxu0 0.0
          %1773 = vmatpush2.msra.mxu0 0.0
          %1774 = vmatprep.subr.mxu0 0.0
          %1775 = vmatpush2.msra.mxu0 0.0
          %1776 = vmatprep.subr.mxu0 0.0
          %1777 = vmatpush2.msra.mxu0 0.0
          %1778 = vmatprep.subr.mxu0 0.0
          %1779 = vmatpush2.msra.mxu0 0.0
          %1780 = vmatprep.subr.mxu0 0.0
          %1781 = vmatpush2.msra.mxu0 0.0
          %1782 = vmatprep.subr.mxu0 0.0
          %1783 = vmatpush2.msra.mxu0 0.0
          %1784 = vmatprep.subr.mxu0 0.0
          %1785 = vmatpush2.msra.mxu0 0.0
          %1786 = vmatprep.subr.mxu0 0.0
          %1787 = vmatpush2.msra.mxu0 0.0
          %1788 = vmatprep.subr.mxu0 0.0
          %1789 = vmatpush2.msra.mxu0 0.0
          %1790 = vmatprep.mubr.f32.mxu0 0.0
          %1791 = vmatmul.mubr.f32.gmra.mxu0 %v1505
          %v1792 = vpop.f32.mrf.mxu0
          %v1793 = vadd.f32 0.0, %v1792
          %v1794 = vpop.f32.mrf.mxu0
          %1795 = vdwg.mxu0
          %v1796 = vadd.f32 %v1581, %v1722
          %v1797 = vxor.u32 %v1796, 2147483648
          %v1798 = vmul.f32 %v1797, 1.442695
          %v1799 = vpow.pop %v1798
          %v1800 = vadd.f32 %v1799, 1.0
          %v1801 = vrcp.pop %v1800
          %v1802 = vmul.f32 1.0, %v1801
          %v1803 = vadd.f32 %v1583, %v1724
          %v1804 = vxor.u32 %v1803, 2147483648
          %v1805 = vmul.f32 %v1804, 1.442695
          %v1806 = vpow.pop %v1805
          %v1807 = vadd.f32 %v1806, 1.0
          %v1808 = vrcp.pop %v1807
          %v1809 = vmul.f32 1.0, %v1808
          %v1810 = vadd.f32 %v1793, %v770
          %v1811 = vmul.f32 %v1802, %v1810
          %v1812 = vadd.f32 %v1652, %v1811
          %v1813 = vtanh.pop %v1812
          %v1814 = vsub.f32 %v1505, %v1813
          %v1815 = vmul.f32 %v1809, %v1814
          %v1816 = vadd.f32 %v1813, %v1815
          %vm1817 = vcmp.gt.s32.totalorder %v432, 3
          %v1818 = vsel %vm1817, 1, 0
          %1819 = vset.pattern.permute.xlu0 0
          %1820 = vperm.xlu0 %1819, %v1818
          %v1821 = vpop.permute.xlu0 %1820
          %vm1822 = vcmp.eq.s32.totalorder %v1821, 1
          %v1823 = vsel %vm1822, %v1816, 0.0
          %v1826 = vunpack.c.l.s4 1966171168
          %v1827 = vunpack.c.0.s8 %v1826
          %v1828 = vlaneseq
          %v1829 = vshrl.u32 %v1828, 7
          %v1830 = vsub.s32 %v1827, %v1829
          %v1831 = vrot.slane %v1823, %v1830
          %v1832 = vcombine.high %v1831, %v1831
          %v1834 = vunpack.c.l.s4 1966171168
          %v1835 = vunpack.c.0.s8 %v1834
          %v1836 = vlaneseq
          %v1837 = vshrl.u32 %v1836, 7
          %v1838 = vsub.s32 %v1835, %v1837
          %v1839 = vrot.slane %v1831, %v1838
          %v1841 = vunpack.c.l.s4 1966171168
          %v1842 = vunpack.c.0.s8 %v1841
          %v1843 = vlaneseq
          %v1844 = vshrl.u32 %v1843, 7
          %v1845 = vsub.s32 %v1842, %v1844
          %v1846 = vrot.slane %v1832, %v1845
          %1849 = vst [vmem:[%s350 + $0x3] sm:$0x1] %v1839
          %1850 = vst [vmem:[%s350 + $0xb] sm:$0x1] %v1846
          %v1851 = vsel %vm1822, %v1816, %v1505
          %v1852 = vld [vmem:[%s320 + $0x4] sm:$0x1]
          %v1853 = vld [vmem:[%s320 + $0xc] sm:$0x1]
          %v1856 = vrot.slane %v1853, 7
          %v1857 = vsel %vm455, %v1856, %v1852
          %v1858 = vsel %vm460, %v1857, 0
          %1860 = vmatprep.subr.mxu0 0.0
          %1861 = vmatpush1.msra.mxu0 0.0
          %1862 = vmatprep.subr.mxu0 0.0
          %1863 = vmatpush1.msra.mxu0 0.0
          %1864 = vmatprep.subr.mxu0 0.0
          %1865 = vmatpush1.msra.mxu0 0.0
          %1866 = vmatprep.subr.mxu0 0.0
          %1867 = vmatpush1.msra.mxu0 0.0
          %1868 = vmatprep.subr.mxu0 0.0
          %1869 = vmatpush1.msra.mxu0 0.0
          %1870 = vmatprep.subr.mxu0 0.0
          %1871 = vmatpush1.msra.mxu0 0.0
          %1872 = vmatprep.subr.mxu0 0.0
          %1873 = vmatpush1.msra.mxu0 0.0
          %1874 = vmatprep.subr.mxu0 0.0
          %1875 = vmatpush1.msra.mxu0 0.0
          %1876 = vmatprep.subr.mxu0 0.0
          %1877 = vmatpush1.msra.mxu0 0.0
          %1878 = vmatprep.subr.mxu0 0.0
          %1879 = vmatpush1.msra.mxu0 0.0
          %1880 = vmatprep.subr.mxu0 0.0
          %1881 = vmatpush1.msra.mxu0 0.0
          %1882 = vmatprep.subr.mxu0 0.0
          %1883 = vmatpush1.msra.mxu0 0.0
          %1884 = vmatprep.subr.mxu0 0.0
          %1885 = vmatpush1.msra.mxu0 0.0
          %1886 = vmatprep.subr.mxu0 0.0
          %1887 = vmatpush1.msra.mxu0 0.0
          %1888 = vmatprep.subr.mxu0 0.0
          %1889 = vmatpush1.msra.mxu0 0.0
          %1890 = vmatprep.subr.mxu0 %v466
          %1891 = vmatpush1.msra.mxu0 %v464
          %1892 = vmatprep.subr.mxu0 0.0
          %1893 = vmatpush2.msra.mxu0 0.0
          %1894 = vmatprep.subr.mxu0 0.0
          %1895 = vmatpush2.msra.mxu0 0.0
          %1896 = vmatprep.subr.mxu0 0.0
          %1897 = vmatpush2.msra.mxu0 0.0
          %1898 = vmatprep.subr.mxu0 0.0
          %1899 = vmatpush2.msra.mxu0 0.0
          %1900 = vmatprep.subr.mxu0 0.0
          %1901 = vmatpush2.msra.mxu0 0.0
          %1902 = vmatprep.subr.mxu0 0.0
          %1903 = vmatpush2.msra.mxu0 0.0
          %1904 = vmatprep.subr.mxu0 0.0
          %1905 = vmatpush2.msra.mxu0 0.0
          %1906 = vmatprep.subr.mxu0 0.0
          %1907 = vmatpush2.msra.mxu0 0.0
          %1908 = vmatprep.subr.mxu0 0.0
          %1909 = vmatpush2.msra.mxu0 0.0
          %1910 = vmatprep.subr.mxu0 0.0
          %1911 = vmatpush2.msra.mxu0 0.0
          %1912 = vmatprep.subr.mxu0 0.0
          %1913 = vmatpush2.msra.mxu0 0.0
          %1914 = vmatprep.subr.mxu0 0.0
          %1915 = vmatpush2.msra.mxu0 0.0
          %1916 = vmatprep.subr.mxu0 0.0
          %1917 = vmatpush2.msra.mxu0 0.0
          %1918 = vmatprep.subr.mxu0 0.0
          %1919 = vmatpush2.msra.mxu0 0.0
          %1920 = vmatprep.subr.mxu0 0.0
          %1921 = vmatpush2.msra.mxu0 0.0
          %1922 = vmatprep.subr.mxu0 0.0
          %1923 = vmatpush2.msra.mxu0 0.0
          %1924 = vmatprep.mubr.f32.mxu0 0.0
          %1925 = vmatmul.mubr.f32.gmra.mxu0 %v1858
          %v1926 = vpop.f32.mrf.mxu0
          %v1927 = vadd.f32 %v440, %v1926
          %v1928 = vpop.f32.mrf.mxu0
          %v1929 = vadd.f32 %v444, %v1928
          %1930 = vdwg.mxu0
          %1931 = vmatprep.subr.mxu0 0.0
          %1932 = vmatpush1.msra.mxu0 0.0
          %1933 = vmatprep.subr.mxu0 0.0
          %1934 = vmatpush1.msra.mxu0 0.0
          %1935 = vmatprep.subr.mxu0 0.0
          %1936 = vmatpush1.msra.mxu0 0.0
          %1937 = vmatprep.subr.mxu0 0.0
          %1938 = vmatpush1.msra.mxu0 0.0
          %1939 = vmatprep.subr.mxu0 0.0
          %1940 = vmatpush1.msra.mxu0 0.0
          %1941 = vmatprep.subr.mxu0 0.0
          %1942 = vmatpush1.msra.mxu0 0.0
          %1943 = vmatprep.subr.mxu0 0.0
          %1944 = vmatpush1.msra.mxu0 0.0
          %1945 = vmatprep.subr.mxu0 0.0
          %1946 = vmatpush1.msra.mxu0 0.0
          %1947 = vmatprep.subr.mxu0 0.0
          %1948 = vmatpush1.msra.mxu0 0.0
          %1949 = vmatprep.subr.mxu0 0.0
          %1950 = vmatpush1.msra.mxu0 0.0
          %1951 = vmatprep.subr.mxu0 0.0
          %1952 = vmatpush1.msra.mxu0 0.0
          %1953 = vmatprep.subr.mxu0 0.0
          %1954 = vmatpush1.msra.mxu0 0.0
          %1955 = vmatprep.subr.mxu0 0.0
          %1956 = vmatpush1.msra.mxu0 0.0
          %1957 = vmatprep.subr.mxu0 0.0
          %1958 = vmatpush1.msra.mxu0 0.0
          %1959 = vmatprep.subr.mxu0 0.0
          %1960 = vmatpush1.msra.mxu0 0.0
          %1961 = vmatprep.subr.mxu0 0.0
          %1962 = vmatpush1.msra.mxu0 %v468
          %1963 = vmatprep.subr.mxu0 0.0
          %1964 = vmatpush2.msra.mxu0 0.0
          %1965 = vmatprep.subr.mxu0 0.0
          %1966 = vmatpush2.msra.mxu0 0.0
          %1967 = vmatprep.subr.mxu0 0.0
          %1968 = vmatpush2.msra.mxu0 0.0
          %1969 = vmatprep.subr.mxu0 0.0
          %1970 = vmatpush2.msra.mxu0 0.0
          %1971 = vmatprep.subr.mxu0 0.0
          %1972 = vmatpush2.msra.mxu0 0.0
          %1973 = vmatprep.subr.mxu0 0.0
          %1974 = vmatpush2.msra.mxu0 0.0
          %1975 = vmatprep.subr.mxu0 0.0
          %1976 = vmatpush2.msra.mxu0 0.0
          %1977 = vmatprep.subr.mxu0 0.0
          %1978 = vmatpush2.msra.mxu0 0.0
          %1979 = vmatprep.subr.mxu0 0.0
          %1980 = vmatpush2.msra.mxu0 0.0
          %1981 = vmatprep.subr.mxu0 0.0
          %1982 = vmatpush2.msra.mxu0 0.0
          %1983 = vmatprep.subr.mxu0 0.0
          %1984 = vmatpush2.msra.mxu0 0.0
          %1985 = vmatprep.subr.mxu0 0.0
          %1986 = vmatpush2.msra.mxu0 0.0
          %1987 = vmatprep.subr.mxu0 0.0
          %1988 = vmatpush2.msra.mxu0 0.0
          %1989 = vmatprep.subr.mxu0 0.0
          %1990 = vmatpush2.msra.mxu0 0.0
          %1991 = vmatprep.subr.mxu0 0.0
          %1992 = vmatpush2.msra.mxu0 0.0
          %1993 = vmatprep.subr.mxu0 0.0
          %1994 = vmatpush2.msra.mxu0 0.0
          %1995 = vmatprep.mubr.f32.mxu0 0.0
          %1996 = vmatmul.mubr.f32.gmra.mxu0 %v1858
          %v1997 = vpop.f32.mrf.mxu0
          %v1998 = vadd.f32 %v448, %v1997
          %v1999 = vpop.f32.mrf.mxu0
          %2000 = vdwg.mxu0
          %2001 = vmatprep.subr.mxu0 %v426
          %2002 = vmatpush1.msra.mxu0 %v425
          %2003 = vmatprep.subr.mxu0 %v423
          %2004 = vmatpush1.msra.mxu0 %v422
          %2005 = vmatprep.subr.mxu0 %v420
          %2006 = vmatpush1.msra.mxu0 %v419
          %2007 = vmatprep.subr.mxu0 %v417
          %2008 = vmatpush1.msra.mxu0 %v416
          %2009 = vmatprep.subr.mxu0 %v414
          %2010 = vmatpush1.msra.mxu0 %v413
          %2011 = vmatprep.subr.mxu0 %v411
          %2012 = vmatpush1.msra.mxu0 %v410
          %2013 = vmatprep.subr.mxu0 %v408
          %2014 = vmatpush1.msra.mxu0 %v407
          %2015 = vmatprep.subr.mxu0 %v405
          %2016 = vmatpush1.msra.mxu0 %v404
          %2017 = vmatprep.subr.mxu0 %v402
          %2018 = vmatpush1.msra.mxu0 %v401
          %2019 = vmatprep.subr.mxu0 %v399
          %2020 = vmatpush1.msra.mxu0 %v398
          %2021 = vmatprep.subr.mxu0 %v396
          %2022 = vmatpush1.msra.mxu0 %v395
          %2023 = vmatprep.subr.mxu0 %v393
          %2024 = vmatpush1.msra.mxu0 %v392
          %2025 = vmatprep.subr.mxu0 %v390
          %2026 = vmatpush1.msra.mxu0 %v389
          %2027 = vmatprep.subr.mxu0 %v387
          %2028 = vmatpush1.msra.mxu0 %v386
          %2029 = vmatprep.subr.mxu0 %v384
          %2030 = vmatpush1.msra.mxu0 %v383
          %2031 = vmatprep.subr.mxu0 %v381
          %2032 = vmatpush1.msra.mxu0 %v380
          %2033 = vmatprep.subr.mxu0 0.0
          %2034 = vmatpush2.msra.mxu0 0.0
          %2035 = vmatprep.subr.mxu0 0.0
          %2036 = vmatpush2.msra.mxu0 0.0
          %2037 = vmatprep.subr.mxu0 0.0
          %2038 = vmatpush2.msra.mxu0 0.0
          %2039 = vmatprep.subr.mxu0 0.0
          %2040 = vmatpush2.msra.mxu0 0.0
          %2041 = vmatprep.subr.mxu0 0.0
          %2042 = vmatpush2.msra.mxu0 0.0
          %2043 = vmatprep.subr.mxu0 0.0
          %2044 = vmatpush2.msra.mxu0 0.0
          %2045 = vmatprep.subr.mxu0 0.0
          %2046 = vmatpush2.msra.mxu0 0.0
          %2047 = vmatprep.subr.mxu0 0.0
          %2048 = vmatpush2.msra.mxu0 0.0
          %2049 = vmatprep.subr.mxu0 0.0
          %2050 = vmatpush2.msra.mxu0 0.0
          %2051 = vmatprep.subr.mxu0 0.0
          %2052 = vmatpush2.msra.mxu0 0.0
          %2053 = vmatprep.subr.mxu0 0.0
          %2054 = vmatpush2.msra.mxu0 0.0
          %2055 = vmatprep.subr.mxu0 0.0
          %2056 = vmatpush2.msra.mxu0 0.0
          %2057 = vmatprep.subr.mxu0 0.0
          %2058 = vmatpush2.msra.mxu0 0.0
          %2059 = vmatprep.subr.mxu0 0.0
          %2060 = vmatpush2.msra.mxu0 0.0
          %2061 = vmatprep.subr.mxu0 0.0
          %2062 = vmatpush2.msra.mxu0 0.0
          %2063 = vmatprep.subr.mxu0 0.0
          %2064 = vmatpush2.msra.mxu0 0.0
          %2065 = vmatprep.mubr.f32.mxu0 0.0
          %2066 = vmatmul.mubr.f32.gmra.mxu0 %v1851
          %v2067 = vpop.f32.mrf.mxu0
          %v2068 = vadd.f32 0.0, %v2067
          %v2069 = vpop.f32.mrf.mxu0
          %v2070 = vadd.f32 0.0, %v2069
          %2071 = vdwg.mxu0
          %2072 = vmatprep.subr.mxu0 0.0
          %2073 = vmatpush1.msra.mxu0 %v427
          %2074 = vmatprep.subr.mxu0 0.0
          %2075 = vmatpush1.msra.mxu0 %v424
          %2076 = vmatprep.subr.mxu0 0.0
          %2077 = vmatpush1.msra.mxu0 %v421
          %2078 = vmatprep.subr.mxu0 0.0
          %2079 = vmatpush1.msra.mxu0 %v418
          %2080 = vmatprep.subr.mxu0 0.0
          %2081 = vmatpush1.msra.mxu0 %v415
          %2082 = vmatprep.subr.mxu0 0.0
          %2083 = vmatpush1.msra.mxu0 %v412
          %2084 = vmatprep.subr.mxu0 0.0
          %2085 = vmatpush1.msra.mxu0 %v409
          %2086 = vmatprep.subr.mxu0 0.0
          %2087 = vmatpush1.msra.mxu0 %v406
          %2088 = vmatprep.subr.mxu0 0.0
          %2089 = vmatpush1.msra.mxu0 %v403
          %2090 = vmatprep.subr.mxu0 0.0
          %2091 = vmatpush1.msra.mxu0 %v400
          %2092 = vmatprep.subr.mxu0 0.0
          %2093 = vmatpush1.msra.mxu0 %v397
          %2094 = vmatprep.subr.mxu0 0.0
          %2095 = vmatpush1.msra.mxu0 %v394
          %2096 = vmatprep.subr.mxu0 0.0
          %2097 = vmatpush1.msra.mxu0 %v391
          %2098 = vmatprep.subr.mxu0 0.0
          %2099 = vmatpush1.msra.mxu0 %v388
          %2100 = vmatprep.subr.mxu0 0.0
          %2101 = vmatpush1.msra.mxu0 %v385
          %2102 = vmatprep.subr.mxu0 0.0
          %2103 = vmatpush1.msra.mxu0 %v382
          %2104 = vmatprep.subr.mxu0 0.0
          %2105 = vmatpush2.msra.mxu0 0.0
          %2106 = vmatprep.subr.mxu0 0.0
          %2107 = vmatpush2.msra.mxu0 0.0
          %2108 = vmatprep.subr.mxu0 0.0
          %2109 = vmatpush2.msra.mxu0 0.0
          %2110 = vmatprep.subr.mxu0 0.0
          %2111 = vmatpush2.msra.mxu0 0.0
          %2112 = vmatprep.subr.mxu0 0.0
          %2113 = vmatpush2.msra.mxu0 0.0
          %2114 = vmatprep.subr.mxu0 0.0
          %2115 = vmatpush2.msra.mxu0 0.0
          %2116 = vmatprep.subr.mxu0 0.0
          %2117 = vmatpush2.msra.mxu0 0.0
          %2118 = vmatprep.subr.mxu0 0.0
          %2119 = vmatpush2.msra.mxu0 0.0
          %2120 = vmatprep.subr.mxu0 0.0
          %2121 = vmatpush2.msra.mxu0 0.0
          %2122 = vmatprep.subr.mxu0 0.0
          %2123 = vmatpush2.msra.mxu0 0.0
          %2124 = vmatprep.subr.mxu0 0.0
          %2125 = vmatpush2.msra.mxu0 0.0
          %2126 = vmatprep.subr.mxu0 0.0
          %2127 = vmatpush2.msra.mxu0 0.0
          %2128 = vmatprep.subr.mxu0 0.0
          %2129 = vmatpush2.msra.mxu0 0.0
          %2130 = vmatprep.subr.mxu0 0.0
          %2131 = vmatpush2.msra.mxu0 0.0
          %2132 = vmatprep.subr.mxu0 0.0
          %2133 = vmatpush2.msra.mxu0 0.0
          %2134 = vmatprep.subr.mxu0 0.0
          %2135 = vmatpush2.msra.mxu0 0.0
          %2136 = vmatprep.mubr.f32.mxu0 0.0
          %2137 = vmatmul.mubr.f32.gmra.mxu0 %v1851
          %v2138 = vpop.f32.mrf.mxu0
          %v2139 = vadd.f32 0.0, %v2138
          %v2140 = vpop.f32.mrf.mxu0
          %2141 = vdwg.mxu0
          %v2142 = vadd.f32 %v1927, %v2068
          %v2143 = vxor.u32 %v2142, 2147483648
          %v2144 = vmul.f32 %v2143, 1.442695
          %v2145 = vpow.pop %v2144
          %v2146 = vadd.f32 %v2145, 1.0
          %v2147 = vrcp.pop %v2146
          %v2148 = vmul.f32 1.0, %v2147
          %v2149 = vadd.f32 %v1929, %v2070
          %v2150 = vxor.u32 %v2149, 2147483648
          %v2151 = vmul.f32 %v2150, 1.442695
          %v2152 = vpow.pop %v2151
          %v2153 = vadd.f32 %v2152, 1.0
          %v2154 = vrcp.pop %v2153
          %v2155 = vmul.f32 1.0, %v2154
          %v2156 = vadd.f32 %v2139, %v770
          %v2157 = vmul.f32 %v2148, %v2156
          %v2158 = vadd.f32 %v1998, %v2157
          %v2159 = vtanh.pop %v2158
          %v2160 = vsub.f32 %v1851, %v2159
          %v2161 = vmul.f32 %v2155, %v2160
          %v2162 = vadd.f32 %v2159, %v2161
          %vm2163 = vcmp.gt.s32.totalorder %v432, 4
          %v2164 = vsel %vm2163, 1, 0
          %2165 = vset.pattern.permute.xlu0 0
          %2166 = vperm.xlu0 %2165, %v2164
          %v2167 = vpop.permute.xlu0 %2166
          %vm2168 = vcmp.eq.s32.totalorder %v2167, 1
          %v2169 = vsel %vm2168, %v2162, 0.0
          %v2172 = vunpack.c.l.s4 1966171168
          %v2173 = vunpack.c.0.s8 %v2172
          %v2174 = vlaneseq
          %v2175 = vshrl.u32 %v2174, 7
          %v2176 = vsub.s32 %v2173, %v2175
          %v2177 = vrot.slane %v2169, %v2176
          %v2178 = vcombine.high %v2177, %v2177
          %v2180 = vunpack.c.l.s4 1966171168
          %v2181 = vunpack.c.0.s8 %v2180
          %v2182 = vlaneseq
          %v2183 = vshrl.u32 %v2182, 7
          %v2184 = vsub.s32 %v2181, %v2183
          %v2185 = vrot.slane %v2177, %v2184
          %v2187 = vunpack.c.l.s4 1966171168
          %v2188 = vunpack.c.0.s8 %v2187
          %v2189 = vlaneseq
          %v2190 = vshrl.u32 %v2189, 7
          %v2191 = vsub.s32 %v2188, %v2190
          %v2192 = vrot.slane %v2178, %v2191
          %2195 = vst [vmem:[%s350 + $0x4] sm:$0x1] %v2185
          %2196 = vst [vmem:[%s350 + $0xc] sm:$0x1] %v2192
          %v2197 = vsel %vm2168, %v2162, %v1851
          %v2198 = vld [vmem:[%s320 + $0x5] sm:$0x1]
          %v2199 = vld [vmem:[%s320 + $0xd] sm:$0x1]
          %v2202 = vrot.slane %v2199, 7
          %v2203 = vsel %vm455, %v2202, %v2198
          %v2204 = vsel %vm460, %v2203, 0
          %2206 = vmatprep.subr.mxu0 0.0
          %2207 = vmatpush1.msra.mxu0 0.0
          %2208 = vmatprep.subr.mxu0 0.0
          %2209 = vmatpush1.msra.mxu0 0.0
          %2210 = vmatprep.subr.mxu0 0.0
          %2211 = vmatpush1.msra.mxu0 0.0
          %2212 = vmatprep.subr.mxu0 0.0
          %2213 = vmatpush1.msra.mxu0 0.0
          %2214 = vmatprep.subr.mxu0 0.0
          %2215 = vmatpush1.msra.mxu0 0.0
          %2216 = vmatprep.subr.mxu0 0.0
          %2217 = vmatpush1.msra.mxu0 0.0
          %2218 = vmatprep.subr.mxu0 0.0
          %2219 = vmatpush1.msra.mxu0 0.0
          %2220 = vmatprep.subr.mxu0 0.0
          %2221 = vmatpush1.msra.mxu0 0.0
          %2222 = vmatprep.subr.mxu0 0.0
          %2223 = vmatpush1.msra.mxu0 0.0
          %2224 = vmatprep.subr.mxu0 0.0
          %2225 = vmatpush1.msra.mxu0 0.0
          %2226 = vmatprep.subr.mxu0 0.0
          %2227 = vmatpush1.msra.mxu0 0.0
          %2228 = vmatprep.subr.mxu0 0.0
          %2229 = vmatpush1.msra.mxu0 0.0
          %2230 = vmatprep.subr.mxu0 0.0
          %2231 = vmatpush1.msra.mxu0 0.0
          %2232 = vmatprep.subr.mxu0 0.0
          %2233 = vmatpush1.msra.mxu0 0.0
          %2234 = vmatprep.subr.mxu0 0.0
          %2235 = vmatpush1.msra.mxu0 0.0
          %2236 = vmatprep.subr.mxu0 %v466
          %2237 = vmatpush1.msra.mxu0 %v464
          %2238 = vmatprep.subr.mxu0 0.0
          %2239 = vmatpush2.msra.mxu0 0.0
          %2240 = vmatprep.subr.mxu0 0.0
          %2241 = vmatpush2.msra.mxu0 0.0
          %2242 = vmatprep.subr.mxu0 0.0
          %2243 = vmatpush2.msra.mxu0 0.0
          %2244 = vmatprep.subr.mxu0 0.0
          %2245 = vmatpush2.msra.mxu0 0.0
          %2246 = vmatprep.subr.mxu0 0.0
          %2247 = vmatpush2.msra.mxu0 0.0
          %2248 = vmatprep.subr.mxu0 0.0
          %2249 = vmatpush2.msra.mxu0 0.0
          %2250 = vmatprep.subr.mxu0 0.0
          %2251 = vmatpush2.msra.mxu0 0.0
          %2252 = vmatprep.subr.mxu0 0.0
          %2253 = vmatpush2.msra.mxu0 0.0
          %2254 = vmatprep.subr.mxu0 0.0
          %2255 = vmatpush2.msra.mxu0 0.0
          %2256 = vmatprep.subr.mxu0 0.0
          %2257 = vmatpush2.msra.mxu0 0.0
          %2258 = vmatprep.subr.mxu0 0.0
          %2259 = vmatpush2.msra.mxu0 0.0
          %2260 = vmatprep.subr.mxu0 0.0
          %2261 = vmatpush2.msra.mxu0 0.0
          %2262 = vmatprep.subr.mxu0 0.0
          %2263 = vmatpush2.msra.mxu0 0.0
          %2264 = vmatprep.subr.mxu0 0.0
          %2265 = vmatpush2.msra.mxu0 0.0
          %2266 = vmatprep.subr.mxu0 0.0
          %2267 = vmatpush2.msra.mxu0 0.0
          %2268 = vmatprep.subr.mxu0 0.0
          %2269 = vmatpush2.msra.mxu0 0.0
          %2270 = vmatprep.mubr.f32.mxu0 0.0
          %2271 = vmatmul.mubr.f32.gmra.mxu0 %v2204
          %v2272 = vpop.f32.mrf.mxu0
          %v2273 = vadd.f32 %v440, %v2272
          %v2274 = vpop.f32.mrf.mxu0
          %v2275 = vadd.f32 %v444, %v2274
          %2276 = vdwg.mxu0
          %2277 = vmatprep.subr.mxu0 0.0
          %2278 = vmatpush1.msra.mxu0 0.0
          %2279 = vmatprep.subr.mxu0 0.0
          %2280 = vmatpush1.msra.mxu0 0.0
          %2281 = vmatprep.subr.mxu0 0.0
          %2282 = vmatpush1.msra.mxu0 0.0
          %2283 = vmatprep.subr.mxu0 0.0
          %2284 = vmatpush1.msra.mxu0 0.0
          %2285 = vmatprep.subr.mxu0 0.0
          %2286 = vmatpush1.msra.mxu0 0.0
          %2287 = vmatprep.subr.mxu0 0.0
          %2288 = vmatpush1.msra.mxu0 0.0
          %2289 = vmatprep.subr.mxu0 0.0
          %2290 = vmatpush1.msra.mxu0 0.0
          %2291 = vmatprep.subr.mxu0 0.0
          %2292 = vmatpush1.msra.mxu0 0.0
          %2293 = vmatprep.subr.mxu0 0.0
          %2294 = vmatpush1.msra.mxu0 0.0
          %2295 = vmatprep.subr.mxu0 0.0
          %2296 = vmatpush1.msra.mxu0 0.0
          %2297 = vmatprep.subr.mxu0 0.0
          %2298 = vmatpush1.msra.mxu0 0.0
          %2299 = vmatprep.subr.mxu0 0.0
          %2300 = vmatpush1.msra.mxu0 0.0
          %2301 = vmatprep.subr.mxu0 0.0
          %2302 = vmatpush1.msra.mxu0 0.0
          %2303 = vmatprep.subr.mxu0 0.0
          %2304 = vmatpush1.msra.mxu0 0.0
          %2305 = vmatprep.subr.mxu0 0.0
          %2306 = vmatpush1.msra.mxu0 0.0
          %2307 = vmatprep.subr.mxu0 0.0
          %2308 = vmatpush1.msra.mxu0 %v468
          %2309 = vmatprep.subr.mxu0 0.0
          %2310 = vmatpush2.msra.mxu0 0.0
          %2311 = vmatprep.subr.mxu0 0.0
          %2312 = vmatpush2.msra.mxu0 0.0
          %2313 = vmatprep.subr.mxu0 0.0
          %2314 = vmatpush2.msra.mxu0 0.0
          %2315 = vmatprep.subr.mxu0 0.0
          %2316 = vmatpush2.msra.mxu0 0.0
          %2317 = vmatprep.subr.mxu0 0.0
          %2318 = vmatpush2.msra.mxu0 0.0
          %2319 = vmatprep.subr.mxu0 0.0
          %2320 = vmatpush2.msra.mxu0 0.0
          %2321 = vmatprep.subr.mxu0 0.0
          %2322 = vmatpush2.msra.mxu0 0.0
          %2323 = vmatprep.subr.mxu0 0.0
          %2324 = vmatpush2.msra.mxu0 0.0
          %2325 = vmatprep.subr.mxu0 0.0
          %2326 = vmatpush2.msra.mxu0 0.0
          %2327 = vmatprep.subr.mxu0 0.0
          %2328 = vmatpush2.msra.mxu0 0.0
          %2329 = vmatprep.subr.mxu0 0.0
          %2330 = vmatpush2.msra.mxu0 0.0
          %2331 = vmatprep.subr.mxu0 0.0
          %2332 = vmatpush2.msra.mxu0 0.0
          %2333 = vmatprep.subr.mxu0 0.0
          %2334 = vmatpush2.msra.mxu0 0.0
          %2335 = vmatprep.subr.mxu0 0.0
          %2336 = vmatpush2.msra.mxu0 0.0
          %2337 = vmatprep.subr.mxu0 0.0
          %2338 = vmatpush2.msra.mxu0 0.0
          %2339 = vmatprep.subr.mxu0 0.0
          %2340 = vmatpush2.msra.mxu0 0.0
          %2341 = vmatprep.mubr.f32.mxu0 0.0
          %2342 = vmatmul.mubr.f32.gmra.mxu0 %v2204
          %v2343 = vpop.f32.mrf.mxu0
          %v2344 = vadd.f32 %v448, %v2343
          %v2345 = vpop.f32.mrf.mxu0
          %2346 = vdwg.mxu0
          %2347 = vmatprep.subr.mxu0 %v426
          %2348 = vmatpush1.msra.mxu0 %v425
          %2349 = vmatprep.subr.mxu0 %v423
          %2350 = vmatpush1.msra.mxu0 %v422
          %2351 = vmatprep.subr.mxu0 %v420
          %2352 = vmatpush1.msra.mxu0 %v419
          %2353 = vmatprep.subr.mxu0 %v417
          %2354 = vmatpush1.msra.mxu0 %v416
          %2355 = vmatprep.subr.mxu0 %v414
          %2356 = vmatpush1.msra.mxu0 %v413
          %2357 = vmatprep.subr.mxu0 %v411
          %2358 = vmatpush1.msra.mxu0 %v410
          %2359 = vmatprep.subr.mxu0 %v408
          %2360 = vmatpush1.msra.mxu0 %v407
          %2361 = vmatprep.subr.mxu0 %v405
          %2362 = vmatpush1.msra.mxu0 %v404
          %2363 = vmatprep.subr.mxu0 %v402
          %2364 = vmatpush1.msra.mxu0 %v401
          %2365 = vmatprep.subr.mxu0 %v399
          %2366 = vmatpush1.msra.mxu0 %v398
          %2367 = vmatprep.subr.mxu0 %v396
          %2368 = vmatpush1.msra.mxu0 %v395
          %2369 = vmatprep.subr.mxu0 %v393
          %2370 = vmatpush1.msra.mxu0 %v392
          %2371 = vmatprep.subr.mxu0 %v390
          %2372 = vmatpush1.msra.mxu0 %v389
          %2373 = vmatprep.subr.mxu0 %v387
          %2374 = vmatpush1.msra.mxu0 %v386
          %2375 = vmatprep.subr.mxu0 %v384
          %2376 = vmatpush1.msra.mxu0 %v383
          %2377 = vmatprep.subr.mxu0 %v381
          %2378 = vmatpush1.msra.mxu0 %v380
          %2379 = vmatprep.subr.mxu0 0.0
          %2380 = vmatpush2.msra.mxu0 0.0
          %2381 = vmatprep.subr.mxu0 0.0
          %2382 = vmatpush2.msra.mxu0 0.0
          %2383 = vmatprep.subr.mxu0 0.0
          %2384 = vmatpush2.msra.mxu0 0.0
          %2385 = vmatprep.subr.mxu0 0.0
          %2386 = vmatpush2.msra.mxu0 0.0
          %2387 = vmatprep.subr.mxu0 0.0
          %2388 = vmatpush2.msra.mxu0 0.0
          %2389 = vmatprep.subr.mxu0 0.0
          %2390 = vmatpush2.msra.mxu0 0.0
          %2391 = vmatprep.subr.mxu0 0.0
          %2392 = vmatpush2.msra.mxu0 0.0
          %2393 = vmatprep.subr.mxu0 0.0
          %2394 = vmatpush2.msra.mxu0 0.0
          %2395 = vmatprep.subr.mxu0 0.0
          %2396 = vmatpush2.msra.mxu0 0.0
          %2397 = vmatprep.subr.mxu0 0.0
          %2398 = vmatpush2.msra.mxu0 0.0
          %2399 = vmatprep.subr.mxu0 0.0
          %2400 = vmatpush2.msra.mxu0 0.0
          %2401 = vmatprep.subr.mxu0 0.0
          %2402 = vmatpush2.msra.mxu0 0.0
          %2403 = vmatprep.subr.mxu0 0.0
          %2404 = vmatpush2.msra.mxu0 0.0
          %2405 = vmatprep.subr.mxu0 0.0
          %2406 = vmatpush2.msra.mxu0 0.0
          %2407 = vmatprep.subr.mxu0 0.0
          %2408 = vmatpush2.msra.mxu0 0.0
          %2409 = vmatprep.subr.mxu0 0.0
          %2410 = vmatpush2.msra.mxu0 0.0
          %2411 = vmatprep.mubr.f32.mxu0 0.0
          %2412 = vmatmul.mubr.f32.gmra.mxu0 %v2197
          %v2413 = vpop.f32.mrf.mxu0
          %v2414 = vadd.f32 0.0, %v2413
          %v2415 = vpop.f32.mrf.mxu0
          %v2416 = vadd.f32 0.0, %v2415
          %2417 = vdwg.mxu0
          %2418 = vmatprep.subr.mxu0 0.0
          %2419 = vmatpush1.msra.mxu0 %v427
          %2420 = vmatprep.subr.mxu0 0.0
          %2421 = vmatpush1.msra.mxu0 %v424
          %2422 = vmatprep.subr.mxu0 0.0
          %2423 = vmatpush1.msra.mxu0 %v421
          %2424 = vmatprep.subr.mxu0 0.0
          %2425 = vmatpush1.msra.mxu0 %v418
          %2426 = vmatprep.subr.mxu0 0.0
          %2427 = vmatpush1.msra.mxu0 %v415
          %2428 = vmatprep.subr.mxu0 0.0
          %2429 = vmatpush1.msra.mxu0 %v412
          %2430 = vmatprep.subr.mxu0 0.0
          %2431 = vmatpush1.msra.mxu0 %v409
          %2432 = vmatprep.subr.mxu0 0.0
          %2433 = vmatpush1.msra.mxu0 %v406
          %2434 = vmatprep.subr.mxu0 0.0
          %2435 = vmatpush1.msra.mxu0 %v403
          %2436 = vmatprep.subr.mxu0 0.0
          %2437 = vmatpush1.msra.mxu0 %v400
          %2438 = vmatprep.subr.mxu0 0.0
          %2439 = vmatpush1.msra.mxu0 %v397
          %2440 = vmatprep.subr.mxu0 0.0
          %2441 = vmatpush1.msra.mxu0 %v394
          %2442 = vmatprep.subr.mxu0 0.0
          %2443 = vmatpush1.msra.mxu0 %v391
          %2444 = vmatprep.subr.mxu0 0.0
          %2445 = vmatpush1.msra.mxu0 %v388
          %2446 = vmatprep.subr.mxu0 0.0
          %2447 = vmatpush1.msra.mxu0 %v385
          %2448 = vmatprep.subr.mxu0 0.0
          %2449 = vmatpush1.msra.mxu0 %v382
          %2450 = vmatprep.subr.mxu0 0.0
          %2451 = vmatpush2.msra.mxu0 0.0
          %2452 = vmatprep.subr.mxu0 0.0
          %2453 = vmatpush2.msra.mxu0 0.0
          %2454 = vmatprep.subr.mxu0 0.0
          %2455 = vmatpush2.msra.mxu0 0.0
          %2456 = vmatprep.subr.mxu0 0.0
          %2457 = vmatpush2.msra.mxu0 0.0
          %2458 = vmatprep.subr.mxu0 0.0
          %2459 = vmatpush2.msra.mxu0 0.0
          %2460 = vmatprep.subr.mxu0 0.0
          %2461 = vmatpush2.msra.mxu0 0.0
          %2462 = vmatprep.subr.mxu0 0.0
          %2463 = vmatpush2.msra.mxu0 0.0
          %2464 = vmatprep.subr.mxu0 0.0
          %2465 = vmatpush2.msra.mxu0 0.0
          %2466 = vmatprep.subr.mxu0 0.0
          %2467 = vmatpush2.msra.mxu0 0.0
          %2468 = vmatprep.subr.mxu0 0.0
          %2469 = vmatpush2.msra.mxu0 0.0
          %2470 = vmatprep.subr.mxu0 0.0
          %2471 = vmatpush2.msra.mxu0 0.0
          %2472 = vmatprep.subr.mxu0 0.0
          %2473 = vmatpush2.msra.mxu0 0.0
          %2474 = vmatprep.subr.mxu0 0.0
          %2475 = vmatpush2.msra.mxu0 0.0
          %2476 = vmatprep.subr.mxu0 0.0
          %2477 = vmatpush2.msra.mxu0 0.0
          %2478 = vmatprep.subr.mxu0 0.0
          %2479 = vmatpush2.msra.mxu0 0.0
          %2480 = vmatprep.subr.mxu0 0.0
          %2481 = vmatpush2.msra.mxu0 0.0
          %2482 = vmatprep.mubr.f32.mxu0 0.0
          %2483 = vmatmul.mubr.f32.gmra.mxu0 %v2197
          %v2484 = vpop.f32.mrf.mxu0
          %v2485 = vadd.f32 0.0, %v2484
          %v2486 = vpop.f32.mrf.mxu0
          %2487 = vdwg.mxu0
          %v2488 = vadd.f32 %v2273, %v2414
          %v2489 = vxor.u32 %v2488, 2147483648
          %v2490 = vmul.f32 %v2489, 1.442695
          %v2491 = vpow.pop %v2490
          %v2492 = vadd.f32 %v2491, 1.0
          %v2493 = vrcp.pop %v2492
          %v2494 = vmul.f32 1.0, %v2493
          %v2495 = vadd.f32 %v2275, %v2416
          %v2496 = vxor.u32 %v2495, 2147483648
          %v2497 = vmul.f32 %v2496, 1.442695
          %v2498 = vpow.pop %v2497
          %v2499 = vadd.f32 %v2498, 1.0
          %v2500 = vrcp.pop %v2499
          %v2501 = vmul.f32 1.0, %v2500
          %v2502 = vadd.f32 %v2485, %v770
          %v2503 = vmul.f32 %v2494, %v2502
          %v2504 = vadd.f32 %v2344, %v2503
          %v2505 = vtanh.pop %v2504
          %v2506 = vsub.f32 %v2197, %v2505
          %v2507 = vmul.f32 %v2501, %v2506
          %v2508 = vadd.f32 %v2505, %v2507
          %vm2509 = vcmp.gt.s32.totalorder %v432, 5
          %v2510 = vsel %vm2509, 1, 0
          %2511 = vset.pattern.permute.xlu0 0
          %2512 = vperm.xlu0 %2511, %v2510
          %v2513 = vpop.permute.xlu0 %2512
          %vm2514 = vcmp.eq.s32.totalorder %v2513, 1
          %v2515 = vsel %vm2514, %v2508, 0.0
          %v2518 = vunpack.c.l.s4 1966171168
          %v2519 = vunpack.c.0.s8 %v2518
          %v2520 = vlaneseq
          %v2521 = vshrl.u32 %v2520, 7
          %v2522 = vsub.s32 %v2519, %v2521
          %v2523 = vrot.slane %v2515, %v2522
          %v2524 = vcombine.high %v2523, %v2523
          %v2526 = vunpack.c.l.s4 1966171168
          %v2527 = vunpack.c.0.s8 %v2526
          %v2528 = vlaneseq
          %v2529 = vshrl.u32 %v2528, 7
          %v2530 = vsub.s32 %v2527, %v2529
          %v2531 = vrot.slane %v2523, %v2530
          %v2533 = vunpack.c.l.s4 1966171168
          %v2534 = vunpack.c.0.s8 %v2533
          %v2535 = vlaneseq
          %v2536 = vshrl.u32 %v2535, 7
          %v2537 = vsub.s32 %v2534, %v2536
          %v2538 = vrot.slane %v2524, %v2537
          %2541 = vst [vmem:[%s350 + $0x5] sm:$0x1] %v2531
          %2542 = vst [vmem:[%s350 + $0xd] sm:$0x1] %v2538
          %v2543 = vsel %vm2514, %v2508, %v2197
          %v2544 = vld [vmem:[%s320 + $0x6] sm:$0x1]
          %v2545 = vld [vmem:[%s320 + $0xe] sm:$0x1]
          %v2548 = vrot.slane %v2545, 7
          %v2549 = vsel %vm455, %v2548, %v2544
          %v2550 = vsel %vm460, %v2549, 0
          %2552 = vmatprep.subr.mxu0 0.0
          %2553 = vmatpush1.msra.mxu0 0.0
          %2554 = vmatprep.subr.mxu0 0.0
          %2555 = vmatpush1.msra.mxu0 0.0
          %2556 = vmatprep.subr.mxu0 0.0
          %2557 = vmatpush1.msra.mxu0 0.0
          %2558 = vmatprep.subr.mxu0 0.0
          %2559 = vmatpush1.msra.mxu0 0.0
          %2560 = vmatprep.subr.mxu0 0.0
          %2561 = vmatpush1.msra.mxu0 0.0
          %2562 = vmatprep.subr.mxu0 0.0
          %2563 = vmatpush1.msra.mxu0 0.0
          %2564 = vmatprep.subr.mxu0 0.0
          %2565 = vmatpush1.msra.mxu0 0.0
          %2566 = vmatprep.subr.mxu0 0.0
          %2567 = vmatpush1.msra.mxu0 0.0
          %2568 = vmatprep.subr.mxu0 0.0
          %2569 = vmatpush1.msra.mxu0 0.0
          %2570 = vmatprep.subr.mxu0 0.0
          %2571 = vmatpush1.msra.mxu0 0.0
          %2572 = vmatprep.subr.mxu0 0.0
          %2573 = vmatpush1.msra.mxu0 0.0
          %2574 = vmatprep.subr.mxu0 0.0
          %2575 = vmatpush1.msra.mxu0 0.0
          %2576 = vmatprep.subr.mxu0 0.0
          %2577 = vmatpush1.msra.mxu0 0.0
          %2578 = vmatprep.subr.mxu0 0.0
          %2579 = vmatpush1.msra.mxu0 0.0
          %2580 = vmatprep.subr.mxu0 0.0
          %2581 = vmatpush1.msra.mxu0 0.0
          %2582 = vmatprep.subr.mxu0 %v466
          %2583 = vmatpush1.msra.mxu0 %v464
          %2584 = vmatprep.subr.mxu0 0.0
          %2585 = vmatpush2.msra.mxu0 0.0
          %2586 = vmatprep.subr.mxu0 0.0
          %2587 = vmatpush2.msra.mxu0 0.0
          %2588 = vmatprep.subr.mxu0 0.0
          %2589 = vmatpush2.msra.mxu0 0.0
          %2590 = vmatprep.subr.mxu0 0.0
          %2591 = vmatpush2.msra.mxu0 0.0
          %2592 = vmatprep.subr.mxu0 0.0
          %2593 = vmatpush2.msra.mxu0 0.0
          %2594 = vmatprep.subr.mxu0 0.0
          %2595 = vmatpush2.msra.mxu0 0.0
          %2596 = vmatprep.subr.mxu0 0.0
          %2597 = vmatpush2.msra.mxu0 0.0
          %2598 = vmatprep.subr.mxu0 0.0
          %2599 = vmatpush2.msra.mxu0 0.0
          %2600 = vmatprep.subr.mxu0 0.0
          %2601 = vmatpush2.msra.mxu0 0.0
          %2602 = vmatprep.subr.mxu0 0.0
          %2603 = vmatpush2.msra.mxu0 0.0
          %2604 = vmatprep.subr.mxu0 0.0
          %2605 = vmatpush2.msra.mxu0 0.0
          %2606 = vmatprep.subr.mxu0 0.0
          %2607 = vmatpush2.msra.mxu0 0.0
          %2608 = vmatprep.subr.mxu0 0.0
          %2609 = vmatpush2.msra.mxu0 0.0
          %2610 = vmatprep.subr.mxu0 0.0
          %2611 = vmatpush2.msra.mxu0 0.0
          %2612 = vmatprep.subr.mxu0 0.0
          %2613 = vmatpush2.msra.mxu0 0.0
          %2614 = vmatprep.subr.mxu0 0.0
          %2615 = vmatpush2.msra.mxu0 0.0
          %2616 = vmatprep.mubr.f32.mxu0 0.0
          %2617 = vmatmul.mubr.f32.gmra.mxu0 %v2550
          %v2618 = vpop.f32.mrf.mxu0
          %v2619 = vadd.f32 %v440, %v2618
          %v2620 = vpop.f32.mrf.mxu0
          %v2621 = vadd.f32 %v444, %v2620
          %2622 = vdwg.mxu0
          %2623 = vmatprep.subr.mxu0 0.0
          %2624 = vmatpush1.msra.mxu0 0.0
          %2625 = vmatprep.subr.mxu0 0.0
          %2626 = vmatpush1.msra.mxu0 0.0
          %2627 = vmatprep.subr.mxu0 0.0
          %2628 = vmatpush1.msra.mxu0 0.0
          %2629 = vmatprep.subr.mxu0 0.0
          %2630 = vmatpush1.msra.mxu0 0.0
          %2631 = vmatprep.subr.mxu0 0.0
          %2632 = vmatpush1.msra.mxu0 0.0
          %2633 = vmatprep.subr.mxu0 0.0
          %2634 = vmatpush1.msra.mxu0 0.0
          %2635 = vmatprep.subr.mxu0 0.0
          %2636 = vmatpush1.msra.mxu0 0.0
          %2637 = vmatprep.subr.mxu0 0.0
          %2638 = vmatpush1.msra.mxu0 0.0
          %2639 = vmatprep.subr.mxu0 0.0
          %2640 = vmatpush1.msra.mxu0 0.0
          %2641 = vmatprep.subr.mxu0 0.0
          %2642 = vmatpush1.msra.mxu0 0.0
          %2643 = vmatprep.subr.mxu0 0.0
          %2644 = vmatpush1.msra.mxu0 0.0
          %2645 = vmatprep.subr.mxu0 0.0
          %2646 = vmatpush1.msra.mxu0 0.0
          %2647 = vmatprep.subr.mxu0 0.0
          %2648 = vmatpush1.msra.mxu0 0.0
          %2649 = vmatprep.subr.mxu0 0.0
          %2650 = vmatpush1.msra.mxu0 0.0
          %2651 = vmatprep.subr.mxu0 0.0
          %2652 = vmatpush1.msra.mxu0 0.0
          %2653 = vmatprep.subr.mxu0 0.0
          %2654 = vmatpush1.msra.mxu0 %v468
          %2655 = vmatprep.subr.mxu0 0.0
          %2656 = vmatpush2.msra.mxu0 0.0
          %2657 = vmatprep.subr.mxu0 0.0
          %2658 = vmatpush2.msra.mxu0 0.0
          %2659 = vmatprep.subr.mxu0 0.0
          %2660 = vmatpush2.msra.mxu0 0.0
          %2661 = vmatprep.subr.mxu0 0.0
          %2662 = vmatpush2.msra.mxu0 0.0
          %2663 = vmatprep.subr.mxu0 0.0
          %2664 = vmatpush2.msra.mxu0 0.0
          %2665 = vmatprep.subr.mxu0 0.0
          %2666 = vmatpush2.msra.mxu0 0.0
          %2667 = vmatprep.subr.mxu0 0.0
          %2668 = vmatpush2.msra.mxu0 0.0
          %2669 = vmatprep.subr.mxu0 0.0
          %2670 = vmatpush2.msra.mxu0 0.0
          %2671 = vmatprep.subr.mxu0 0.0
          %2672 = vmatpush2.msra.mxu0 0.0
          %2673 = vmatprep.subr.mxu0 0.0
          %2674 = vmatpush2.msra.mxu0 0.0
          %2675 = vmatprep.subr.mxu0 0.0
          %2676 = vmatpush2.msra.mxu0 0.0
          %2677 = vmatprep.subr.mxu0 0.0
          %2678 = vmatpush2.msra.mxu0 0.0
          %2679 = vmatprep.subr.mxu0 0.0
          %2680 = vmatpush2.msra.mxu0 0.0
          %2681 = vmatprep.subr.mxu0 0.0
          %2682 = vmatpush2.msra.mxu0 0.0
          %2683 = vmatprep.subr.mxu0 0.0
          %2684 = vmatpush2.msra.mxu0 0.0
          %2685 = vmatprep.subr.mxu0 0.0
          %2686 = vmatpush2.msra.mxu0 0.0
          %2687 = vmatprep.mubr.f32.mxu0 0.0
          %2688 = vmatmul.mubr.f32.gmra.mxu0 %v2550
          %v2689 = vpop.f32.mrf.mxu0
          %v2690 = vadd.f32 %v448, %v2689
          %v2691 = vpop.f32.mrf.mxu0
          %2692 = vdwg.mxu0
          %2693 = vmatprep.subr.mxu0 %v426
          %2694 = vmatpush1.msra.mxu0 %v425
          %2695 = vmatprep.subr.mxu0 %v423
          %2696 = vmatpush1.msra.mxu0 %v422
          %2697 = vmatprep.subr.mxu0 %v420
          %2698 = vmatpush1.msra.mxu0 %v419
          %2699 = vmatprep.subr.mxu0 %v417
          %2700 = vmatpush1.msra.mxu0 %v416
          %2701 = vmatprep.subr.mxu0 %v414
          %2702 = vmatpush1.msra.mxu0 %v413
          %2703 = vmatprep.subr.mxu0 %v411
          %2704 = vmatpush1.msra.mxu0 %v410
          %2705 = vmatprep.subr.mxu0 %v408
          %2706 = vmatpush1.msra.mxu0 %v407
          %2707 = vmatprep.subr.mxu0 %v405
          %2708 = vmatpush1.msra.mxu0 %v404
          %2709 = vmatprep.subr.mxu0 %v402
          %2710 = vmatpush1.msra.mxu0 %v401
          %2711 = vmatprep.subr.mxu0 %v399
          %2712 = vmatpush1.msra.mxu0 %v398
          %2713 = vmatprep.subr.mxu0 %v396
          %2714 = vmatpush1.msra.mxu0 %v395
          %2715 = vmatprep.subr.mxu0 %v393
          %2716 = vmatpush1.msra.mxu0 %v392
          %2717 = vmatprep.subr.mxu0 %v390
          %2718 = vmatpush1.msra.mxu0 %v389
          %2719 = vmatprep.subr.mxu0 %v387
          %2720 = vmatpush1.msra.mxu0 %v386
          %2721 = vmatprep.subr.mxu0 %v384
          %2722 = vmatpush1.msra.mxu0 %v383
          %2723 = vmatprep.subr.mxu0 %v381
          %2724 = vmatpush1.msra.mxu0 %v380
          %2725 = vmatprep.subr.mxu0 0.0
          %2726 = vmatpush2.msra.mxu0 0.0
          %2727 = vmatprep.subr.mxu0 0.0
          %2728 = vmatpush2.msra.mxu0 0.0
          %2729 = vmatprep.subr.mxu0 0.0
          %2730 = vmatpush2.msra.mxu0 0.0
          %2731 = vmatprep.subr.mxu0 0.0
          %2732 = vmatpush2.msra.mxu0 0.0
          %2733 = vmatprep.subr.mxu0 0.0
          %2734 = vmatpush2.msra.mxu0 0.0
          %2735 = vmatprep.subr.mxu0 0.0
          %2736 = vmatpush2.msra.mxu0 0.0
          %2737 = vmatprep.subr.mxu0 0.0
          %2738 = vmatpush2.msra.mxu0 0.0
          %2739 = vmatprep.subr.mxu0 0.0
          %2740 = vmatpush2.msra.mxu0 0.0
          %2741 = vmatprep.subr.mxu0 0.0
          %2742 = vmatpush2.msra.mxu0 0.0
          %2743 = vmatprep.subr.mxu0 0.0
          %2744 = vmatpush2.msra.mxu0 0.0
          %2745 = vmatprep.subr.mxu0 0.0
          %2746 = vmatpush2.msra.mxu0 0.0
          %2747 = vmatprep.subr.mxu0 0.0
          %2748 = vmatpush2.msra.mxu0 0.0
          %2749 = vmatprep.subr.mxu0 0.0
          %2750 = vmatpush2.msra.mxu0 0.0
          %2751 = vmatprep.subr.mxu0 0.0
          %2752 = vmatpush2.msra.mxu0 0.0
          %2753 = vmatprep.subr.mxu0 0.0
          %2754 = vmatpush2.msra.mxu0 0.0
          %2755 = vmatprep.subr.mxu0 0.0
          %2756 = vmatpush2.msra.mxu0 0.0
          %2757 = vmatprep.mubr.f32.mxu0 0.0
          %2758 = vmatmul.mubr.f32.gmra.mxu0 %v2543
          %v2759 = vpop.f32.mrf.mxu0
          %v2760 = vadd.f32 0.0, %v2759
          %v2761 = vpop.f32.mrf.mxu0
          %v2762 = vadd.f32 0.0, %v2761
          %2763 = vdwg.mxu0
          %2764 = vmatprep.subr.mxu0 0.0
          %2765 = vmatpush1.msra.mxu0 %v427
          %2766 = vmatprep.subr.mxu0 0.0
          %2767 = vmatpush1.msra.mxu0 %v424
          %2768 = vmatprep.subr.mxu0 0.0
          %2769 = vmatpush1.msra.mxu0 %v421
          %2770 = vmatprep.subr.mxu0 0.0
          %2771 = vmatpush1.msra.mxu0 %v418
          %2772 = vmatprep.subr.mxu0 0.0
          %2773 = vmatpush1.msra.mxu0 %v415
          %2774 = vmatprep.subr.mxu0 0.0
          %2775 = vmatpush1.msra.mxu0 %v412
          %2776 = vmatprep.subr.mxu0 0.0
          %2777 = vmatpush1.msra.mxu0 %v409
          %2778 = vmatprep.subr.mxu0 0.0
          %2779 = vmatpush1.msra.mxu0 %v406
          %2780 = vmatprep.subr.mxu0 0.0
          %2781 = vmatpush1.msra.mxu0 %v403
          %2782 = vmatprep.subr.mxu0 0.0
          %2783 = vmatpush1.msra.mxu0 %v400
          %2784 = vmatprep.subr.mxu0 0.0
          %2785 = vmatpush1.msra.mxu0 %v397
          %2786 = vmatprep.subr.mxu0 0.0
          %2787 = vmatpush1.msra.mxu0 %v394
          %2788 = vmatprep.subr.mxu0 0.0
          %2789 = vmatpush1.msra.mxu0 %v391
          %2790 = vmatprep.subr.mxu0 0.0
          %2791 = vmatpush1.msra.mxu0 %v388
          %2792 = vmatprep.subr.mxu0 0.0
          %2793 = vmatpush1.msra.mxu0 %v385
          %2794 = vmatprep.subr.mxu0 0.0
          %2795 = vmatpush1.msra.mxu0 %v382
          %2796 = vmatprep.subr.mxu0 0.0
          %2797 = vmatpush2.msra.mxu0 0.0
          %2798 = vmatprep.subr.mxu0 0.0
          %2799 = vmatpush2.msra.mxu0 0.0
          %2800 = vmatprep.subr.mxu0 0.0
          %2801 = vmatpush2.msra.mxu0 0.0
          %2802 = vmatprep.subr.mxu0 0.0
          %2803 = vmatpush2.msra.mxu0 0.0
          %2804 = vmatprep.subr.mxu0 0.0
          %2805 = vmatpush2.msra.mxu0 0.0
          %2806 = vmatprep.subr.mxu0 0.0
          %2807 = vmatpush2.msra.mxu0 0.0
          %2808 = vmatprep.subr.mxu0 0.0
          %2809 = vmatpush2.msra.mxu0 0.0
          %2810 = vmatprep.subr.mxu0 0.0
          %2811 = vmatpush2.msra.mxu0 0.0
          %2812 = vmatprep.subr.mxu0 0.0
          %2813 = vmatpush2.msra.mxu0 0.0
          %2814 = vmatprep.subr.mxu0 0.0
          %2815 = vmatpush2.msra.mxu0 0.0
          %2816 = vmatprep.subr.mxu0 0.0
          %2817 = vmatpush2.msra.mxu0 0.0
          %2818 = vmatprep.subr.mxu0 0.0
          %2819 = vmatpush2.msra.mxu0 0.0
          %2820 = vmatprep.subr.mxu0 0.0
          %2821 = vmatpush2.msra.mxu0 0.0
          %2822 = vmatprep.subr.mxu0 0.0
          %2823 = vmatpush2.msra.mxu0 0.0
          %2824 = vmatprep.subr.mxu0 0.0
          %2825 = vmatpush2.msra.mxu0 0.0
          %2826 = vmatprep.subr.mxu0 0.0
          %2827 = vmatpush2.msra.mxu0 0.0
          %2828 = vmatprep.mubr.f32.mxu0 0.0
          %2829 = vmatmul.mubr.f32.gmra.mxu0 %v2543
          %v2830 = vpop.f32.mrf.mxu0
          %v2831 = vadd.f32 0.0, %v2830
          %v2832 = vpop.f32.mrf.mxu0
          %2833 = vdwg.mxu0
          %v2834 = vadd.f32 %v2619, %v2760
          %v2835 = vxor.u32 %v2834, 2147483648
          %v2836 = vmul.f32 %v2835, 1.442695
          %v2837 = vpow.pop %v2836
          %v2838 = vadd.f32 %v2837, 1.0
          %v2839 = vrcp.pop %v2838
          %v2840 = vmul.f32 1.0, %v2839
          %v2841 = vadd.f32 %v2621, %v2762
          %v2842 = vxor.u32 %v2841, 2147483648
          %v2843 = vmul.f32 %v2842, 1.442695
          %v2844 = vpow.pop %v2843
          %v2845 = vadd.f32 %v2844, 1.0
          %v2846 = vrcp.pop %v2845
          %v2847 = vmul.f32 1.0, %v2846
          %v2848 = vadd.f32 %v2831, %v770
          %v2849 = vmul.f32 %v2840, %v2848
          %v2850 = vadd.f32 %v2690, %v2849
          %v2851 = vtanh.pop %v2850
          %v2852 = vsub.f32 %v2543, %v2851
          %v2853 = vmul.f32 %v2847, %v2852
          %v2854 = vadd.f32 %v2851, %v2853
          %vm2855 = vcmp.gt.s32.totalorder %v432, 6
          %v2856 = vsel %vm2855, 1, 0
          %2857 = vset.pattern.permute.xlu0 0
          %2858 = vperm.xlu0 %2857, %v2856
          %v2859 = vpop.permute.xlu0 %2858
          %vm2860 = vcmp.eq.s32.totalorder %v2859, 1
          %v2861 = vsel %vm2860, %v2854, 0.0
          %v2864 = vunpack.c.l.s4 1966171168
          %v2865 = vunpack.c.0.s8 %v2864
          %v2866 = vlaneseq
          %v2867 = vshrl.u32 %v2866, 7
          %v2868 = vsub.s32 %v2865, %v2867
          %v2869 = vrot.slane %v2861, %v2868
          %v2870 = vcombine.high %v2869, %v2869
          %v2872 = vunpack.c.l.s4 1966171168
          %v2873 = vunpack.c.0.s8 %v2872
          %v2874 = vlaneseq
          %v2875 = vshrl.u32 %v2874, 7
          %v2876 = vsub.s32 %v2873, %v2875
          %v2877 = vrot.slane %v2869, %v2876
          %v2879 = vunpack.c.l.s4 1966171168
          %v2880 = vunpack.c.0.s8 %v2879
          %v2881 = vlaneseq
          %v2882 = vshrl.u32 %v2881, 7
          %v2883 = vsub.s32 %v2880, %v2882
          %v2884 = vrot.slane %v2870, %v2883
          %2887 = vst [vmem:[%s350 + $0x6] sm:$0x1] %v2877
          %2888 = vst [vmem:[%s350 + $0xe] sm:$0x1] %v2884
          %v2889 = vsel %vm2860, %v2854, %v2543
          %v2890 = vld [vmem:[%s320 + $0x7] sm:$0x1]
          %v2891 = vld [vmem:[%s320 + $0xf] sm:$0x1]
          %v2894 = vrot.slane %v2891, 7
          %v2895 = vsel %vm455, %v2894, %v2890
          %v2896 = vsel %vm460, %v2895, 0
          %2898 = vmatprep.subr.mxu0 0.0
          %2899 = vmatpush1.msra.mxu0 0.0
          %2900 = vmatprep.subr.mxu0 0.0
          %2901 = vmatpush1.msra.mxu0 0.0
          %2902 = vmatprep.subr.mxu0 0.0
          %2903 = vmatpush1.msra.mxu0 0.0
          %2904 = vmatprep.subr.mxu0 0.0
          %2905 = vmatpush1.msra.mxu0 0.0
          %2906 = vmatprep.subr.mxu0 0.0
          %2907 = vmatpush1.msra.mxu0 0.0
          %2908 = vmatprep.subr.mxu0 0.0
          %2909 = vmatpush1.msra.mxu0 0.0
          %2910 = vmatprep.subr.mxu0 0.0
          %2911 = vmatpush1.msra.mxu0 0.0
          %2912 = vmatprep.subr.mxu0 0.0
          %2913 = vmatpush1.msra.mxu0 0.0
          %2914 = vmatprep.subr.mxu0 0.0
          %2915 = vmatpush1.msra.mxu0 0.0
          %2916 = vmatprep.subr.mxu0 0.0
          %2917 = vmatpush1.msra.mxu0 0.0
          %2918 = vmatprep.subr.mxu0 0.0
          %2919 = vmatpush1.msra.mxu0 0.0
          %2920 = vmatprep.subr.mxu0 0.0
          %2921 = vmatpush1.msra.mxu0 0.0
          %2922 = vmatprep.subr.mxu0 0.0
          %2923 = vmatpush1.msra.mxu0 0.0
          %2924 = vmatprep.subr.mxu0 0.0
          %2925 = vmatpush1.msra.mxu0 0.0
          %2926 = vmatprep.subr.mxu0 0.0
          %2927 = vmatpush1.msra.mxu0 0.0
          %2928 = vmatprep.subr.mxu0 %v466
          %2929 = vmatpush1.msra.mxu0 %v464
          %2930 = vmatprep.subr.mxu0 0.0
          %2931 = vmatpush2.msra.mxu0 0.0
          %2932 = vmatprep.subr.mxu0 0.0
          %2933 = vmatpush2.msra.mxu0 0.0
          %2934 = vmatprep.subr.mxu0 0.0
          %2935 = vmatpush2.msra.mxu0 0.0
          %2936 = vmatprep.subr.mxu0 0.0
          %2937 = vmatpush2.msra.mxu0 0.0
          %2938 = vmatprep.subr.mxu0 0.0
          %2939 = vmatpush2.msra.mxu0 0.0
          %2940 = vmatprep.subr.mxu0 0.0
          %2941 = vmatpush2.msra.mxu0 0.0
          %2942 = vmatprep.subr.mxu0 0.0
          %2943 = vmatpush2.msra.mxu0 0.0
          %2944 = vmatprep.subr.mxu0 0.0
          %2945 = vmatpush2.msra.mxu0 0.0
          %2946 = vmatprep.subr.mxu0 0.0
          %2947 = vmatpush2.msra.mxu0 0.0
          %2948 = vmatprep.subr.mxu0 0.0
          %2949 = vmatpush2.msra.mxu0 0.0
          %2950 = vmatprep.subr.mxu0 0.0
          %2951 = vmatpush2.msra.mxu0 0.0
          %2952 = vmatprep.subr.mxu0 0.0
          %2953 = vmatpush2.msra.mxu0 0.0
          %2954 = vmatprep.subr.mxu0 0.0
          %2955 = vmatpush2.msra.mxu0 0.0
          %2956 = vmatprep.subr.mxu0 0.0
          %2957 = vmatpush2.msra.mxu0 0.0
          %2958 = vmatprep.subr.mxu0 0.0
          %2959 = vmatpush2.msra.mxu0 0.0
          %2960 = vmatprep.subr.mxu0 0.0
          %2961 = vmatpush2.msra.mxu0 0.0
          %2962 = vmatprep.mubr.f32.mxu0 0.0
          %2963 = vmatmul.mubr.f32.gmra.mxu0 %v2896
          %v2964 = vpop.f32.mrf.mxu0
          %v2965 = vadd.f32 %v440, %v2964
          %v2966 = vpop.f32.mrf.mxu0
          %v2967 = vadd.f32 %v444, %v2966
          %2968 = vdwg.mxu0
          %2969 = vmatprep.subr.mxu0 0.0
          %2970 = vmatpush1.msra.mxu0 0.0
          %2971 = vmatprep.subr.mxu0 0.0
          %2972 = vmatpush1.msra.mxu0 0.0
          %2973 = vmatprep.subr.mxu0 0.0
          %2974 = vmatpush1.msra.mxu0 0.0
          %2975 = vmatprep.subr.mxu0 0.0
          %2976 = vmatpush1.msra.mxu0 0.0
          %2977 = vmatprep.subr.mxu0 0.0
          %2978 = vmatpush1.msra.mxu0 0.0
          %2979 = vmatprep.subr.mxu0 0.0
          %2980 = vmatpush1.msra.mxu0 0.0
          %2981 = vmatprep.subr.mxu0 0.0
          %2982 = vmatpush1.msra.mxu0 0.0
          %2983 = vmatprep.subr.mxu0 0.0
          %2984 = vmatpush1.msra.mxu0 0.0
          %2985 = vmatprep.subr.mxu0 0.0
          %2986 = vmatpush1.msra.mxu0 0.0
          %2987 = vmatprep.subr.mxu0 0.0
          %2988 = vmatpush1.msra.mxu0 0.0
          %2989 = vmatprep.subr.mxu0 0.0
          %2990 = vmatpush1.msra.mxu0 0.0
          %2991 = vmatprep.subr.mxu0 0.0
          %2992 = vmatpush1.msra.mxu0 0.0
          %2993 = vmatprep.subr.mxu0 0.0
          %2994 = vmatpush1.msra.mxu0 0.0
          %2995 = vmatprep.subr.mxu0 0.0
          %2996 = vmatpush1.msra.mxu0 0.0
          %2997 = vmatprep.subr.mxu0 0.0
          %2998 = vmatpush1.msra.mxu0 0.0
          %2999 = vmatprep.subr.mxu0 0.0
          %3000 = vmatpush1.msra.mxu0 %v468
          %3001 = vmatprep.subr.mxu0 0.0
          %3002 = vmatpush2.msra.mxu0 0.0
          %3003 = vmatprep.subr.mxu0 0.0
          %3004 = vmatpush2.msra.mxu0 0.0
          %3005 = vmatprep.subr.mxu0 0.0
          %3006 = vmatpush2.msra.mxu0 0.0
          %3007 = vmatprep.subr.mxu0 0.0
          %3008 = vmatpush2.msra.mxu0 0.0
          %3009 = vmatprep.subr.mxu0 0.0
          %3010 = vmatpush2.msra.mxu0 0.0
          %3011 = vmatprep.subr.mxu0 0.0
          %3012 = vmatpush2.msra.mxu0 0.0
          %3013 = vmatprep.subr.mxu0 0.0
          %3014 = vmatpush2.msra.mxu0 0.0
          %3015 = vmatprep.subr.mxu0 0.0
          %3016 = vmatpush2.msra.mxu0 0.0
          %3017 = vmatprep.subr.mxu0 0.0
          %3018 = vmatpush2.msra.mxu0 0.0
          %3019 = vmatprep.subr.mxu0 0.0
          %3020 = vmatpush2.msra.mxu0 0.0
          %3021 = vmatprep.subr.mxu0 0.0
          %3022 = vmatpush2.msra.mxu0 0.0
          %3023 = vmatprep.subr.mxu0 0.0
          %3024 = vmatpush2.msra.mxu0 0.0
          %3025 = vmatprep.subr.mxu0 0.0
          %3026 = vmatpush2.msra.mxu0 0.0
          %3027 = vmatprep.subr.mxu0 0.0
          %3028 = vmatpush2.msra.mxu0 0.0
          %3029 = vmatprep.subr.mxu0 0.0
          %3030 = vmatpush2.msra.mxu0 0.0
          %3031 = vmatprep.subr.mxu0 0.0
          %3032 = vmatpush2.msra.mxu0 0.0
          %3033 = vmatprep.mubr.f32.mxu0 0.0
          %3034 = vmatmul.mubr.f32.gmra.mxu0 %v2896
          %v3035 = vpop.f32.mrf.mxu0
          %v3036 = vadd.f32 %v448, %v3035
          %v3037 = vpop.f32.mrf.mxu0
          %3038 = vdwg.mxu0
          %3039 = vmatprep.subr.mxu0 %v426
          %3040 = vmatpush1.msra.mxu0 %v425
          %3041 = vmatprep.subr.mxu0 %v423
          %3042 = vmatpush1.msra.mxu0 %v422
          %3043 = vmatprep.subr.mxu0 %v420
          %3044 = vmatpush1.msra.mxu0 %v419
          %3045 = vmatprep.subr.mxu0 %v417
          %3046 = vmatpush1.msra.mxu0 %v416
          %3047 = vmatprep.subr.mxu0 %v414
          %3048 = vmatpush1.msra.mxu0 %v413
          %3049 = vmatprep.subr.mxu0 %v411
          %3050 = vmatpush1.msra.mxu0 %v410
          %3051 = vmatprep.subr.mxu0 %v408
          %3052 = vmatpush1.msra.mxu0 %v407
          %3053 = vmatprep.subr.mxu0 %v405
          %3054 = vmatpush1.msra.mxu0 %v404
          %3055 = vmatprep.subr.mxu0 %v402
          %3056 = vmatpush1.msra.mxu0 %v401
          %3057 = vmatprep.subr.mxu0 %v399
          %3058 = vmatpush1.msra.mxu0 %v398
          %3059 = vmatprep.subr.mxu0 %v396
          %3060 = vmatpush1.msra.mxu0 %v395
          %3061 = vmatprep.subr.mxu0 %v393
          %3062 = vmatpush1.msra.mxu0 %v392
          %3063 = vmatprep.subr.mxu0 %v390
          %3064 = vmatpush1.msra.mxu0 %v389
          %3065 = vmatprep.subr.mxu0 %v387
          %3066 = vmatpush1.msra.mxu0 %v386
          %3067 = vmatprep.subr.mxu0 %v384
          %3068 = vmatpush1.msra.mxu0 %v383
          %3069 = vmatprep.subr.mxu0 %v381
          %3070 = vmatpush1.msra.mxu0 %v380
          %3071 = vmatprep.subr.mxu0 0.0
          %3072 = vmatpush2.msra.mxu0 0.0
          %3073 = vmatprep.subr.mxu0 0.0
          %3074 = vmatpush2.msra.mxu0 0.0
          %3075 = vmatprep.subr.mxu0 0.0
          %3076 = vmatpush2.msra.mxu0 0.0
          %3077 = vmatprep.subr.mxu0 0.0
          %3078 = vmatpush2.msra.mxu0 0.0
          %3079 = vmatprep.subr.mxu0 0.0
          %3080 = vmatpush2.msra.mxu0 0.0
          %3081 = vmatprep.subr.mxu0 0.0
          %3082 = vmatpush2.msra.mxu0 0.0
          %3083 = vmatprep.subr.mxu0 0.0
          %3084 = vmatpush2.msra.mxu0 0.0
          %3085 = vmatprep.subr.mxu0 0.0
          %3086 = vmatpush2.msra.mxu0 0.0
          %3087 = vmatprep.subr.mxu0 0.0
          %3088 = vmatpush2.msra.mxu0 0.0
          %3089 = vmatprep.subr.mxu0 0.0
          %3090 = vmatpush2.msra.mxu0 0.0
          %3091 = vmatprep.subr.mxu0 0.0
          %3092 = vmatpush2.msra.mxu0 0.0
          %3093 = vmatprep.subr.mxu0 0.0
          %3094 = vmatpush2.msra.mxu0 0.0
          %3095 = vmatprep.subr.mxu0 0.0
          %3096 = vmatpush2.msra.mxu0 0.0
          %3097 = vmatprep.subr.mxu0 0.0
          %3098 = vmatpush2.msra.mxu0 0.0
          %3099 = vmatprep.subr.mxu0 0.0
          %3100 = vmatpush2.msra.mxu0 0.0
          %3101 = vmatprep.subr.mxu0 0.0
          %3102 = vmatpush2.msra.mxu0 0.0
          %3103 = vmatprep.mubr.f32.mxu0 0.0
          %3104 = vmatmul.mubr.f32.gmra.mxu0 %v2889
          %v3105 = vpop.f32.mrf.mxu0
          %v3106 = vadd.f32 0.0, %v3105
          %v3107 = vpop.f32.mrf.mxu0
          %v3108 = vadd.f32 0.0, %v3107
          %3109 = vdwg.mxu0
          %3110 = vmatprep.subr.mxu0 0.0
          %3111 = vmatpush1.msra.mxu0 %v427
          %3112 = vmatprep.subr.mxu0 0.0
          %3113 = vmatpush1.msra.mxu0 %v424
          %3114 = vmatprep.subr.mxu0 0.0
          %3115 = vmatpush1.msra.mxu0 %v421
          %3116 = vmatprep.subr.mxu0 0.0
          %3117 = vmatpush1.msra.mxu0 %v418
          %3118 = vmatprep.subr.mxu0 0.0
          %3119 = vmatpush1.msra.mxu0 %v415
          %3120 = vmatprep.subr.mxu0 0.0
          %3121 = vmatpush1.msra.mxu0 %v412
          %3122 = vmatprep.subr.mxu0 0.0
          %3123 = vmatpush1.msra.mxu0 %v409
          %3124 = vmatprep.subr.mxu0 0.0
          %3125 = vmatpush1.msra.mxu0 %v406
          %3126 = vmatprep.subr.mxu0 0.0
          %3127 = vmatpush1.msra.mxu0 %v403
          %3128 = vmatprep.subr.mxu0 0.0
          %3129 = vmatpush1.msra.mxu0 %v400
          %3130 = vmatprep.subr.mxu0 0.0
          %3131 = vmatpush1.msra.mxu0 %v397
          %3132 = vmatprep.subr.mxu0 0.0
          %3133 = vmatpush1.msra.mxu0 %v394
          %3134 = vmatprep.subr.mxu0 0.0
          %3135 = vmatpush1.msra.mxu0 %v391
          %3136 = vmatprep.subr.mxu0 0.0
          %3137 = vmatpush1.msra.mxu0 %v388
          %3138 = vmatprep.subr.mxu0 0.0
          %3139 = vmatpush1.msra.mxu0 %v385
          %3140 = vmatprep.subr.mxu0 0.0
          %3141 = vmatpush1.msra.mxu0 %v382
          %3142 = vmatprep.subr.mxu0 0.0
          %3143 = vmatpush2.msra.mxu0 0.0
          %3144 = vmatprep.subr.mxu0 0.0
          %3145 = vmatpush2.msra.mxu0 0.0
          %3146 = vmatprep.subr.mxu0 0.0
          %3147 = vmatpush2.msra.mxu0 0.0
          %3148 = vmatprep.subr.mxu0 0.0
          %3149 = vmatpush2.msra.mxu0 0.0
          %3150 = vmatprep.subr.mxu0 0.0
          %3151 = vmatpush2.msra.mxu0 0.0
          %3152 = vmatprep.subr.mxu0 0.0
          %3153 = vmatpush2.msra.mxu0 0.0
          %3154 = vmatprep.subr.mxu0 0.0
          %3155 = vmatpush2.msra.mxu0 0.0
          %3156 = vmatprep.subr.mxu0 0.0
          %3157 = vmatpush2.msra.mxu0 0.0
          %3158 = vmatprep.subr.mxu0 0.0
          %3159 = vmatpush2.msra.mxu0 0.0
          %3160 = vmatprep.subr.mxu0 0.0
          %3161 = vmatpush2.msra.mxu0 0.0
          %3162 = vmatprep.subr.mxu0 0.0
          %3163 = vmatpush2.msra.mxu0 0.0
          %3164 = vmatprep.subr.mxu0 0.0
          %3165 = vmatpush2.msra.mxu0 0.0
          %3166 = vmatprep.subr.mxu0 0.0
          %3167 = vmatpush2.msra.mxu0 0.0
          %3168 = vmatprep.subr.mxu0 0.0
          %3169 = vmatpush2.msra.mxu0 0.0
          %3170 = vmatprep.subr.mxu0 0.0
          %3171 = vmatpush2.msra.mxu0 0.0
          %3172 = vmatprep.subr.mxu0 0.0
          %3173 = vmatpush2.msra.mxu0 0.0
          %3174 = vmatprep.mubr.f32.mxu0 0.0
          %3175 = vmatmul.mubr.f32.gmra.mxu0 %v2889
          %v3176 = vpop.f32.mrf.mxu0
          %v3177 = vadd.f32 0.0, %v3176
          %v3178 = vpop.f32.mrf.mxu0
          %3179 = vdwg.mxu0
          %v3180 = vadd.f32 %v2965, %v3106
          %v3181 = vxor.u32 %v3180, 2147483648
          %v3182 = vmul.f32 %v3181, 1.442695
          %v3183 = vpow.pop %v3182
          %v3184 = vadd.f32 %v3183, 1.0
          %v3185 = vrcp.pop %v3184
          %v3186 = vmul.f32 1.0, %v3185
          %v3187 = vadd.f32 %v2967, %v3108
          %v3188 = vxor.u32 %v3187, 2147483648
          %v3189 = vmul.f32 %v3188, 1.442695
          %v3190 = vpow.pop %v3189
          %v3191 = vadd.f32 %v3190, 1.0
          %v3192 = vrcp.pop %v3191
          %v3193 = vmul.f32 1.0, %v3192
          %v3194 = vadd.f32 %v3177, %v770
          %v3195 = vmul.f32 %v3186, %v3194
          %v3196 = vadd.f32 %v3036, %v3195
          %v3197 = vtanh.pop %v3196
          %v3198 = vsub.f32 %v2889, %v3197
          %v3199 = vmul.f32 %v3193, %v3198
          %v3200 = vadd.f32 %v3197, %v3199
          %vm3201 = vcmp.gt.s32.totalorder %v432, 7
          %v3202 = vsel %vm3201, 1, 0
          %3203 = vset.pattern.permute.xlu0 0
          %3204 = vperm.xlu0 %3203, %v3202
          %v3205 = vpop.permute.xlu0 %3204
          %vm3206 = vcmp.eq.s32.totalorder %v3205, 1
          %v3207 = vsel %vm3206, %v3200, 0.0
          %v3210 = vunpack.c.l.s4 1966171168
          %v3211 = vunpack.c.0.s8 %v3210
          %v3212 = vlaneseq
          %v3213 = vshrl.u32 %v3212, 7
          %v3214 = vsub.s32 %v3211, %v3213
          %v3215 = vrot.slane %v3207, %v3214
          %v3216 = vcombine.high %v3215, %v3215
          %v3218 = vunpack.c.l.s4 1966171168
          %v3219 = vunpack.c.0.s8 %v3218
          %v3220 = vlaneseq
          %v3221 = vshrl.u32 %v3220, 7
          %v3222 = vsub.s32 %v3219, %v3221
          %v3223 = vrot.slane %v3215, %v3222
          %v3225 = vunpack.c.l.s4 1966171168
          %v3226 = vunpack.c.0.s8 %v3225
          %v3227 = vlaneseq
          %v3228 = vshrl.u32 %v3227, 7
          %v3229 = vsub.s32 %v3226, %v3228
          %v3230 = vrot.slane %v3216, %v3229
          %3233 = vst [vmem:[%s350 + $0x7] sm:$0x1] %v3223
          %3234 = vst [vmem:[%s350 + $0xf] sm:$0x1] %v3230
          %v3235 = vsel %vm3206, %v3200, %v2889
          %3236 = vst [vmem:[#allocation2] sm:$0x3] %v3235
        $region90: #{rnn_wrapper_forward.1} parent=77 // pred_fallthru
          _
        %p3237 = scmp.ge.s32.totalorder %s372, %s373
        // Predicated region
        $region91: #{rnn_wrapper_forward.1} parent=77 // pred_check
          %p3238 = pneg %p3237
        $region92: #{rnn_wrapper_forward.1} parent=77 // pred_check_branch
          %3240 = sbr.rel (%p3238) target = $region94
        $region93: #{rnn_wrapper_forward.1} parent=77 // pred_region
          %3241 = vst [vmem:[%s350] sm:$0xff] 0.0
          %3242 = vst [vmem:[%s350 + $0x8] sm:$0xff] 0.0
        $region94: #{rnn_wrapper_forward.1} parent=77 // pred_fallthru
          _
        %p3243 = scmp.eq.s32.totalorder %s29, 1
        // Predicated region
        $region95: #{rnn_wrapper_forward.1} parent=77 // pred_check
          %p3244 = pneg %p3243
        $region96: #{rnn_wrapper_forward.1} parent=77 // pred_check_branch
          %3246 = sbr.rel (%p3244) target = $region98
        $region97: #{rnn_wrapper_forward.1} parent=77 // pred_region
          %v3247 = vld [vmem:[#allocation2] sm:$0x3]
          %3248 = vst [vmem:[%s366] sm:$0x3] %v3247
        $region98: #{rnn_wrapper_forward.1} parent=77 // pred_fallthru
          _
        %s3249 = sand.u32 %s184, 1
        %s3250 = scalar_lea.sflag [#allocation7], %s3249
        %s3251 = sand.u32 %s184, 1
        %s3252 = smul.addr %s3251, 16
        %s3253 = scalar_lea.vmem [#allocation6], %s3252
        %p3254 = scmp.lt.s32.totalorder %s28, 0
        %s3255 = scalar_select %p3254, %s28, 0
        %s3256 = smul.addr %s3255, 2
        %s3257 = scalar_lea.vmem %s8, %s3256
        // Predicated region
        $region99: #{rnn_wrapper_forward.1} parent=77 // pred_check
          %p3258 = pneg %p194
        $region100: #{rnn_wrapper_forward.1} parent=77 // pred_check_branch
          %3260 = sbr.rel (%p3258) target = $region102
        $region101: #{rnn_wrapper_forward.1} parent=77 // pred_region
          %s3261 = smul.u32 2, %s28
          %s3263 = ssub.s32 256, 256
          %3264 = vsyncadd %s3250, %s3263
          %s3265 = smul.addr %s3261, 2
          %s3266 = sadd.s32 %s29, %s3265
          %s3267 = smul.addr %s3266, 128
          %s3268 = scalar_lea.hbm %s7, %s3267
          %s3269 = sshll.u32 %s3253, 4
          %s3270 = int_to_ptr.vmem [resolvable:$true] %s3269
          %3275 = dma.vmem_to_hbm [thread:$0]  %s3270, 256, %s3268, %s3250, 128, 256, 8
        $region102: #{rnn_wrapper_forward.1} parent=77 // pred_fallthru
          _
        // Predicated region
        $region103: #{rnn_wrapper_forward.1} parent=77 // pred_check
          %p3276 = pneg %p220
        $region104: #{rnn_wrapper_forward.1} parent=77 // pred_check_branch
          %3278 = sbr.rel (%p3276) target = $region106
        $region105: #{rnn_wrapper_forward.1} parent=77 // pred_region
          _
        $region106: #{rnn_wrapper_forward.1} parent=77 // pred_fallthru
          _
        // Predicated region
        $region107: #{rnn_wrapper_forward.1} parent=77 // pred_check
          %p3279 = pneg %p220
        $region108: #{rnn_wrapper_forward.1} parent=77 // pred_check_branch
          %3281 = sbr.rel (%p3279) target = $region110
        $region109: #{rnn_wrapper_forward.1} parent=77 // pred_region
          %p3282 = scmp.lt.s32.totalorder %s28, 0
          %s3283 = scalar_select %p3282, %s28, 0
          %s3284 = smul.addr %s3283, 2
          %s3285 = scalar_lea.vmem %s8, %s3284
        $region110: #{rnn_wrapper_forward.1} parent=77 // pred_fallthru
          _
      $region78: #{rnn_wrapper_forward.1} parent=5 // pred_fallthru
        _
      %p3286 = scmp.le.s32.totalorder 2, %s19
      // Predicated region
      $region111: #{rnn_wrapper_forward.1} parent=5 // pred_check
        %p3287 = pneg %p3286
      $region112: #{rnn_wrapper_forward.1} parent=5 // pred_check_branch
        %3289 = sbr.rel (%p3287) target = $region114
      $region113: #{rnn_wrapper_forward.1} parent=5 // pred_region
        %s3290 = ssub.s32 %s19, 2
        // Predicated region
        $region115: #{rnn_wrapper_forward.1} parent=113 // pred_check
          %p3291 = pneg %p200
        $region116: #{rnn_wrapper_forward.1} parent=113 // pred_check_branch
          %3293 = sbr.rel (%p3291) target = $region118
        $region117: #{rnn_wrapper_forward.1} parent=113 // pred_region
          %s3294 = sand.u32 %s185, 1
          %s3295 = scalar_lea.sflag [#allocation7], %s3294
          %s3296 = sand.u32 %s185, 1
          %s3297 = smul.addr %s3296, 16
          %s3298 = scalar_lea.vmem [#allocation6], %s3297
          %3299 = dma.done %s3295, 256
        $region118: #{rnn_wrapper_forward.1} parent=113 // pred_fallthru
          _
      $region114: #{rnn_wrapper_forward.1} parent=5 // pred_fallthru
        _
    $region6: #{rnn_wrapper_forward.1} parent=1 // loop_footer
      %s23 = sadd.s32 1, %s19
    $region7: #{rnn_wrapper_forward.1} parent=1 // loop_footer_branch
      %18 = sbr.rel target = $region3
    $region8: #{rnn_wrapper_forward.1} parent=1 // loop_exit
      _
    %3300 = vsyncpa [#allocation7], 1
    %s3301 = scalar_lea.sflag [#allocation7], 1
    %3302 = vsyncpa %s3301, 1

</llo_original>
